<compile_context>
chip_gen: v7x
topology: tpu7x:2x2x1
jax: 0.10.0
libtpu: 0.0.40
codegen_flags: <defaults>
</compile_context>

<pallas_src>
import functools

import jax
import jax.numpy as jnp
from jax.experimental import pallas as pl
from jax.experimental.pallas import tpu as pltpu

EPS = 1e-5  # PyTorch BatchNorm2d default eps


# ------------------------------------------------------------------- kernel --
def _conv_bn_relu_kernel(x_ref, w_ref, b_ref, o_ref, acc_ref, *, kh, kw, th, wo,
                         cin, cout):
    """One (batch, row-tile) grid cell of fused conv(kxk, stride=1) + BN + ReLU.

    x_ref : (1, Hp, Wp, Cin)   bf16  -- full padded image for this batch element
    w_ref : (kh, kw, Cin, Cout) bf16 -- BN scale pre-folded into output columns
    b_ref : (1, Cout)          f32   -- folded BN shift (+ conv bias)
    o_ref : (1, th, Wo, Cout)  f32
    acc_ref: (th*Wo, Cout)     f32 VMEM scratch accumulator
    """
    row0 = pl.program_id(1) * th
    acc_ref[...] = jnp.zeros_like(acc_ref)

    # In-kernel tap accumulation (replaces im2col): each tap is a shifted
    # (th, Wo, Cin) window of the halo'd VMEM tile -> one bf16 MXU matmul,
    # accumulated in f32.
    for dy in range(kh):
        for dx in range(kw):
            patch = x_ref[0, pl.ds(row0 + dy, th), pl.ds(dx, wo), :]
            acc_ref[...] += jnp.dot(
                patch.reshape(th * wo, cin),
                w_ref[dy, dx],
                preferred_element_type=jnp.float32,
            )

    # f32 epilogue: BN shift (+ conv bias) and ReLU. Scale is already folded
    # into the weights, so this is a single add + max.
    y = jnp.maximum(acc_ref[...] + b_ref[...], 0.0)
    o_ref[...] = y.reshape(1, th, wo, cout).astype(o_ref.dtype)


# ------------------------------------------------------------------ wrapper --
def conv_block_apply(x_nchw, params, *, stride, padding):
    """Fused Conv2d + BatchNorm2d(eval) + ReLU. x_nchw: (N, Cin, H, W) f32."""
    if stride != 1:
        # TODO(synk): stride > 1 path (strided pl.ds taps); module usage is stride=1.
        raise NotImplementedError("conv_block_apply only implements stride=1")

    w = params["conv_w"]                      # (kh, kw, Cin, Cout) f32
    bias = params["conv_b"]                   # (Cout,) f32
    bn = params["bn"]

    # Eval-mode BN fold: y = scale * (conv(x) + bias) + (beta - mean*scale)
    scale = bn["gamma"] * jax.lax.rsqrt(bn["var"] + EPS)
    shift = bn["beta"] - bn["mean"] * scale + bias * scale
    w_folded = (w * scale[None, None, None, :]).astype(jnp.bfloat16)  # trace-time fold
    shift2 = shift.reshape(1, -1).astype(jnp.float32)

    # NCHW -> NHWC (channels on the lane dim), bf16 activations for the MXU.
    x = jnp.transpose(x_nchw, (0, 2, 3, 1)).astype(jnp.bfloat16)
    n, h, w_sp, cin = x.shape
    kh, kw, _, cout = w.shape
    ho = h + 2 * padding - kh + 1
    wo = w_sp + 2 * padding - kw + 1
    assert ho > 0 and wo > 0

    xp = jnp.pad(x, ((0, 0), (padding, padding), (padding, padding), (0, 0)))
    hp, wp = xp.shape[1], xp.shape[2]

    # Row tiling: as few grid steps as possible (launch-bound at small shapes);
    # cap the f32 accumulator tile at ~4 MiB so this also scales to real
    # resolutions (well within v7x's 64 MiB VMEM). Batch axis is "parallel"
    # so v7x megacore gets >= 2 grid points even with a single row tile.
    th = ho
    while th * wo * cout * 4 > 4 * 1024 * 1024 and th % 2 == 0:
        th //= 2
    assert ho % th == 0, "row tile must divide output height"

    kernel = functools.partial(
        _conv_bn_relu_kernel, kh=kh, kw=kw, th=th, wo=wo, cin=cin, cout=cout)

    out = pl.pallas_call(
        kernel,
        out_shape=jax.ShapeDtypeStruct((n, ho, wo, cout), jnp.float32),
        grid_spec=pltpu.PrefetchScalarGridSpec(
            num_scalar_prefetch=0,
            grid=(n, ho // th),
            in_specs=[
                # Full padded image per batch element (halo'd VMEM tile).
                pl.BlockSpec((1, hp, wp, cin), lambda b, i: (b, 0, 0, 0)),
                # Full (scale-folded) weight, resident across the grid.
                pl.BlockSpec((kh, kw, cin, cout), lambda b, i: (0, 0, 0, 0)),
                # Per-channel shift only (scale folded into weights).
                pl.BlockSpec((1, cout), lambda b, i: (0, 0)),
            ],
            out_specs=pl.BlockSpec((1, th, wo, cout), lambda b, i: (b, i, 0, 0)),
            scratch_shapes=[pltpu.VMEM((th * wo, cout), jnp.float32)],
        ),
        compiler_params=pltpu.CompilerParams(
            dimension_semantics=("parallel", "parallel")),
    )(xp, w_folded, shift2)

    return jnp.transpose(out, (0, 3, 1, 2))  # back to NCHW


# ---------------------------------------------------------------- reference --
def conv_block_reference(x_nchw, params, *, stride, padding):
    """Pure-JAX reference with the same bf16 input rounding as the kernel."""
    w = params["conv_w"]
    bias = params["conv_b"]
    bn = params["bn"]
    scale = bn["gamma"] / jnp.sqrt(bn["var"] + EPS)
    shift = bn["beta"] - bn["mean"] * scale + bias * scale
    wf = (w * scale[None, None, None, :]).astype(jnp.bfloat16).astype(jnp.float32)
    x = jnp.transpose(x_nchw, (0, 2, 3, 1)).astype(jnp.bfloat16).astype(jnp.float32)
    y = jax.lax.conv_general_dilated(
        x, wf, window_strides=(stride, stride),
        padding=[(padding, padding), (padding, padding)],
        dimension_numbers=("NHWC", "HWIO", "NHWC"),
        preferred_element_type=jnp.float32)
    y = jnp.maximum(y + shift[None, None, None, :], 0.0)
    return jnp.transpose(y, (0, 3, 1, 2))


# ------------------------------------------------------------------- params --
def init_conv_block_params(key, cin, cout, k):
    k1, k2, k3, k4, k5, k6 = jax.random.split(key, 6)
    fan_in = cin * k * k
    w = jax.random.normal(k1, (k, k, cin, cout), jnp.float32) * (2.0 / fan_in) ** 0.5
    b = 0.05 * jax.random.normal(k2, (cout,), jnp.float32)
    bn = dict(
        gamma=1.0 + 0.1 * jax.random.normal(k3, (cout,), jnp.float32),
        beta=0.05 * jax.random.normal(k4, (cout,), jnp.float32),
        mean=0.1 * jax.random.normal(k5, (cout,), jnp.float32),
        var=jax.random.uniform(k6, (cout,), jnp.float32, minval=0.5, maxval=1.5),
    )
    return dict(conv_w=w, conv_b=b, bn=bn)


# --------------------------------------------------------------------- main --
if __name__ == "__main__":
    key = jax.random.PRNGKey(0)
    kp, kx = jax.random.split(key)

    # Small shapes consistent with ConvBlock(in, out, kernel_size=3, stride=1, padding=1).
    n, cin, cout, h, w_sp, ksz, pad = 2, 32, 32, 16, 16, 3, 1

    params = init_conv_block_params(kp, cin, cout, ksz)
    x = jax.random.normal(kx, (n, cin, h, w_sp), jnp.float32)  # NCHW, like PyTorch

    fwd = jax.jit(functools.partial(conv_block_apply, stride=1, padding=pad))
    y = fwd(x, params)
    jax.block_until_ready(y)

    assert y.shape == (n, cout, h, w_sp)
    assert bool(jnp.isfinite(y).all())

    y_ref = conv_block_reference(x, params, stride=1, padding=pad)
    max_err = float(jnp.max(jnp.abs(y - y_ref)))
    assert bool(jnp.allclose(y, y_ref, atol=1e-2, rtol=1e-2)), f"max_err={max_err}"

    print("KERNEL_OK")
</pallas_src>

<mosaic_0001>
module attributes {stable_mosaic.version = 11 : i64} {
  func.func @_conv_bn_relu_kernel(%arg0: i32, %arg1: i32, %arg2: memref<1x18x18x32xbf16, #tpu.memory_space<vmem>>, %arg3: memref<3x3x32x32xbf16, #tpu.memory_space<vmem>>, %arg4: memref<1x32xf32, #tpu.memory_space<vmem>>, %arg5: memref<1x16x16x32xf32, #tpu.memory_space<vmem>>, %arg6: memref<256x32xf32, #tpu.memory_space<vmem>>) attributes {dimension_semantics = [#tpu.dimension_semantics<parallel>, #tpu.dimension_semantics<parallel>], iteration_bounds = array<i64: 2, 1>, scalar_prefetch = 0 : i64, scratch_operands = 1 : i64, tpu.core_type = #tpu.core_type<tc>, window_params = [{transform_indices = @transform_0, window_bounds = array<i64: 1, 18, 18, 32>}, {pipeline_mode = #tpu.pipeline_mode<synchronous>, transform_indices = @transform_1, window_bounds = array<i64: 3, 3, 32, 32>}, {pipeline_mode = #tpu.pipeline_mode<synchronous>, transform_indices = @transform_2, window_bounds = array<i64: 1, 32>}, {transform_indices = @transform_3, window_bounds = array<i64: 1, 16, 16, 32>}]} {
    %c16_i32 = arith.constant 16 : i32
    %0 = arith.muli %arg1, %c16_i32 : i32
    %cst = arith.constant 0.000000e+00 : f32
    %1 = vector.broadcast %cst : f32 to vector<256x32xf32>
    %c0 = arith.constant 0 : index
    %c0_0 = arith.constant 0 : index
    %2 = vector.load %arg6[%c0, %c0_0] : memref<256x32xf32, #tpu.memory_space<vmem>>, vector<256x32xf32>
    tpu.vector_store %arg6[%c0, %c0_0], %1 {strides = array<i32>} : memref<256x32xf32, #tpu.memory_space<vmem>>, vector<256x32xf32>,
    %c0_i32 = arith.constant 0 : i32
    %3 = arith.addi %0, %c0_i32 : i32
    %c0_1 = arith.constant 0 : index
    %4 = arith.index_cast %3 : i32 to index
    %c0_2 = arith.constant 0 : index
    %c0_3 = arith.constant 0 : index
    %5 = vector.load %arg2[%c0_1, %4, %c0_2, %c0_3] : memref<1x18x18x32xbf16, #tpu.memory_space<vmem>>, vector<1x16x16x32xbf16>
    %6 = vector.shape_cast %5 : vector<1x16x16x32xbf16> to vector<16x16x32xbf16>
    %c0_4 = arith.constant 0 : index
    %c0_5 = arith.constant 0 : index
    %7 = vector.load %arg6[%c0_4, %c0_5] : memref<256x32xf32, #tpu.memory_space<vmem>>, vector<256x32xf32>
    %8 = vector.shape_cast %6 : vector<16x16x32xbf16> to vector<256x32xbf16>
    %c0_6 = arith.constant 0 : index
    %c0_7 = arith.constant 0 : index
    %c0_8 = arith.constant 0 : index
    %c0_9 = arith.constant 0 : index
    %9 = vector.load %arg3[%c0_6, %c0_7, %c0_8, %c0_9] : memref<3x3x32x32xbf16, #tpu.memory_space<vmem>>, vector<1x1x32x32xbf16>
    %10 = vector.shape_cast %9 : vector<1x1x32x32xbf16> to vector<32x32xbf16>
    %cst_10 = arith.constant dense<0.000000e+00> : vector<256x32xf32>
    %11 = tpu.matmul %8, %10, %cst_10 {dimension_numbers = #tpu.dot_dimension_numbers<[1], [0], [0], [1], [0, 0, 1, 1], [], []>} : vector<256x32xbf16>, vector<32x32xbf16>, vector<256x32xf32> -> vector<256x32xf32>
    %12 = arith.addf %7, %11 : vector<256x32xf32>
    %c0_11 = arith.constant 0 : index
    %c0_12 = arith.constant 0 : index
    %13 = vector.load %arg6[%c0_11, %c0_12] : memref<256x32xf32, #tpu.memory_space<vmem>>, vector<256x32xf32>
    tpu.vector_store %arg6[%c0_11, %c0_12], %12 {strides = array<i32>} : memref<256x32xf32, #tpu.memory_space<vmem>>, vector<256x32xf32>,
    %c0_i32_13 = arith.constant 0 : i32
    %14 = arith.addi %0, %c0_i32_13 : i32
    %c0_14 = arith.constant 0 : index
    %15 = arith.index_cast %14 : i32 to index
    %c1 = arith.constant 1 : index
    %c0_15 = arith.constant 0 : index
    %16 = vector.load %arg2[%c0_14, %15, %c1, %c0_15] : memref<1x18x18x32xbf16, #tpu.memory_space<vmem>>, vector<1x16x16x32xbf16>
    %17 = vector.shape_cast %16 : vector<1x16x16x32xbf16> to vector<16x16x32xbf16>
    %c0_16 = arith.constant 0 : index
    %c0_17 = arith.constant 0 : index
    %18 = vector.load %arg6[%c0_16, %c0_17] : memref<256x32xf32, #tpu.memory_space<vmem>>, vector<256x32xf32>
    %19 = vector.shape_cast %17 : vector<16x16x32xbf16> to vector<256x32xbf16>
    %c0_18 = arith.constant 0 : index
    %c1_19 = arith.constant 1 : index
    %c0_20 = arith.constant 0 : index
    %c0_21 = arith.constant 0 : index
    %20 = vector.load %arg3[%c0_18, %c1_19, %c0_20, %c0_21] : memref<3x3x32x32xbf16, #tpu.memory_space<vmem>>, vector<1x1x32x32xbf16>
    %21 = vector.shape_cast %20 : vector<1x1x32x32xbf16> to vector<32x32xbf16>
    %cst_22 = arith.constant dense<0.000000e+00> : vector<256x32xf32>
    %22 = tpu.matmul %19, %21, %cst_22 {dimension_numbers = #tpu.dot_dimension_numbers<[1], [0], [0], [1], [0, 0, 1, 1], [], []>} : vector<256x32xbf16>, vector<32x32xbf16>, vector<256x32xf32> -> vector<256x32xf32>
    %23 = arith.addf %18, %22 : vector<256x32xf32>
    %c0_23 = arith.constant 0 : index
    %c0_24 = arith.constant 0 : index
    %24 = vector.load %arg6[%c0_23, %c0_24] : memref<256x32xf32, #tpu.memory_space<vmem>>, vector<256x32xf32>
    tpu.vector_store %arg6[%c0_23, %c0_24], %23 {strides = array<i32>} : memref<256x32xf32, #tpu.memory_space<vmem>>, vector<256x32xf32>,
    %c0_i32_25 = arith.constant 0 : i32
    %25 = arith.addi %0, %c0_i32_25 : i32
    %c0_26 = arith.constant 0 : index
    %26 = arith.index_cast %25 : i32 to index
    %c2 = arith.constant 2 : index
    %c0_27 = arith.constant 0 : index
    %27 = vector.load %arg2[%c0_26, %26, %c2, %c0_27] : memref<1x18x18x32xbf16, #tpu.memory_space<vmem>>, vector<1x16x16x32xbf16>
    %28 = vector.shape_cast %27 : vector<1x16x16x32xbf16> to vector<16x16x32xbf16>
    %c0_28 = arith.constant 0 : index
    %c0_29 = arith.constant 0 : index
    %29 = vector.load %arg6[%c0_28, %c0_29] : memref<256x32xf32, #tpu.memory_space<vmem>>, vector<256x32xf32>
    %30 = vector.shape_cast %28 : vector<16x16x32xbf16> to vector<256x32xbf16>
    %c0_30 = arith.constant 0 : index
    %c2_31 = arith.constant 2 : index
    %c0_32 = arith.constant 0 : index
    %c0_33 = arith.constant 0 : index
    %31 = vector.load %arg3[%c0_30, %c2_31, %c0_32, %c0_33] : memref<3x3x32x32xbf16, #tpu.memory_space<vmem>>, vector<1x1x32x32xbf16>
    %32 = vector.shape_cast %31 : vector<1x1x32x32xbf16> to vector<32x32xbf16>
    %cst_34 = arith.constant dense<0.000000e+00> : vector<256x32xf32>
    %33 = tpu.matmul %30, %32, %cst_34 {dimension_numbers = #tpu.dot_dimension_numbers<[1], [0], [0], [1], [0, 0, 1, 1], [], []>} : vector<256x32xbf16>, vector<32x32xbf16>, vector<256x32xf32> -> vector<256x32xf32>
    %34 = arith.addf %29, %33 : vector<256x32xf32>
    %c0_35 = arith.constant 0 : index
    %c0_36 = arith.constant 0 : index
    %35 = vector.load %arg6[%c0_35, %c0_36] : memref<256x32xf32, #tpu.memory_space<vmem>>, vector<256x32xf32>
    tpu.vector_store %arg6[%c0_35, %c0_36], %34 {strides = array<i32>} : memref<256x32xf32, #tpu.memory_space<vmem>>, vector<256x32xf32>,
    %c1_i32 = arith.constant 1 : i32
    %36 = arith.addi %0, %c1_i32 : i32
    %c0_37 = arith.constant 0 : index
    %37 = arith.index_cast %36 : i32 to index
    %c0_38 = arith.constant 0 : index
    %c0_39 = arith.constant 0 : index
    %38 = vector.load %arg2[%c0_37, %37, %c0_38, %c0_39] : memref<1x18x18x32xbf16, #tpu.memory_space<vmem>>, vector<1x16x16x32xbf16>
    %39 = vector.shape_cast %38 : vector<1x16x16x32xbf16> to vector<16x16x32xbf16>
    %c0_40 = arith.constant 0 : index
    %c0_41 = arith.constant 0 : index
    %40 = vector.load %arg6[%c0_40, %c0_41] : memref<256x32xf32, #tpu.memory_space<vmem>>, vector<256x32xf32>
    %41 = vector.shape_cast %39 : vector<16x16x32xbf16> to vector<256x32xbf16>
    %c1_42 = arith.constant 1 : index
    %c0_43 = arith.constant 0 : index
    %c0_44 = arith.constant 0 : index
    %c0_45 = arith.constant 0 : index
    %42 = vector.load %arg3[%c1_42, %c0_43, %c0_44, %c0_45] : memref<3x3x32x32xbf16, #tpu.memory_space<vmem>>, vector<1x1x32x32xbf16>
    %43 = vector.shape_cast %42 : vector<1x1x32x32xbf16> to vector<32x32xbf16>
    %cst_46 = arith.constant dense<0.000000e+00> : vector<256x32xf32>
    %44 = tpu.matmul %41, %43, %cst_46 {dimension_numbers = #tpu.dot_dimension_numbers<[1], [0], [0], [1], [0, 0, 1, 1], [], []>} : vector<256x32xbf16>, vector<32x32xbf16>, vector<256x32xf32> -> vector<256x32xf32>
    %45 = arith.addf %40, %44 : vector<256x32xf32>
    %c0_47 = arith.constant 0 : index
    %c0_48 = arith.constant 0 : index
    %46 = vector.load %arg6[%c0_47, %c0_48] : memref<256x32xf32, #tpu.memory_space<vmem>>, vector<256x32xf32>
    tpu.vector_store %arg6[%c0_47, %c0_48], %45 {strides = array<i32>} : memref<256x32xf32, #tpu.memory_space<vmem>>, vector<256x32xf32>,
    %c1_i32_49 = arith.constant 1 : i32
    %47 = arith.addi %0, %c1_i32_49 : i32
    %c0_50 = arith.constant 0 : index
    %48 = arith.index_cast %47 : i32 to index
    %c1_51 = arith.constant 1 : index
    %c0_52 = arith.constant 0 : index
    %49 = vector.load %arg2[%c0_50, %48, %c1_51, %c0_52] : memref<1x18x18x32xbf16, #tpu.memory_space<vmem>>, vector<1x16x16x32xbf16>
    %50 = vector.shape_cast %49 : vector<1x16x16x32xbf16> to vector<16x16x32xbf16>
    %c0_53 = arith.constant 0 : index
    %c0_54 = arith.constant 0 : index
    %51 = vector.load %arg6[%c0_53, %c0_54] : memref<256x32xf32, #tpu.memory_space<vmem>>, vector<256x32xf32>
    %52 = vector.shape_cast %50 : vector<16x16x32xbf16> to vector<256x32xbf16>
    %c1_55 = arith.constant 1 : index
    %c1_56 = arith.constant 1 : index
    %c0_57 = arith.constant 0 : index
    %c0_58 = arith.constant 0 : index
    %53 = vector.load %arg3[%c1_55, %c1_56, %c0_57, %c0_58] : memref<3x3x32x32xbf16, #tpu.memory_space<vmem>>, vector<1x1x32x32xbf16>
    %54 = vector.shape_cast %53 : vector<1x1x32x32xbf16> to vector<32x32xbf16>
    %cst_59 = arith.constant dense<0.000000e+00> : vector<256x32xf32>
    %55 = tpu.matmul %52, %54, %cst_59 {dimension_numbers = #tpu.dot_dimension_numbers<[1], [0], [0], [1], [0, 0, 1, 1], [], []>} : vector<256x32xbf16>, vector<32x32xbf16>, vector<256x32xf32> -> vector<256x32xf32>
    %56 = arith.addf %51, %55 : vector<256x32xf32>
    %c0_60 = arith.constant 0 : index
    %c0_61 = arith.constant 0 : index
    %57 = vector.load %arg6[%c0_60, %c0_61] : memref<256x32xf32, #tpu.memory_space<vmem>>, vector<256x32xf32>
    tpu.vector_store %arg6[%c0_60, %c0_61], %56 {strides = array<i32>} : memref<256x32xf32, #tpu.memory_space<vmem>>, vector<256x32xf32>,
    %c1_i32_62 = arith.constant 1 : i32
    %58 = arith.addi %0, %c1_i32_62 : i32
    %c0_63 = arith.constant 0 : index
    %59 = arith.index_cast %58 : i32 to index
    %c2_64 = arith.constant 2 : index
    %c0_65 = arith.constant 0 : index
    %60 = vector.load %arg2[%c0_63, %59, %c2_64, %c0_65] : memref<1x18x18x32xbf16, #tpu.memory_space<vmem>>, vector<1x16x16x32xbf16>
    %61 = vector.shape_cast %60 : vector<1x16x16x32xbf16> to vector<16x16x32xbf16>
    %c0_66 = arith.constant 0 : index
    %c0_67 = arith.constant 0 : index
    %62 = vector.load %arg6[%c0_66, %c0_67] : memref<256x32xf32, #tpu.memory_space<vmem>>, vector<256x32xf32>
    %63 = vector.shape_cast %61 : vector<16x16x32xbf16> to vector<256x32xbf16>
    %c1_68 = arith.constant 1 : index
    %c2_69 = arith.constant 2 : index
    %c0_70 = arith.constant 0 : index
    %c0_71 = arith.constant 0 : index
    %64 = vector.load %arg3[%c1_68, %c2_69, %c0_70, %c0_71] : memref<3x3x32x32xbf16, #tpu.memory_space<vmem>>, vector<1x1x32x32xbf16>
    %65 = vector.shape_cast %64 : vector<1x1x32x32xbf16> to vector<32x32xbf16>
    %cst_72 = arith.constant dense<0.000000e+00> : vector<256x32xf32>
    %66 = tpu.matmul %63, %65, %cst_72 {dimension_numbers = #tpu.dot_dimension_numbers<[1], [0], [0], [1], [0, 0, 1, 1], [], []>} : vector<256x32xbf16>, vector<32x32xbf16>, vector<256x32xf32> -> vector<256x32xf32>
    %67 = arith.addf %62, %66 : vector<256x32xf32>
    %c0_73 = arith.constant 0 : index
    %c0_74 = arith.constant 0 : index
    %68 = vector.load %arg6[%c0_73, %c0_74] : memref<256x32xf32, #tpu.memory_space<vmem>>, vector<256x32xf32>
    tpu.vector_store %arg6[%c0_73, %c0_74], %67 {strides = array<i32>} : memref<256x32xf32, #tpu.memory_space<vmem>>, vector<256x32xf32>,
    %c2_i32 = arith.constant 2 : i32
    %69 = arith.addi %0, %c2_i32 : i32
    %c0_75 = arith.constant 0 : index
    %70 = arith.index_cast %69 : i32 to index
    %c0_76 = arith.constant 0 : index
    %c0_77 = arith.constant 0 : index
    %71 = vector.load %arg2[%c0_75, %70, %c0_76, %c0_77] : memref<1x18x18x32xbf16, #tpu.memory_space<vmem>>, vector<1x16x16x32xbf16>
    %72 = vector.shape_cast %71 : vector<1x16x16x32xbf16> to vector<16x16x32xbf16>
    %c0_78 = arith.constant 0 : index
    %c0_79 = arith.constant 0 : index
    %73 = vector.load %arg6[%c0_78, %c0_79] : memref<256x32xf32, #tpu.memory_space<vmem>>, vector<256x32xf32>
    %74 = vector.shape_cast %72 : vector<16x16x32xbf16> to vector<256x32xbf16>
    %c2_80 = arith.constant 2 : index
    %c0_81 = arith.constant 0 : index
    %c0_82 = arith.constant 0 : index
    %c0_83 = arith.constant 0 : index
    %75 = vector.load %arg3[%c2_80, %c0_81, %c0_82, %c0_83] : memref<3x3x32x32xbf16, #tpu.memory_space<vmem>>, vector<1x1x32x32xbf16>
    %76 = vector.shape_cast %75 : vector<1x1x32x32xbf16> to vector<32x32xbf16>
    %cst_84 = arith.constant dense<0.000000e+00> : vector<256x32xf32>
    %77 = tpu.matmul %74, %76, %cst_84 {dimension_numbers = #tpu.dot_dimension_numbers<[1], [0], [0], [1], [0, 0, 1, 1], [], []>} : vector<256x32xbf16>, vector<32x32xbf16>, vector<256x32xf32> -> vector<256x32xf32>
    %78 = arith.addf %73, %77 : vector<256x32xf32>
    %c0_85 = arith.constant 0 : index
    %c0_86 = arith.constant 0 : index
    %79 = vector.load %arg6[%c0_85, %c0_86] : memref<256x32xf32, #tpu.memory_space<vmem>>, vector<256x32xf32>
    tpu.vector_store %arg6[%c0_85, %c0_86], %78 {strides = array<i32>} : memref<256x32xf32, #tpu.memory_space<vmem>>, vector<256x32xf32>,
    %c2_i32_87 = arith.constant 2 : i32
    %80 = arith.addi %0, %c2_i32_87 : i32
    %c0_88 = arith.constant 0 : index
    %81 = arith.index_cast %80 : i32 to index
    %c1_89 = arith.constant 1 : index
    %c0_90 = arith.constant 0 : index
    %82 = vector.load %arg2[%c0_88, %81, %c1_89, %c0_90] : memref<1x18x18x32xbf16, #tpu.memory_space<vmem>>, vector<1x16x16x32xbf16>
    %83 = vector.shape_cast %82 : vector<1x16x16x32xbf16> to vector<16x16x32xbf16>
    %c0_91 = arith.constant 0 : index
    %c0_92 = arith.constant 0 : index
    %84 = vector.load %arg6[%c0_91, %c0_92] : memref<256x32xf32, #tpu.memory_space<vmem>>, vector<256x32xf32>
    %85 = vector.shape_cast %83 : vector<16x16x32xbf16> to vector<256x32xbf16>
    %c2_93 = arith.constant 2 : index
    %c1_94 = arith.constant 1 : index
    %c0_95 = arith.constant 0 : index
    %c0_96 = arith.constant 0 : index
    %86 = vector.load %arg3[%c2_93, %c1_94, %c0_95, %c0_96] : memref<3x3x32x32xbf16, #tpu.memory_space<vmem>>, vector<1x1x32x32xbf16>
    %87 = vector.shape_cast %86 : vector<1x1x32x32xbf16> to vector<32x32xbf16>
    %cst_97 = arith.constant dense<0.000000e+00> : vector<256x32xf32>
    %88 = tpu.matmul %85, %87, %cst_97 {dimension_numbers = #tpu.dot_dimension_numbers<[1], [0], [0], [1], [0, 0, 1, 1], [], []>} : vector<256x32xbf16>, vector<32x32xbf16>, vector<256x32xf32> -> vector<256x32xf32>
    %89 = arith.addf %84, %88 : vector<256x32xf32>
    %c0_98 = arith.constant 0 : index
    %c0_99 = arith.constant 0 : index
    %90 = vector.load %arg6[%c0_98, %c0_99] : memref<256x32xf32, #tpu.memory_space<vmem>>, vector<256x32xf32>
    tpu.vector_store %arg6[%c0_98, %c0_99], %89 {strides = array<i32>} : memref<256x32xf32, #tpu.memory_space<vmem>>, vector<256x32xf32>,
    %c2_i32_100 = arith.constant 2 : i32
    %91 = arith.addi %0, %c2_i32_100 : i32
    %c0_101 = arith.constant 0 : index
    %92 = arith.index_cast %91 : i32 to index
    %c2_102 = arith.constant 2 : index
    %c0_103 = arith.constant 0 : index
    %93 = vector.load %arg2[%c0_101, %92, %c2_102, %c0_103] : memref<1x18x18x32xbf16, #tpu.memory_space<vmem>>, vector<1x16x16x32xbf16>
    %94 = vector.shape_cast %93 : vector<1x16x16x32xbf16> to vector<16x16x32xbf16>
    %c0_104 = arith.constant 0 : index
    %c0_105 = arith.constant 0 : index
    %95 = vector.load %arg6[%c0_104, %c0_105] : memref<256x32xf32, #tpu.memory_space<vmem>>, vector<256x32xf32>
    %96 = vector.shape_cast %94 : vector<16x16x32xbf16> to vector<256x32xbf16>
    %c2_106 = arith.constant 2 : index
    %c2_107 = arith.constant 2 : index
    %c0_108 = arith.constant 0 : index
    %c0_109 = arith.constant 0 : index
    %97 = vector.load %arg3[%c2_106, %c2_107, %c0_108, %c0_109] : memref<3x3x32x32xbf16, #tpu.memory_space<vmem>>, vector<1x1x32x32xbf16>
    %98 = vector.shape_cast %97 : vector<1x1x32x32xbf16> to vector<32x32xbf16>
    %cst_110 = arith.constant dense<0.000000e+00> : vector<256x32xf32>
    %99 = tpu.matmul %96, %98, %cst_110 {dimension_numbers = #tpu.dot_dimension_numbers<[1], [0], [0], [1], [0, 0, 1, 1], [], []>} : vector<256x32xbf16>, vector<32x32xbf16>, vector<256x32xf32> -> vector<256x32xf32>
    %100 = arith.addf %95, %99 : vector<256x32xf32>
    %c0_111 = arith.constant 0 : index
    %c0_112 = arith.constant 0 : index
    %101 = vector.load %arg6[%c0_111, %c0_112] : memref<256x32xf32, #tpu.memory_space<vmem>>, vector<256x32xf32>
    tpu.vector_store %arg6[%c0_111, %c0_112], %100 {strides = array<i32>} : memref<256x32xf32, #tpu.memory_space<vmem>>, vector<256x32xf32>,
    %c0_113 = arith.constant 0 : index
    %c0_114 = arith.constant 0 : index
    %102 = vector.load %arg6[%c0_113, %c0_114] : memref<256x32xf32, #tpu.memory_space<vmem>>, vector<256x32xf32>
    %c0_115 = arith.constant 0 : index
    %c0_116 = arith.constant 0 : index
    %103 = vector.load %arg4[%c0_115, %c0_116] : memref<1x32xf32, #tpu.memory_space<vmem>>, vector<1x32xf32>
    %104 = vector.broadcast %103 : vector<1x32xf32> to vector<256x32xf32>
    %105 = arith.addf %102, %104 : vector<256x32xf32>
    %cst_117 = arith.constant 0.000000e+00 : f32
    %106 = vector.broadcast %cst_117 : f32 to vector<256x32xf32>
    %107 = arith.maximumf %105, %106 : vector<256x32xf32>
    %108 = vector.shape_cast %107 : vector<256x32xf32> to vector<1x16x16x32xf32>
    %c0_118 = arith.constant 0 : index
    %c0_119 = arith.constant 0 : index
    %c0_120 = arith.constant 0 : index
    %c0_121 = arith.constant 0 : index
    %109 = vector.load %arg5[%c0_118, %c0_119, %c0_120, %c0_121] : memref<1x16x16x32xf32, #tpu.memory_space<vmem>>, vector<1x16x16x32xf32>
    tpu.vector_store %arg5[%c0_118, %c0_119, %c0_120, %c0_121], %108 {strides = array<i32>} : memref<1x16x16x32xf32, #tpu.memory_space<vmem>>, vector<1x16x16x32xf32>,
    return
  }
  func.func @transform_0(%arg0: i32, %arg1: i32) -> (i32, i32, i32, i32) {
    %c0_i32 = arith.constant 0 : i32
    %c0_i32_0 = arith.constant 0 : i32
    %c0_i32_1 = arith.constant 0 : i32
    %c0_i32_2 = arith.constant 0 : i32
    return %arg0, %c0_i32, %c0_i32_0, %c0_i32_1 : i32, i32, i32, i32
  }
  func.func @transform_1(%arg0: i32, %arg1: i32) -> (i32, i32, i32, i32) {
    %c0_i32 = arith.constant 0 : i32
    %c0_i32_0 = arith.constant 0 : i32
    %c0_i32_1 = arith.constant 0 : i32
    %c0_i32_2 = arith.constant 0 : i32
    %c0_i32_3 = arith.constant 0 : i32
    return %c0_i32, %c0_i32_0, %c0_i32_1, %c0_i32_2 : i32, i32, i32, i32
  }
  func.func @transform_2(%arg0: i32, %arg1: i32) -> (i32, i32) {
    %c0_i32 = arith.constant 0 : i32
    %c0_i32_0 = arith.constant 0 : i32
    %c0_i32_1 = arith.constant 0 : i32
    return %c0_i32, %c0_i32_0 : i32, i32
  }
  func.func @transform_3(%arg0: i32, %arg1: i32) -> (i32, i32, i32, i32) {
    %c0_i32 = arith.constant 0 : i32
    %c0_i32_0 = arith.constant 0 : i32
    %c0_i32_1 = arith.constant 0 : i32
    return %arg0, %arg1, %c0_i32, %c0_i32_0 : i32, i32, i32, i32
  }
}

</mosaic_0001>

<llo_original>
// kernel: conv_block_apply.1
$region0: #{conv_block_apply.1}
  #allocation0 [shape = 'u32[]', space=smem, size = 0x4, offset = 0x4, fixed_abs, tag = 'smem constant byte address 0x4 - core index']
  #allocation1 [shape = 'u32[144,128]{1,0:T(1,128)}', space=vmem, size = 0x12000, scoped, tag = 'internal scratch']
  #allocation2 [shape = 'f32[256,32]{1,0:T(8,128)}', space=vmem, size = 0x20000, scoped, tag = 'scratch operand']
  %s0 = inlined_call_operand.vmem [shape: bf16[2,18,18,32], index: 0, kind: input, shape index: {}]
  %s1 = inlined_call_operand.vmem [shape: bf16[3,3,32,32], index: 1, kind: input, shape index: {}]
  %s2 = inlined_call_operand.vmem [shape: f32[1,32], index: 2, kind: input, shape index: {}]
  %s3 = inlined_call_operand.hbm [shape: f32[2,16,16,32], index: 3, kind: output, shape index: {}]
  %s4 = sld [smem:[#allocation0]]
  $region45: #{conv_block_apply.1} parent=0
    _
  %s6 = ssub.s32 1, %s4
  %s7 = scalar_select 0, %s6, %s4
  $region1: #{conv_block_apply.1} parent=0
    #allocation3 [shape = 'u8[262144]{0}', space=vmem, size = 0x40000, scoped, tag = 'output window, operand 0']
    #allocation4 [shape = 's32[2]{0}', space=sflag, size = 0x8, scoped, tag = 'scoped memory for conv_block_apply.1']
    %8 = vsyncpa [#allocation4], 0
    %s9 = scalar_lea.sflag [#allocation4], 1
    %10 = vsyncpa %s9, 0
    loop: start=0, step=1, limit=4
    $region2: #{conv_block_apply.1} parent=1 // loop_pre_header
      _
    $region3: #{conv_block_apply.1} parent=1 // loop_header
      %s12 = sphi 0, %s16
      %p13 = scmp.ge.s32.totalorder %s12, 4
      %s19 = sphi 0, %s31
      %s20 = sphi 0, %s27
      %s21 = sphi 0, %s19
      %s22 = sphi 0, %s20
      %s23 = sphi 0, %s21
      %s24 = sphi 0, %s22
      %s34 = sphi 0, %s36
      %s37 = sphi 0, %s34
      %s38 = sphi 0, %s37
      %s54 = sphi 0, %s38
      %s58 = sphi 0, %s58
      %s60 = sphi 0, %s58
      %s61 = sphi 0, %s60
      %s75 = sphi 0, %s61
      %s79 = sphi 0, %s79
      %s81 = sphi 0, %s79
      %s82 = sphi 0, %s81
      %s96 = sphi 0, %s82
      %s104 = sphi 0, %s106
      %s107 = sphi 0, %s104
      %s108 = sphi 0, %s107
      %s124 = sphi 0, %s108
    $region4: #{conv_block_apply.1} parent=1 // loop_header_branch
      %15 = sbr.rel (%p13) target = $region8
    $region5: #{conv_block_apply.1} parent=1 // loop_body
      %s17 = ssub.s32 %s12, 1
      %s18 = ssub.s32 %s12, 2
      %s25 = sadd.s32 1, %s20
      %p26 = scmp.ge.s32.totalorder %s25, 1
      %s27 = scalar_select %p26, 0, %s25
      %s28 = sadd.s32 1, %s19
      %s29 = scalar_select %p26, %s28, %s19
      %p30 = scmp.ge.s32.totalorder %s29, 2
      %s31 = scalar_select %p30, 0, %s29
      %s32 = ssub.s32 %s19, %s31
      %p33 = scmp.eq.s32.totalorder %s32, 0
      %s35 = sadd.s32 %s34, 1
      %s36 = scalar_select %p33, %s34, %s35
      %p39 = pneg %p33
      %p40 = scmp.eq.s32.totalorder %s12, 1
      %p41 = por %p39, %p40
      %p42 = scmp.ne.s32.totalorder %s34, %s37
      %p43 = scmp.eq.s32.totalorder %s12, 0
      %p44 = por %p42, %p43
      %p45 = scmp.ne.s32.totalorder %s34, %s37
      %p46 = scmp.eq.s32.totalorder %s17, 1
      %p47 = por %p45, %p46
      %p48 = scmp.ne.s32.totalorder %s37, %s38
      %p49 = scmp.eq.s32.totalorder %s17, 0
      %p50 = por %p48, %p49
      %p51 = scmp.ne.s32.totalorder %s37, %s38
      %p52 = scmp.eq.s32.totalorder %s18, 1
      %p53 = por %p51, %p52
      %p55 = scmp.ne.s32.totalorder %s38, %s54
      %p56 = scmp.eq.s32.totalorder %s18, 0
      %p57 = por %p55, %p56
      %s59 = sadd.s32 %s58, 1
      %p62 = scmp.eq.s32.totalorder %s12, 1
      %p63 = scmp.ne.s32.totalorder %s58, %s60
      %p64 = scmp.eq.s32.totalorder %s12, 0
      %p65 = por %p63, %p64
      %p66 = scmp.ne.s32.totalorder %s58, %s60
      %p67 = scmp.eq.s32.totalorder %s17, 1
      %p68 = por %p66, %p67
      %p69 = scmp.ne.s32.totalorder %s60, %s61
      %p70 = scmp.eq.s32.totalorder %s17, 0
      %p71 = por %p69, %p70
      %p72 = scmp.ne.s32.totalorder %s60, %s61
      %p73 = scmp.eq.s32.totalorder %s18, 1
      %p74 = por %p72, %p73
      %p76 = scmp.ne.s32.totalorder %s61, %s75
      %p77 = scmp.eq.s32.totalorder %s18, 0
      %p78 = por %p76, %p77
      %s80 = sadd.s32 %s79, 1
      %p83 = scmp.eq.s32.totalorder %s12, 1
      %p84 = scmp.ne.s32.totalorder %s79, %s81
      %p85 = scmp.eq.s32.totalorder %s12, 0
      %p86 = por %p84, %p85
      %p87 = scmp.ne.s32.totalorder %s79, %s81
      %p88 = scmp.eq.s32.totalorder %s17, 1
      %p89 = por %p87, %p88
      %p90 = scmp.ne.s32.totalorder %s81, %s82
      %p91 = scmp.eq.s32.totalorder %s17, 0
      %p92 = por %p90, %p91
      %p93 = scmp.ne.s32.totalorder %s81, %s82
      %p94 = scmp.eq.s32.totalorder %s18, 1
      %p95 = por %p93, %p94
      %p97 = scmp.ne.s32.totalorder %s82, %s96
      %p98 = scmp.eq.s32.totalorder %s18, 0
      %p99 = por %p97, %p98
      %s100 = ssub.s32 %s19, %s31
      %s101 = ssub.s32 %s20, %s27
      %s102 = sor.u32 %s100, %s101
      %p103 = scmp.eq.s32.totalorder %s102, 0
      %s105 = sadd.s32 %s104, 1
      %s106 = scalar_select %p103, %s104, %s105
      %p109 = pneg %p103
      %p110 = scmp.eq.s32.totalorder %s12, 1
      %p111 = por %p109, %p110
      %p112 = scmp.ne.s32.totalorder %s104, %s107
      %p113 = scmp.eq.s32.totalorder %s12, 0
      %p114 = por %p112, %p113
      %p115 = scmp.ne.s32.totalorder %s104, %s107
      %p116 = scmp.eq.s32.totalorder %s17, 1
      %p117 = por %p115, %p116
      %p118 = scmp.ne.s32.totalorder %s107, %s108
      %p119 = scmp.eq.s32.totalorder %s17, 0
      %p120 = por %p118, %p119
      %p121 = scmp.ne.s32.totalorder %s107, %s108
      %p122 = scmp.eq.s32.totalorder %s18, 1
      %p123 = por %p121, %p122
      %p125 = scmp.ne.s32.totalorder %s108, %s124
      %p126 = scmp.eq.s32.totalorder %s18, 0
      %p127 = por %p125, %p126
      %p128 = scmp.le.s32.totalorder 1, %s12
      %p129 = scmp.lt.s32.totalorder %s12, 3
      %p130 = pnand %p128, %p129
      %p131 = pneg %p130
      // Predicated region
      $region9: #{conv_block_apply.1} parent=5 // pred_check
        _
      $region10: #{conv_block_apply.1} parent=5 // pred_check_branch
        %133 = sbr.rel (%p130) target = $region12
      $region11: #{conv_block_apply.1} parent=5 // pred_region
        %s134 = ssub.s32 %s12, 1
        // Predicated region
        $region13: #{conv_block_apply.1} parent=11 // pred_check
          %p135 = pneg %p71
        $region14: #{conv_block_apply.1} parent=11 // pred_check_branch
          %137 = sbr.rel (%p135) target = $region16
        $region15: #{conv_block_apply.1} parent=11 // pred_region
          _
        $region16: #{conv_block_apply.1} parent=11 // pred_fallthru
          _
        // Predicated region
        $region17: #{conv_block_apply.1} parent=11 // pred_check
          %p138 = pneg %p92
        $region18: #{conv_block_apply.1} parent=11 // pred_check_branch
          %140 = sbr.rel (%p138) target = $region20
        $region19: #{conv_block_apply.1} parent=11 // pred_region
          _
        $region20: #{conv_block_apply.1} parent=11 // pred_fallthru
          _
      $region12: #{conv_block_apply.1} parent=5 // pred_fallthru
        _
      %p141 = scmp.lt.s32.totalorder %s12, 2
      // Predicated region
      $region21: #{conv_block_apply.1} parent=5 // pred_check
        %p142 = pneg %p141
      $region22: #{conv_block_apply.1} parent=5 // pred_check_branch
        %144 = sbr.rel (%p142) target = $region24
      $region23: #{conv_block_apply.1} parent=5 // pred_region
        // Predicated region
        $region25: #{conv_block_apply.1} parent=23 // pred_check
          %p145 = pneg %p44
        $region26: #{conv_block_apply.1} parent=23 // pred_check_branch
          %147 = sbr.rel (%p145) target = $region28
        $region27: #{conv_block_apply.1} parent=23 // pred_region
          %p148 = scmp.lt.s32.totalorder %s19, 1
          %s149 = scalar_select %p148, %s19, 1
          %s150 = smul.addr %s149, 54
          %s151 = smul.addr %s150, 4
          %s152 = scalar_lea.vmem %s0, %s151
        $region28: #{conv_block_apply.1} parent=23 // pred_fallthru
          _
      $region24: #{conv_block_apply.1} parent=5 // pred_fallthru
        _
      %p153 = scmp.le.s32.totalorder 1, %s12
      %p154 = scmp.lt.s32.totalorder %s12, 3
      %p155 = pnand %p153, %p154
      %p156 = pneg %p155
      // Predicated region
      $region29: #{conv_block_apply.1} parent=5 // pred_check
        _
      $region30: #{conv_block_apply.1} parent=5 // pred_check_branch
        %158 = sbr.rel (%p155) target = $region32
      $region31: #{conv_block_apply.1} parent=5 // pred_region
        %s159 = ssub.s32 %s12, 1
        %p160 = scmp.lt.s32.totalorder %s21, 1
        %s161 = scalar_select %p160, %s21, 1
        %s162 = smul.addr %s161, 54
        %s163 = smul.addr %s162, 4
        %s164 = scalar_lea.vmem %s0, %s163
        %p165 = pneg %p50
        %p166 = pneg %p47
        %p167 = pneg %p71
        %p168 = pneg %p68
        %p169 = pneg %p92
        %p170 = pneg %p89
        %p171 = pneg %p120
        %p172 = pneg %p117
        %s173 = sand.u32 %s107, 1
        %s174 = scalar_lea.sflag [#allocation4], %s173
        %s175 = sand.u32 %s107, 1
        %s176 = smul.addr %s175, 256
        %s177 = scalar_lea.vmem [#allocation3], %s176
        %p178 = scmp.lt.s32.totalorder %s21, 1
        %s179 = scalar_select %p178, %s21, 1
        %s180 = smul.addr %s179, 54
        %s181 = smul.addr %s180, 4
        %s182 = scalar_lea.vmem %s0, %s181
        %s183 = smul.u32 16, %s22
        %s185 = smul.u32 %s22, 16
        %vm186 = vcmask 261120
        %187 = vst.msk [vmem:[#allocation2] sm:$0xff] %vm186, 0.0
        %188 = vst.msk [vmem:[#allocation2 + $0x8] sm:$0xff] %vm186, 0.0
        %189 = vst.msk [vmem:[#allocation2 + $0x10] sm:$0xff] %vm186, 0.0
        %190 = vst.msk [vmem:[#allocation2 + $0x18] sm:$0xff] %vm186, 0.0
        %191 = vst.msk [vmem:[#allocation2 + $0x20] sm:$0xff] %vm186, 0.0
        %192 = vst.msk [vmem:[#allocation2 + $0x28] sm:$0xff] %vm186, 0.0
        %193 = vst.msk [vmem:[#allocation2 + $0x30] sm:$0xff] %vm186, 0.0
        %194 = vst.msk [vmem:[#allocation2 + $0x38] sm:$0xff] %vm186, 0.0
        %195 = vst.msk [vmem:[#allocation2 + $0x40] sm:$0xff] %vm186, 0.0
        %196 = vst.msk [vmem:[#allocation2 + $0x48] sm:$0xff] %vm186, 0.0
        %197 = vst.msk [vmem:[#allocation2 + $0x50] sm:$0xff] %vm186, 0.0
        %198 = vst.msk [vmem:[#allocation2 + $0x58] sm:$0xff] %vm186, 0.0
        %199 = vst.msk [vmem:[#allocation2 + $0x60] sm:$0xff] %vm186, 0.0
        %200 = vst.msk [vmem:[#allocation2 + $0x68] sm:$0xff] %vm186, 0.0
        %201 = vst.msk [vmem:[#allocation2 + $0x70] sm:$0xff] %vm186, 0.0
        %202 = vst.msk [vmem:[#allocation2 + $0x78] sm:$0xff] %vm186, 0.0
        %203 = vst.msk [vmem:[#allocation2 + $0x80] sm:$0xff] %vm186, 0.0
        %204 = vst.msk [vmem:[#allocation2 + $0x88] sm:$0xff] %vm186, 0.0
        %205 = vst.msk [vmem:[#allocation2 + $0x90] sm:$0xff] %vm186, 0.0
        %206 = vst.msk [vmem:[#allocation2 + $0x98] sm:$0xff] %vm186, 0.0
        %207 = vst.msk [vmem:[#allocation2 + $0xa0] sm:$0xff] %vm186, 0.0
        %208 = vst.msk [vmem:[#allocation2 + $0xa8] sm:$0xff] %vm186, 0.0
        %209 = vst.msk [vmem:[#allocation2 + $0xb0] sm:$0xff] %vm186, 0.0
        %210 = vst.msk [vmem:[#allocation2 + $0xb8] sm:$0xff] %vm186, 0.0
        %211 = vst.msk [vmem:[#allocation2 + $0xc0] sm:$0xff] %vm186, 0.0
        %212 = vst.msk [vmem:[#allocation2 + $0xc8] sm:$0xff] %vm186, 0.0
        %213 = vst.msk [vmem:[#allocation2 + $0xd0] sm:$0xff] %vm186, 0.0
        %214 = vst.msk [vmem:[#allocation2 + $0xd8] sm:$0xff] %vm186, 0.0
        %215 = vst.msk [vmem:[#allocation2 + $0xe0] sm:$0xff] %vm186, 0.0
        %216 = vst.msk [vmem:[#allocation2 + $0xe8] sm:$0xff] %vm186, 0.0
        %217 = vst.msk [vmem:[#allocation2 + $0xf0] sm:$0xff] %vm186, 0.0
        %218 = vst.msk [vmem:[#allocation2 + $0xf8] sm:$0xff] %vm186, 0.0
        %s219 = smul.u32 %s185, 3
        %s220 = smul.addr %s219, 4
        %s221 = scalar_lea.vmem %s182, %s220
        %v222 = vld [vmem:[%s221] sm:$0xf]
        %v223 = vld [vmem:[%s221 + $0x4] sm:$0xf]
        %v224 = vld [vmem:[%s221 + $0xc] sm:$0xf]
        %v225 = vld [vmem:[%s221 + $0x10] sm:$0xf]
        %v226 = vld [vmem:[%s221 + $0x18] sm:$0xf]
        %v227 = vld [vmem:[%s221 + $0x1c] sm:$0xf]
        %v228 = vld [vmem:[%s221 + $0x24] sm:$0xf]
        %v229 = vld [vmem:[%s221 + $0x28] sm:$0xf]
        %v230 = vld [vmem:[%s221 + $0x30] sm:$0xf]
        %v231 = vld [vmem:[%s221 + $0x34] sm:$0xf]
        %v232 = vld [vmem:[%s221 + $0x3c] sm:$0xf]
        %v233 = vld [vmem:[%s221 + $0x40] sm:$0xf]
        %v234 = vld [vmem:[%s221 + $0x48] sm:$0xf]
        %v235 = vld [vmem:[%s221 + $0x4c] sm:$0xf]
        %v236 = vld [vmem:[%s221 + $0x54] sm:$0xf]
        %v237 = vld [vmem:[%s221 + $0x58] sm:$0xf]
        %v238 = vld [vmem:[%s221 + $0x60] sm:$0xf]
        %v239 = vld [vmem:[%s221 + $0x64] sm:$0xf]
        %v240 = vld [vmem:[%s221 + $0x6c] sm:$0xf]
        %v241 = vld [vmem:[%s221 + $0x70] sm:$0xf]
        %v242 = vld [vmem:[%s221 + $0x78] sm:$0xf]
        %v243 = vld [vmem:[%s221 + $0x7c] sm:$0xf]
        %v244 = vld [vmem:[%s221 + $0x84] sm:$0xf]
        %v245 = vld [vmem:[%s221 + $0x88] sm:$0xf]
        %v246 = vld [vmem:[%s221 + $0x90] sm:$0xf]
        %v247 = vld [vmem:[%s221 + $0x94] sm:$0xf]
        %v248 = vld [vmem:[%s221 + $0x9c] sm:$0xf]
        %v249 = vld [vmem:[%s221 + $0xa0] sm:$0xf]
        %v250 = vld [vmem:[%s221 + $0xa8] sm:$0xf]
        %v251 = vld [vmem:[%s221 + $0xac] sm:$0xf]
        %v252 = vld [vmem:[%s221 + $0xb4] sm:$0xf]
        %v253 = vld [vmem:[%s221 + $0xb8] sm:$0xf]
        %v254 = vld [vmem:[#allocation2] sm:$0xff]
        %v255 = vld [vmem:[#allocation2 + $0x8] sm:$0xff]
        %v256 = vld [vmem:[#allocation2 + $0x10] sm:$0xff]
        %v257 = vld [vmem:[#allocation2 + $0x18] sm:$0xff]
        %v258 = vld [vmem:[#allocation2 + $0x20] sm:$0xff]
        %v259 = vld [vmem:[#allocation2 + $0x28] sm:$0xff]
        %v260 = vld [vmem:[#allocation2 + $0x30] sm:$0xff]
        %v261 = vld [vmem:[#allocation2 + $0x38] sm:$0xff]
        %v262 = vld [vmem:[#allocation2 + $0x40] sm:$0xff]
        %v263 = vld [vmem:[#allocation2 + $0x48] sm:$0xff]
        %v264 = vld [vmem:[#allocation2 + $0x50] sm:$0xff]
        %v265 = vld [vmem:[#allocation2 + $0x58] sm:$0xff]
        %v266 = vld [vmem:[#allocation2 + $0x60] sm:$0xff]
        %v267 = vld [vmem:[#allocation2 + $0x68] sm:$0xff]
        %v268 = vld [vmem:[#allocation2 + $0x70] sm:$0xff]
        %v269 = vld [vmem:[#allocation2 + $0x78] sm:$0xff]
        %v270 = vld [vmem:[#allocation2 + $0x80] sm:$0xff]
        %v271 = vld [vmem:[#allocation2 + $0x88] sm:$0xff]
        %v272 = vld [vmem:[#allocation2 + $0x90] sm:$0xff]
        %v273 = vld [vmem:[#allocation2 + $0x98] sm:$0xff]
        %v274 = vld [vmem:[#allocation2 + $0xa0] sm:$0xff]
        %v275 = vld [vmem:[#allocation2 + $0xa8] sm:$0xff]
        %v276 = vld [vmem:[#allocation2 + $0xb0] sm:$0xff]
        %v277 = vld [vmem:[#allocation2 + $0xb8] sm:$0xff]
        %v278 = vld [vmem:[#allocation2 + $0xc0] sm:$0xff]
        %v279 = vld [vmem:[#allocation2 + $0xc8] sm:$0xff]
        %v280 = vld [vmem:[#allocation2 + $0xd0] sm:$0xff]
        %v281 = vld [vmem:[#allocation2 + $0xd8] sm:$0xff]
        %v282 = vld [vmem:[#allocation2 + $0xe0] sm:$0xff]
        %v283 = vld [vmem:[#allocation2 + $0xe8] sm:$0xff]
        %v284 = vld [vmem:[#allocation2 + $0xf0] sm:$0xff]
        %v285 = vld [vmem:[#allocation2 + $0xf8] sm:$0xff]
        %v286 = vld [vmem:[%s1] sm:$0xf]
        %v287 = vld [vmem:[%s1 + $0x4] sm:$0xf]
        %v288 = vld [vmem:[%s1 + $0x8] sm:$0xf]
        %v289 = vld [vmem:[%s1 + $0xc] sm:$0xf]
        %v322 = vunpack.c.l.b16 %v222
        %v323 = vunpack.c.l.b16 %v223
        %v324 = vunpack.c.l.b16 %v224
        %v325 = vunpack.c.l.b16 %v225
        %v326 = vunpack.c.l.b16 %v226
        %v327 = vunpack.c.l.b16 %v227
        %v328 = vunpack.c.l.b16 %v228
        %v329 = vunpack.c.l.b16 %v229
        %v330 = vunpack.c.l.b16 %v230
        %v331 = vunpack.c.l.b16 %v231
        %v332 = vunpack.c.l.b16 %v232
        %v333 = vunpack.c.l.b16 %v233
        %v334 = vunpack.c.l.b16 %v234
        %v335 = vunpack.c.l.b16 %v235
        %v336 = vunpack.c.l.b16 %v236
        %v337 = vunpack.c.l.b16 %v237
        %v338 = vunpack.c.l.b16 %v238
        %v339 = vunpack.c.l.b16 %v239
        %v340 = vunpack.c.l.b16 %v240
        %v341 = vunpack.c.l.b16 %v241
        %v342 = vunpack.c.l.b16 %v242
        %v343 = vunpack.c.l.b16 %v243
        %v344 = vunpack.c.l.b16 %v244
        %v345 = vunpack.c.l.b16 %v245
        %v346 = vunpack.c.l.b16 %v246
        %v347 = vunpack.c.l.b16 %v247
        %v348 = vunpack.c.l.b16 %v248
        %v349 = vunpack.c.l.b16 %v249
        %v350 = vunpack.c.l.b16 %v250
        %v351 = vunpack.c.l.b16 %v251
        %v352 = vunpack.c.l.b16 %v252
        %v353 = vunpack.c.l.b16 %v253
        %v354 = vpack.c.b16 %v323, %v322
        %v355 = vpack.c.b16 %v325, %v324
        %v356 = vpack.c.b16 %v327, %v326
        %v357 = vpack.c.b16 %v329, %v328
        %v358 = vpack.c.b16 %v331, %v330
        %v359 = vpack.c.b16 %v333, %v332
        %v360 = vpack.c.b16 %v335, %v334
        %v361 = vpack.c.b16 %v337, %v336
        %v362 = vpack.c.b16 %v339, %v338
        %v363 = vpack.c.b16 %v341, %v340
        %v364 = vpack.c.b16 %v343, %v342
        %v365 = vpack.c.b16 %v345, %v344
        %v366 = vpack.c.b16 %v347, %v346
        %v367 = vpack.c.b16 %v349, %v348
        %v368 = vpack.c.b16 %v351, %v350
        %v369 = vpack.c.b16 %v353, %v352
        %v374 = vunpack.c.l.b16 %v286
        %v375 = vunpack.c.l.b16 %v287
        %v376 = vunpack.c.l.b16 %v288
        %v377 = vunpack.c.l.b16 %v289
        %v378 = vpack.c.b16 %v375, %v374
        %v379 = vpack.c.b16 %v377, %v376
        %v383 = vsel %vm186, %v354, 0
        %v386 = vsel %vm186, %v355, 0
        %v389 = vsel %vm186, %v356, 0
        %v392 = vsel %vm186, %v357, 0
        %v395 = vsel %vm186, %v358, 0
        %v398 = vsel %vm186, %v359, 0
        %v401 = vsel %vm186, %v360, 0
        %v404 = vsel %vm186, %v361, 0
        %v407 = vsel %vm186, %v362, 0
        %v410 = vsel %vm186, %v363, 0
        %v413 = vsel %vm186, %v364, 0
        %v416 = vsel %vm186, %v365, 0
        %v419 = vsel %vm186, %v366, 0
        %v422 = vsel %vm186, %v367, 0
        %v425 = vsel %vm186, %v368, 0
        %v428 = vsel %vm186, %v369, 0
        %430 = vmatprep.subr.bf16.mxu0 0
        %431 = vmatpush1.bf16.msra.mxu0 %v378
        %432 = vmatprep.subr.bf16.mxu0 0
        %433 = vmatpush1.bf16.msra.mxu0 %v379
        %434 = vmatprep.subr.bf16.mxu0 0
        %435 = vmatpush1.bf16.msra.mxu0 0
        %436 = vmatprep.subr.bf16.mxu0 0
        %437 = vmatpush1.bf16.msra.mxu0 0
        %438 = vmatprep.subr.bf16.mxu0 0
        %439 = vmatpush1.bf16.msra.mxu0 0
        %440 = vmatprep.subr.bf16.mxu0 0
        %441 = vmatpush1.bf16.msra.mxu0 0
        %442 = vmatprep.subr.bf16.mxu0 0
        %443 = vmatpush1.bf16.msra.mxu0 0
        %444 = vmatprep.subr.bf16.mxu0 0
        %445 = vmatpush1.bf16.msra.mxu0 0
        %446 = vmatprep.subr.bf16.mxu0 0
        %447 = vmatpush1.bf16.msra.mxu0 0
        %448 = vmatprep.subr.bf16.mxu0 0
        %449 = vmatpush1.bf16.msra.mxu0 0
        %450 = vmatprep.subr.bf16.mxu0 0
        %451 = vmatpush1.bf16.msra.mxu0 0
        %452 = vmatprep.subr.bf16.mxu0 0
        %453 = vmatpush1.bf16.msra.mxu0 0
        %454 = vmatprep.subr.bf16.mxu0 0
        %455 = vmatpush1.bf16.msra.mxu0 0
        %456 = vmatprep.subr.bf16.mxu0 0
        %457 = vmatpush1.bf16.msra.mxu0 0
        %458 = vmatprep.subr.bf16.mxu0 0
        %459 = vmatpush1.bf16.msra.mxu0 0
        %460 = vmatprep.subr.bf16.mxu0 0
        %461 = vmatpush1.bf16.msra.mxu0 0
        %462 = vmatprep.mubr.bf16.mxu0 0
        %463 = vmatmul.mubr.bf16.gmra.mrb[0].mxu0 %v383
        %v464 = vpop.f32.mrb[0].mxu0
        %v465 = vadd.f32 0.0, %v464
        %v466 = vpop.f32.mrb[0].mxu0
        %v467 = vpop.f32.mrb[0].mxu0
        %v468 = vadd.f32 0.0, %v467
        %v469 = vpop.f32.mrb[0].mxu0
        %470 = vmatprep.mubr.bf16.mxu0 0
        %471 = vmatmul.mubr.bf16.gmra.mrb[0].mxu0 %v386
        %v472 = vpop.f32.mrb[0].mxu0
        %v473 = vadd.f32 0.0, %v472
        %v474 = vpop.f32.mrb[0].mxu0
        %v475 = vpop.f32.mrb[0].mxu0
        %v476 = vadd.f32 0.0, %v475
        %v477 = vpop.f32.mrb[0].mxu0
        %478 = vmatprep.mubr.bf16.mxu0 0
        %479 = vmatmul.mubr.bf16.gmra.mrb[0].mxu0 %v389
        %v480 = vpop.f32.mrb[0].mxu0
        %v481 = vadd.f32 0.0, %v480
        %v482 = vpop.f32.mrb[0].mxu0
        %v483 = vpop.f32.mrb[0].mxu0
        %v484 = vadd.f32 0.0, %v483
        %v485 = vpop.f32.mrb[0].mxu0
        %486 = vmatprep.mubr.bf16.mxu0 0
        %487 = vmatmul.mubr.bf16.gmra.mrb[0].mxu0 %v392
        %v488 = vpop.f32.mrb[0].mxu0
        %v489 = vadd.f32 0.0, %v488
        %v490 = vpop.f32.mrb[0].mxu0
        %v491 = vpop.f32.mrb[0].mxu0
        %v492 = vadd.f32 0.0, %v491
        %v493 = vpop.f32.mrb[0].mxu0
        %494 = vmatprep.mubr.bf16.mxu0 0
        %495 = vmatmul.mubr.bf16.gmra.mrb[0].mxu0 %v395
        %v496 = vpop.f32.mrb[0].mxu0
        %v497 = vadd.f32 0.0, %v496
        %v498 = vpop.f32.mrb[0].mxu0
        %v499 = vpop.f32.mrb[0].mxu0
        %v500 = vadd.f32 0.0, %v499
        %v501 = vpop.f32.mrb[0].mxu0
        %502 = vmatprep.mubr.bf16.mxu0 0
        %503 = vmatmul.mubr.bf16.gmra.mrb[0].mxu0 %v398
        %v504 = vpop.f32.mrb[0].mxu0
        %v505 = vadd.f32 0.0, %v504
        %v506 = vpop.f32.mrb[0].mxu0
        %v507 = vpop.f32.mrb[0].mxu0
        %v508 = vadd.f32 0.0, %v507
        %v509 = vpop.f32.mrb[0].mxu0
        %510 = vmatprep.mubr.bf16.mxu0 0
        %511 = vmatmul.mubr.bf16.gmra.mrb[0].mxu0 %v401
        %v512 = vpop.f32.mrb[0].mxu0
        %v513 = vadd.f32 0.0, %v512
        %v514 = vpop.f32.mrb[0].mxu0
        %v515 = vpop.f32.mrb[0].mxu0
        %v516 = vadd.f32 0.0, %v515
        %v517 = vpop.f32.mrb[0].mxu0
        %518 = vmatprep.mubr.bf16.mxu0 0
        %519 = vmatmul.mubr.bf16.gmra.mrb[0].mxu0 %v404
        %v520 = vpop.f32.mrb[0].mxu0
        %v521 = vadd.f32 0.0, %v520
        %v522 = vpop.f32.mrb[0].mxu0
        %v523 = vpop.f32.mrb[0].mxu0
        %v524 = vadd.f32 0.0, %v523
        %v525 = vpop.f32.mrb[0].mxu0
        %526 = vmatprep.mubr.bf16.mxu0 0
        %527 = vmatmul.mubr.bf16.gmra.mrb[0].mxu0 %v407
        %v528 = vpop.f32.mrb[0].mxu0
        %v529 = vadd.f32 0.0, %v528
        %v530 = vpop.f32.mrb[0].mxu0
        %v531 = vpop.f32.mrb[0].mxu0
        %v532 = vadd.f32 0.0, %v531
        %v533 = vpop.f32.mrb[0].mxu0
        %534 = vmatprep.mubr.bf16.mxu0 0
        %535 = vmatmul.mubr.bf16.gmra.mrb[0].mxu0 %v410
        %v536 = vpop.f32.mrb[0].mxu0
        %v537 = vadd.f32 0.0, %v536
        %v538 = vpop.f32.mrb[0].mxu0
        %v539 = vpop.f32.mrb[0].mxu0
        %v540 = vadd.f32 0.0, %v539
        %v541 = vpop.f32.mrb[0].mxu0
        %542 = vmatprep.mubr.bf16.mxu0 0
        %543 = vmatmul.mubr.bf16.gmra.mrb[0].mxu0 %v413
        %v544 = vpop.f32.mrb[0].mxu0
        %v545 = vadd.f32 0.0, %v544
        %v546 = vpop.f32.mrb[0].mxu0
        %v547 = vpop.f32.mrb[0].mxu0
        %v548 = vadd.f32 0.0, %v547
        %v549 = vpop.f32.mrb[0].mxu0
        %550 = vmatprep.mubr.bf16.mxu0 0
        %551 = vmatmul.mubr.bf16.gmra.mrb[0].mxu0 %v416
        %v552 = vpop.f32.mrb[0].mxu0
        %v553 = vadd.f32 0.0, %v552
        %v554 = vpop.f32.mrb[0].mxu0
        %v555 = vpop.f32.mrb[0].mxu0
        %v556 = vadd.f32 0.0, %v555
        %v557 = vpop.f32.mrb[0].mxu0
        %558 = vmatprep.mubr.bf16.mxu0 0
        %559 = vmatmul.mubr.bf16.gmra.mrb[0].mxu0 %v419
        %v560 = vpop.f32.mrb[0].mxu0
        %v561 = vadd.f32 0.0, %v560
        %v562 = vpop.f32.mrb[0].mxu0
        %v563 = vpop.f32.mrb[0].mxu0
        %v564 = vadd.f32 0.0, %v563
        %v565 = vpop.f32.mrb[0].mxu0
        %566 = vmatprep.mubr.bf16.mxu0 0
        %567 = vmatmul.mubr.bf16.gmra.mrb[0].mxu0 %v422
        %v568 = vpop.f32.mrb[0].mxu0
        %v569 = vadd.f32 0.0, %v568
        %v570 = vpop.f32.mrb[0].mxu0
        %v571 = vpop.f32.mrb[0].mxu0
        %v572 = vadd.f32 0.0, %v571
        %v573 = vpop.f32.mrb[0].mxu0
        %574 = vmatprep.mubr.bf16.mxu0 0
        %575 = vmatmul.mubr.bf16.gmra.mrb[0].mxu0 %v425
        %v576 = vpop.f32.mrb[0].mxu0
        %v577 = vadd.f32 0.0, %v576
        %v578 = vpop.f32.mrb[0].mxu0
        %v579 = vpop.f32.mrb[0].mxu0
        %v580 = vadd.f32 0.0, %v579
        %v581 = vpop.f32.mrb[0].mxu0
        %582 = vmatprep.mubr.bf16.mxu0 0
        %583 = vmatmul.mubr.bf16.gmra.mrb[0].mxu0 %v428
        %v584 = vpop.f32.mrb[0].mxu0
        %v585 = vadd.f32 0.0, %v584
        %v586 = vpop.f32.mrb[0].mxu0
        %v587 = vpop.f32.mrb[0].mxu0
        %v588 = vadd.f32 0.0, %v587
        %v589 = vpop.f32.mrb[0].mxu0
        %590 = vdwg.mxu0
        %v591 = vadd.f32 %v254, %v465
        %v592 = vadd.f32 %v255, %v468
        %v593 = vadd.f32 %v256, %v473
        %v594 = vadd.f32 %v257, %v476
        %v595 = vadd.f32 %v258, %v481
        %v596 = vadd.f32 %v259, %v484
        %v597 = vadd.f32 %v260, %v489
        %v598 = vadd.f32 %v261, %v492
        %v599 = vadd.f32 %v262, %v497
        %v600 = vadd.f32 %v263, %v500
        %v601 = vadd.f32 %v264, %v505
        %v602 = vadd.f32 %v265, %v508
        %v603 = vadd.f32 %v266, %v513
        %v604 = vadd.f32 %v267, %v516
        %v605 = vadd.f32 %v268, %v521
        %v606 = vadd.f32 %v269, %v524
        %v607 = vadd.f32 %v270, %v529
        %v608 = vadd.f32 %v271, %v532
        %v609 = vadd.f32 %v272, %v537
        %v610 = vadd.f32 %v273, %v540
        %v611 = vadd.f32 %v274, %v545
        %v612 = vadd.f32 %v275, %v548
        %v613 = vadd.f32 %v276, %v553
        %v614 = vadd.f32 %v277, %v556
        %v615 = vadd.f32 %v278, %v561
        %v616 = vadd.f32 %v279, %v564
        %v617 = vadd.f32 %v280, %v569
        %v618 = vadd.f32 %v281, %v572
        %v619 = vadd.f32 %v282, %v577
        %v620 = vadd.f32 %v283, %v580
        %v621 = vadd.f32 %v284, %v585
        %v622 = vadd.f32 %v285, %v588
        %623 = vst.msk [vmem:[#allocation2] sm:$0xff] %vm186, %v591
        %624 = vst.msk [vmem:[#allocation2 + $0x8] sm:$0xff] %vm186, %v592
        %625 = vst.msk [vmem:[#allocation2 + $0x10] sm:$0xff] %vm186, %v593
        %626 = vst.msk [vmem:[#allocation2 + $0x18] sm:$0xff] %vm186, %v594
        %627 = vst.msk [vmem:[#allocation2 + $0x20] sm:$0xff] %vm186, %v595
        %628 = vst.msk [vmem:[#allocation2 + $0x28] sm:$0xff] %vm186, %v596
        %629 = vst.msk [vmem:[#allocation2 + $0x30] sm:$0xff] %vm186, %v597
        %630 = vst.msk [vmem:[#allocation2 + $0x38] sm:$0xff] %vm186, %v598
        %631 = vst.msk [vmem:[#allocation2 + $0x40] sm:$0xff] %vm186, %v599
        %632 = vst.msk [vmem:[#allocation2 + $0x48] sm:$0xff] %vm186, %v600
        %633 = vst.msk [vmem:[#allocation2 + $0x50] sm:$0xff] %vm186, %v601
        %634 = vst.msk [vmem:[#allocation2 + $0x58] sm:$0xff] %vm186, %v602
        %635 = vst.msk [vmem:[#allocation2 + $0x60] sm:$0xff] %vm186, %v603
        %636 = vst.msk [vmem:[#allocation2 + $0x68] sm:$0xff] %vm186, %v604
        %637 = vst.msk [vmem:[#allocation2 + $0x70] sm:$0xff] %vm186, %v605
        %638 = vst.msk [vmem:[#allocation2 + $0x78] sm:$0xff] %vm186, %v606
        %639 = vst.msk [vmem:[#allocation2 + $0x80] sm:$0xff] %vm186, %v607
        %640 = vst.msk [vmem:[#allocation2 + $0x88] sm:$0xff] %vm186, %v608
        %641 = vst.msk [vmem:[#allocation2 + $0x90] sm:$0xff] %vm186, %v609
        %642 = vst.msk [vmem:[#allocation2 + $0x98] sm:$0xff] %vm186, %v610
        %643 = vst.msk [vmem:[#allocation2 + $0xa0] sm:$0xff] %vm186, %v611
        %644 = vst.msk [vmem:[#allocation2 + $0xa8] sm:$0xff] %vm186, %v612
        %645 = vst.msk [vmem:[#allocation2 + $0xb0] sm:$0xff] %vm186, %v613
        %646 = vst.msk [vmem:[#allocation2 + $0xb8] sm:$0xff] %vm186, %v614
        %647 = vst.msk [vmem:[#allocation2 + $0xc0] sm:$0xff] %vm186, %v615
        %648 = vst.msk [vmem:[#allocation2 + $0xc8] sm:$0xff] %vm186, %v616
        %649 = vst.msk [vmem:[#allocation2 + $0xd0] sm:$0xff] %vm186, %v617
        %650 = vst.msk [vmem:[#allocation2 + $0xd8] sm:$0xff] %vm186, %v618
        %651 = vst.msk [vmem:[#allocation2 + $0xe0] sm:$0xff] %vm186, %v619
        %652 = vst.msk [vmem:[#allocation2 + $0xe8] sm:$0xff] %vm186, %v620
        %653 = vst.msk [vmem:[#allocation2 + $0xf0] sm:$0xff] %vm186, %v621
        %654 = vst.msk [vmem:[#allocation2 + $0xf8] sm:$0xff] %vm186, %v622
        %v655 = vld [vmem:[%s221] sm:$0xf]
        %v656 = vld [vmem:[%s221 + $0x4] sm:$0xf]
        %v657 = vld [vmem:[%s221 + $0x8] sm:$0x1]
        %v658 = vld [vmem:[%s221 + $0xc] sm:$0xf]
        %v659 = vld [vmem:[%s221 + $0x10] sm:$0xf]
        %v660 = vld [vmem:[%s221 + $0x14] sm:$0x1]
        %v661 = vld [vmem:[%s221 + $0x18] sm:$0xf]
        %v662 = vld [vmem:[%s221 + $0x1c] sm:$0xf]
        %v663 = vld [vmem:[%s221 + $0x20] sm:$0x1]
        %v664 = vld [vmem:[%s221 + $0x24] sm:$0xf]
        %v665 = vld [vmem:[%s221 + $0x28] sm:$0xf]
        %v666 = vld [vmem:[%s221 + $0x2c] sm:$0x1]
        %v667 = vld [vmem:[%s221 + $0x30] sm:$0xf]
        %v668 = vld [vmem:[%s221 + $0x34] sm:$0xf]
        %v669 = vld [vmem:[%s221 + $0x38] sm:$0x1]
        %v670 = vld [vmem:[%s221 + $0x3c] sm:$0xf]
        %v671 = vld [vmem:[%s221 + $0x40] sm:$0xf]
        %v672 = vld [vmem:[%s221 + $0x44] sm:$0x1]
        %v673 = vld [vmem:[%s221 + $0x48] sm:$0xf]
        %v674 = vld [vmem:[%s221 + $0x4c] sm:$0xf]
        %v675 = vld [vmem:[%s221 + $0x50] sm:$0x1]
        %v676 = vld [vmem:[%s221 + $0x54] sm:$0xf]
        %v677 = vld [vmem:[%s221 + $0x58] sm:$0xf]
        %v678 = vld [vmem:[%s221 + $0x5c] sm:$0x1]
        %v679 = vld [vmem:[%s221 + $0x60] sm:$0xf]
        %v680 = vld [vmem:[%s221 + $0x64] sm:$0xf]
        %v681 = vld [vmem:[%s221 + $0x68] sm:$0x1]
        %v682 = vld [vmem:[%s221 + $0x6c] sm:$0xf]
        %v683 = vld [vmem:[%s221 + $0x70] sm:$0xf]
        %v684 = vld [vmem:[%s221 + $0x74] sm:$0x1]
        %v685 = vld [vmem:[%s221 + $0x78] sm:$0xf]
        %v686 = vld [vmem:[%s221 + $0x7c] sm:$0xf]
        %v687 = vld [vmem:[%s221 + $0x80] sm:$0x1]
        %v688 = vld [vmem:[%s221 + $0x84] sm:$0xf]
        %v689 = vld [vmem:[%s221 + $0x88] sm:$0xf]
        %v690 = vld [vmem:[%s221 + $0x8c] sm:$0x1]
        %v691 = vld [vmem:[%s221 + $0x90] sm:$0xf]
        %v692 = vld [vmem:[%s221 + $0x94] sm:$0xf]
        %v693 = vld [vmem:[%s221 + $0x98] sm:$0x1]
        %v694 = vld [vmem:[%s221 + $0x9c] sm:$0xf]
        %v695 = vld [vmem:[%s221 + $0xa0] sm:$0xf]
        %v696 = vld [vmem:[%s221 + $0xa4] sm:$0x1]
        %v697 = vld [vmem:[%s221 + $0xa8] sm:$0xf]
        %v698 = vld [vmem:[%s221 + $0xac] sm:$0xf]
        %v699 = vld [vmem:[%s221 + $0xb0] sm:$0x1]
        %v700 = vld [vmem:[%s221 + $0xb4] sm:$0xf]
        %v701 = vld [vmem:[%s221 + $0xb8] sm:$0xf]
        %v702 = vld [vmem:[%s221 + $0xbc] sm:$0x1]
        %v703 = vld [vmem:[#allocation2] sm:$0xff]
        %v704 = vld [vmem:[#allocation2 + $0x8] sm:$0xff]
        %v705 = vld [vmem:[#allocation2 + $0x10] sm:$0xff]
        %v706 = vld [vmem:[#allocation2 + $0x18] sm:$0xff]
        %v707 = vld [vmem:[#allocation2 + $0x20] sm:$0xff]
        %v708 = vld [vmem:[#allocation2 + $0x28] sm:$0xff]
        %v709 = vld [vmem:[#allocation2 + $0x30] sm:$0xff]
        %v710 = vld [vmem:[#allocation2 + $0x38] sm:$0xff]
        %v711 = vld [vmem:[#allocation2 + $0x40] sm:$0xff]
        %v712 = vld [vmem:[#allocation2 + $0x48] sm:$0xff]
        %v713 = vld [vmem:[#allocation2 + $0x50] sm:$0xff]
        %v714 = vld [vmem:[#allocation2 + $0x58] sm:$0xff]
        %v715 = vld [vmem:[#allocation2 + $0x60] sm:$0xff]
        %v716 = vld [vmem:[#allocation2 + $0x68] sm:$0xff]
        %v717 = vld [vmem:[#allocation2 + $0x70] sm:$0xff]
        %v718 = vld [vmem:[#allocation2 + $0x78] sm:$0xff]
        %v719 = vld [vmem:[#allocation2 + $0x80] sm:$0xff]
        %v720 = vld [vmem:[#allocation2 + $0x88] sm:$0xff]
        %v721 = vld [vmem:[#allocation2 + $0x90] sm:$0xff]
        %v722 = vld [vmem:[#allocation2 + $0x98] sm:$0xff]
        %v723 = vld [vmem:[#allocation2 + $0xa0] sm:$0xff]
        %v724 = vld [vmem:[#allocation2 + $0xa8] sm:$0xff]
        %v725 = vld [vmem:[#allocation2 + $0xb0] sm:$0xff]
        %v726 = vld [vmem:[#allocation2 + $0xb8] sm:$0xff]
        %v727 = vld [vmem:[#allocation2 + $0xc0] sm:$0xff]
        %v728 = vld [vmem:[#allocation2 + $0xc8] sm:$0xff]
        %v729 = vld [vmem:[#allocation2 + $0xd0] sm:$0xff]
        %v730 = vld [vmem:[#allocation2 + $0xd8] sm:$0xff]
        %v731 = vld [vmem:[#allocation2 + $0xe0] sm:$0xff]
        %v732 = vld [vmem:[#allocation2 + $0xe8] sm:$0xff]
        %v733 = vld [vmem:[#allocation2 + $0xf0] sm:$0xff]
        %v734 = vld [vmem:[#allocation2 + $0xf8] sm:$0xff]
        %vm735 = vsmask.f32 3328
        %vm736 = vsmask.f32 7440
        %vm737 = vmor %vm735, %vm736
        %v739 = vshrl.u32 %v655, 16
        %v741 = vrot.slane %v739, 4
        %v742 = vshll.u32 %v655, 16
        %v744 = vrot.slane %v742, 5
        %v745 = vor.u32 %v741, %v744
        %v746 = vrot.slane %v745, 4
        %v748 = vshll.u32 %v656, 16
        %v750 = vrot.slane %v748, 5
        %v751 = vsel %vm737, %v746, %v750
        %v752 = vshrl.u32 %v656, 16
        %v754 = vrot.slane %v752, 4
        %v755 = vor.u32 %v754, %v750
        %v756 = vrot.slane %v755, 4
        %v758 = vshll.u32 %v657, 16
        %v760 = vrot.slane %v758, 5
        %v761 = vsel %vm737, %v756, %v760
        %v763 = vshrl.u32 %v658, 16
        %v765 = vrot.slane %v763, 4
        %v766 = vshll.u32 %v658, 16
        %v768 = vrot.slane %v766, 5
        %v769 = vor.u32 %v765, %v768
        %v770 = vrot.slane %v769, 4
        %v772 = vshll.u32 %v659, 16
        %v774 = vrot.slane %v772, 5
        %v775 = vsel %vm737, %v770, %v774
        %v776 = vshrl.u32 %v659, 16
        %v778 = vrot.slane %v776, 4
        %v779 = vor.u32 %v778, %v774
        %v780 = vrot.slane %v779, 4
        %v782 = vshll.u32 %v660, 16
        %v784 = vrot.slane %v782, 5
        %v785 = vsel %vm737, %v780, %v784
        %v787 = vshrl.u32 %v661, 16
        %v789 = vrot.slane %v787, 4
        %v790 = vshll.u32 %v661, 16
        %v792 = vrot.slane %v790, 5
        %v793 = vor.u32 %v789, %v792
        %v794 = vrot.slane %v793, 4
        %v796 = vshll.u32 %v662, 16
        %v798 = vrot.slane %v796, 5
        %v799 = vsel %vm737, %v794, %v798
        %v800 = vshrl.u32 %v662, 16
        %v802 = vrot.slane %v800, 4
        %v803 = vor.u32 %v802, %v798
        %v804 = vrot.slane %v803, 4
        %v806 = vshll.u32 %v663, 16
        %v808 = vrot.slane %v806, 5
        %v809 = vsel %vm737, %v804, %v808
        %v811 = vshrl.u32 %v664, 16
        %v813 = vrot.slane %v811, 4
        %v814 = vshll.u32 %v664, 16
        %v816 = vrot.slane %v814, 5
        %v817 = vor.u32 %v813, %v816
        %v818 = vrot.slane %v817, 4
        %v820 = vshll.u32 %v665, 16
        %v822 = vrot.slane %v820, 5
        %v823 = vsel %vm737, %v818, %v822
        %v824 = vshrl.u32 %v665, 16
        %v826 = vrot.slane %v824, 4
        %v827 = vor.u32 %v826, %v822
        %v828 = vrot.slane %v827, 4
        %v830 = vshll.u32 %v666, 16
        %v832 = vrot.slane %v830, 5
        %v833 = vsel %vm737, %v828, %v832
        %v835 = vshrl.u32 %v667, 16
        %v837 = vrot.slane %v835, 4
        %v838 = vshll.u32 %v667, 16
        %v840 = vrot.slane %v838, 5
        %v841 = vor.u32 %v837, %v840
        %v842 = vrot.slane %v841, 4
        %v844 = vshll.u32 %v668, 16
        %v846 = vrot.slane %v844, 5
        %v847 = vsel %vm737, %v842, %v846
        %v848 = vshrl.u32 %v668, 16
        %v850 = vrot.slane %v848, 4
        %v851 = vor.u32 %v850, %v846
        %v852 = vrot.slane %v851, 4
        %v854 = vshll.u32 %v669, 16
        %v856 = vrot.slane %v854, 5
        %v857 = vsel %vm737, %v852, %v856
        %v859 = vshrl.u32 %v670, 16
        %v861 = vrot.slane %v859, 4
        %v862 = vshll.u32 %v670, 16
        %v864 = vrot.slane %v862, 5
        %v865 = vor.u32 %v861, %v864
        %v866 = vrot.slane %v865, 4
        %v868 = vshll.u32 %v671, 16
        %v870 = vrot.slane %v868, 5
        %v871 = vsel %vm737, %v866, %v870
        %v872 = vshrl.u32 %v671, 16
        %v874 = vrot.slane %v872, 4
        %v875 = vor.u32 %v874, %v870
        %v876 = vrot.slane %v875, 4
        %v878 = vshll.u32 %v672, 16
        %v880 = vrot.slane %v878, 5
        %v881 = vsel %vm737, %v876, %v880
        %v883 = vshrl.u32 %v673, 16
        %v885 = vrot.slane %v883, 4
        %v886 = vshll.u32 %v673, 16
        %v888 = vrot.slane %v886, 5
        %v889 = vor.u32 %v885, %v888
        %v890 = vrot.slane %v889, 4
        %v892 = vshll.u32 %v674, 16
        %v894 = vrot.slane %v892, 5
        %v895 = vsel %vm737, %v890, %v894
        %v896 = vshrl.u32 %v674, 16
        %v898 = vrot.slane %v896, 4
        %v899 = vor.u32 %v898, %v894
        %v900 = vrot.slane %v899, 4
        %v902 = vshll.u32 %v675, 16
        %v904 = vrot.slane %v902, 5
        %v905 = vsel %vm737, %v900, %v904
        %v907 = vshrl.u32 %v676, 16
        %v909 = vrot.slane %v907, 4
        %v910 = vshll.u32 %v676, 16
        %v912 = vrot.slane %v910, 5
        %v913 = vor.u32 %v909, %v912
        %v914 = vrot.slane %v913, 4
        %v916 = vshll.u32 %v677, 16
        %v918 = vrot.slane %v916, 5
        %v919 = vsel %vm737, %v914, %v918
        %v920 = vshrl.u32 %v677, 16
        %v922 = vrot.slane %v920, 4
        %v923 = vor.u32 %v922, %v918
        %v924 = vrot.slane %v923, 4
        %v926 = vshll.u32 %v678, 16
        %v928 = vrot.slane %v926, 5
        %v929 = vsel %vm737, %v924, %v928
        %v931 = vshrl.u32 %v679, 16
        %v933 = vrot.slane %v931, 4
        %v934 = vshll.u32 %v679, 16
        %v936 = vrot.slane %v934, 5
        %v937 = vor.u32 %v933, %v936
        %v938 = vrot.slane %v937, 4
        %v940 = vshll.u32 %v680, 16
        %v942 = vrot.slane %v940, 5
        %v943 = vsel %vm737, %v938, %v942
        %v944 = vshrl.u32 %v680, 16
        %v946 = vrot.slane %v944, 4
        %v947 = vor.u32 %v946, %v942
        %v948 = vrot.slane %v947, 4
        %v950 = vshll.u32 %v681, 16
        %v952 = vrot.slane %v950, 5
        %v953 = vsel %vm737, %v948, %v952
        %v955 = vshrl.u32 %v682, 16
        %v957 = vrot.slane %v955, 4
        %v958 = vshll.u32 %v682, 16
        %v960 = vrot.slane %v958, 5
        %v961 = vor.u32 %v957, %v960
        %v962 = vrot.slane %v961, 4
        %v964 = vshll.u32 %v683, 16
        %v966 = vrot.slane %v964, 5
        %v967 = vsel %vm737, %v962, %v966
        %v968 = vshrl.u32 %v683, 16
        %v970 = vrot.slane %v968, 4
        %v971 = vor.u32 %v970, %v966
        %v972 = vrot.slane %v971, 4
        %v974 = vshll.u32 %v684, 16
        %v976 = vrot.slane %v974, 5
        %v977 = vsel %vm737, %v972, %v976
        %v979 = vshrl.u32 %v685, 16
        %v981 = vrot.slane %v979, 4
        %v982 = vshll.u32 %v685, 16
        %v984 = vrot.slane %v982, 5
        %v985 = vor.u32 %v981, %v984
        %v986 = vrot.slane %v985, 4
        %v988 = vshll.u32 %v686, 16
        %v990 = vrot.slane %v988, 5
        %v991 = vsel %vm737, %v986, %v990
        %v992 = vshrl.u32 %v686, 16
        %v994 = vrot.slane %v992, 4
        %v995 = vor.u32 %v994, %v990
        %v996 = vrot.slane %v995, 4
        %v998 = vshll.u32 %v687, 16
        %v1000 = vrot.slane %v998, 5
        %v1001 = vsel %vm737, %v996, %v1000
        %v1003 = vshrl.u32 %v688, 16
        %v1005 = vrot.slane %v1003, 4
        %v1006 = vshll.u32 %v688, 16
        %v1008 = vrot.slane %v1006, 5
        %v1009 = vor.u32 %v1005, %v1008
        %v1010 = vrot.slane %v1009, 4
        %v1012 = vshll.u32 %v689, 16
        %v1014 = vrot.slane %v1012, 5
        %v1015 = vsel %vm737, %v1010, %v1014
        %v1016 = vshrl.u32 %v689, 16
        %v1018 = vrot.slane %v1016, 4
        %v1019 = vor.u32 %v1018, %v1014
        %v1020 = vrot.slane %v1019, 4
        %v1022 = vshll.u32 %v690, 16
        %v1024 = vrot.slane %v1022, 5
        %v1025 = vsel %vm737, %v1020, %v1024
        %v1027 = vshrl.u32 %v691, 16
        %v1029 = vrot.slane %v1027, 4
        %v1030 = vshll.u32 %v691, 16
        %v1032 = vrot.slane %v1030, 5
        %v1033 = vor.u32 %v1029, %v1032
        %v1034 = vrot.slane %v1033, 4
        %v1036 = vshll.u32 %v692, 16
        %v1038 = vrot.slane %v1036, 5
        %v1039 = vsel %vm737, %v1034, %v1038
        %v1040 = vshrl.u32 %v692, 16
        %v1042 = vrot.slane %v1040, 4
        %v1043 = vor.u32 %v1042, %v1038
        %v1044 = vrot.slane %v1043, 4
        %v1046 = vshll.u32 %v693, 16
        %v1048 = vrot.slane %v1046, 5
        %v1049 = vsel %vm737, %v1044, %v1048
        %v1051 = vshrl.u32 %v694, 16
        %v1053 = vrot.slane %v1051, 4
        %v1054 = vshll.u32 %v694, 16
        %v1056 = vrot.slane %v1054, 5
        %v1057 = vor.u32 %v1053, %v1056
        %v1058 = vrot.slane %v1057, 4
        %v1060 = vshll.u32 %v695, 16
        %v1062 = vrot.slane %v1060, 5
        %v1063 = vsel %vm737, %v1058, %v1062
        %v1064 = vshrl.u32 %v695, 16
        %v1066 = vrot.slane %v1064, 4
        %v1067 = vor.u32 %v1066, %v1062
        %v1068 = vrot.slane %v1067, 4
        %v1070 = vshll.u32 %v696, 16
        %v1072 = vrot.slane %v1070, 5
        %v1073 = vsel %vm737, %v1068, %v1072
        %v1075 = vshrl.u32 %v697, 16
        %v1077 = vrot.slane %v1075, 4
        %v1078 = vshll.u32 %v697, 16
        %v1080 = vrot.slane %v1078, 5
        %v1081 = vor.u32 %v1077, %v1080
        %v1082 = vrot.slane %v1081, 4
        %v1084 = vshll.u32 %v698, 16
        %v1086 = vrot.slane %v1084, 5
        %v1087 = vsel %vm737, %v1082, %v1086
        %v1088 = vshrl.u32 %v698, 16
        %v1090 = vrot.slane %v1088, 4
        %v1091 = vor.u32 %v1090, %v1086
        %v1092 = vrot.slane %v1091, 4
        %v1094 = vshll.u32 %v699, 16
        %v1096 = vrot.slane %v1094, 5
        %v1097 = vsel %vm737, %v1092, %v1096
        %v1099 = vshrl.u32 %v700, 16
        %v1101 = vrot.slane %v1099, 4
        %v1102 = vshll.u32 %v700, 16
        %v1104 = vrot.slane %v1102, 5
        %v1105 = vor.u32 %v1101, %v1104
        %v1106 = vrot.slane %v1105, 4
        %v1108 = vshll.u32 %v701, 16
        %v1110 = vrot.slane %v1108, 5
        %v1111 = vsel %vm737, %v1106, %v1110
        %v1112 = vshrl.u32 %v701, 16
        %v1114 = vrot.slane %v1112, 4
        %v1115 = vor.u32 %v1114, %v1110
        %v1116 = vrot.slane %v1115, 4
        %v1118 = vshll.u32 %v702, 16
        %v1120 = vrot.slane %v1118, 5
        %v1121 = vsel %vm737, %v1116, %v1120
        %s1122 = scalar_lea.vmem %s1, 16
        %v1123 = vld [vmem:[%s1122] sm:$0xf]
        %v1124 = vld [vmem:[%s1122 + $0x4] sm:$0xf]
        %v1125 = vld [vmem:[%s1122 + $0x8] sm:$0xf]
        %v1126 = vld [vmem:[%s1122 + $0xc] sm:$0xf]
        %v1127 = vunpack.c.l.b16 %v751
        %v1128 = vunpack.c.l.b16 %v761
        %v1129 = vunpack.c.l.b16 %v775
        %v1130 = vunpack.c.l.b16 %v785
        %v1131 = vunpack.c.l.b16 %v799
        %v1132 = vunpack.c.l.b16 %v809
        %v1133 = vunpack.c.l.b16 %v823
        %v1134 = vunpack.c.l.b16 %v833
        %v1135 = vunpack.c.l.b16 %v847
        %v1136 = vunpack.c.l.b16 %v857
        %v1137 = vunpack.c.l.b16 %v871
        %v1138 = vunpack.c.l.b16 %v881
        %v1139 = vunpack.c.l.b16 %v895
        %v1140 = vunpack.c.l.b16 %v905
        %v1141 = vunpack.c.l.b16 %v919
        %v1142 = vunpack.c.l.b16 %v929
        %v1143 = vunpack.c.l.b16 %v943
        %v1144 = vunpack.c.l.b16 %v953
        %v1145 = vunpack.c.l.b16 %v967
        %v1146 = vunpack.c.l.b16 %v977
        %v1147 = vunpack.c.l.b16 %v991
        %v1148 = vunpack.c.l.b16 %v1001
        %v1149 = vunpack.c.l.b16 %v1015
        %v1150 = vunpack.c.l.b16 %v1025
        %v1151 = vunpack.c.l.b16 %v1039
        %v1152 = vunpack.c.l.b16 %v1049
        %v1153 = vunpack.c.l.b16 %v1063
        %v1154 = vunpack.c.l.b16 %v1073
        %v1155 = vunpack.c.l.b16 %v1087
        %v1156 = vunpack.c.l.b16 %v1097
        %v1157 = vunpack.c.l.b16 %v1111
        %v1158 = vunpack.c.l.b16 %v1121
        %v1159 = vpack.c.b16 %v1128, %v1127
        %v1160 = vpack.c.b16 %v1130, %v1129
        %v1161 = vpack.c.b16 %v1132, %v1131
        %v1162 = vpack.c.b16 %v1134, %v1133
        %v1163 = vpack.c.b16 %v1136, %v1135
        %v1164 = vpack.c.b16 %v1138, %v1137
        %v1165 = vpack.c.b16 %v1140, %v1139
        %v1166 = vpack.c.b16 %v1142, %v1141
        %v1167 = vpack.c.b16 %v1144, %v1143
        %v1168 = vpack.c.b16 %v1146, %v1145
        %v1169 = vpack.c.b16 %v1148, %v1147
        %v1170 = vpack.c.b16 %v1150, %v1149
        %v1171 = vpack.c.b16 %v1152, %v1151
        %v1172 = vpack.c.b16 %v1154, %v1153
        %v1173 = vpack.c.b16 %v1156, %v1155
        %v1174 = vpack.c.b16 %v1158, %v1157
        %v1179 = vunpack.c.l.b16 %v1123
        %v1180 = vunpack.c.l.b16 %v1124
        %v1181 = vunpack.c.l.b16 %v1125
        %v1182 = vunpack.c.l.b16 %v1126
        %v1183 = vpack.c.b16 %v1180, %v1179
        %v1184 = vpack.c.b16 %v1182, %v1181
        %v1188 = vsel %vm186, %v1159, 0
        %v1191 = vsel %vm186, %v1160, 0
        %v1194 = vsel %vm186, %v1161, 0
        %v1197 = vsel %vm186, %v1162, 0
        %v1200 = vsel %vm186, %v1163, 0
        %v1203 = vsel %vm186, %v1164, 0
        %v1206 = vsel %vm186, %v1165, 0
        %v1209 = vsel %vm186, %v1166, 0
        %v1212 = vsel %vm186, %v1167, 0
        %v1215 = vsel %vm186, %v1168, 0
        %v1218 = vsel %vm186, %v1169, 0
        %v1221 = vsel %vm186, %v1170, 0
        %v1224 = vsel %vm186, %v1171, 0
        %v1227 = vsel %vm186, %v1172, 0
        %v1230 = vsel %vm186, %v1173, 0
        %v1233 = vsel %vm186, %v1174, 0
        %1235 = vmatprep.subr.bf16.mxu0 0
        %1236 = vmatpush1.bf16.msra.mxu0 %v1183
        %1237 = vmatprep.subr.bf16.mxu0 0
        %1238 = vmatpush1.bf16.msra.mxu0 %v1184
        %1239 = vmatprep.subr.bf16.mxu0 0
        %1240 = vmatpush1.bf16.msra.mxu0 0
        %1241 = vmatprep.subr.bf16.mxu0 0
        %1242 = vmatpush1.bf16.msra.mxu0 0
        %1243 = vmatprep.subr.bf16.mxu0 0
        %1244 = vmatpush1.bf16.msra.mxu0 0
        %1245 = vmatprep.subr.bf16.mxu0 0
        %1246 = vmatpush1.bf16.msra.mxu0 0
        %1247 = vmatprep.subr.bf16.mxu0 0
        %1248 = vmatpush1.bf16.msra.mxu0 0
        %1249 = vmatprep.subr.bf16.mxu0 0
        %1250 = vmatpush1.bf16.msra.mxu0 0
        %1251 = vmatprep.subr.bf16.mxu0 0
        %1252 = vmatpush1.bf16.msra.mxu0 0
        %1253 = vmatprep.subr.bf16.mxu0 0
        %1254 = vmatpush1.bf16.msra.mxu0 0
        %1255 = vmatprep.subr.bf16.mxu0 0
        %1256 = vmatpush1.bf16.msra.mxu0 0
        %1257 = vmatprep.subr.bf16.mxu0 0
        %1258 = vmatpush1.bf16.msra.mxu0 0
        %1259 = vmatprep.subr.bf16.mxu0 0
        %1260 = vmatpush1.bf16.msra.mxu0 0
        %1261 = vmatprep.subr.bf16.mxu0 0
        %1262 = vmatpush1.bf16.msra.mxu0 0
        %1263 = vmatprep.subr.bf16.mxu0 0
        %1264 = vmatpush1.bf16.msra.mxu0 0
        %1265 = vmatprep.subr.bf16.mxu0 0
        %1266 = vmatpush1.bf16.msra.mxu0 0
        %1267 = vmatprep.mubr.bf16.mxu0 0
        %1268 = vmatmul.mubr.bf16.gmra.mrb[0].mxu0 %v1188
        %v1269 = vpop.f32.mrb[0].mxu0
        %v1270 = vadd.f32 0.0, %v1269
        %v1271 = vpop.f32.mrb[0].mxu0
        %v1272 = vpop.f32.mrb[0].mxu0
        %v1273 = vadd.f32 0.0, %v1272
        %v1274 = vpop.f32.mrb[0].mxu0
        %1275 = vmatprep.mubr.bf16.mxu0 0
        %1276 = vmatmul.mubr.bf16.gmra.mrb[0].mxu0 %v1191
        %v1277 = vpop.f32.mrb[0].mxu0
        %v1278 = vadd.f32 0.0, %v1277
        %v1279 = vpop.f32.mrb[0].mxu0
        %v1280 = vpop.f32.mrb[0].mxu0
        %v1281 = vadd.f32 0.0, %v1280
        %v1282 = vpop.f32.mrb[0].mxu0
        %1283 = vmatprep.mubr.bf16.mxu0 0
        %1284 = vmatmul.mubr.bf16.gmra.mrb[0].mxu0 %v1194
        %v1285 = vpop.f32.mrb[0].mxu0
        %v1286 = vadd.f32 0.0, %v1285
        %v1287 = vpop.f32.mrb[0].mxu0
        %v1288 = vpop.f32.mrb[0].mxu0
        %v1289 = vadd.f32 0.0, %v1288
        %v1290 = vpop.f32.mrb[0].mxu0
        %1291 = vmatprep.mubr.bf16.mxu0 0
        %1292 = vmatmul.mubr.bf16.gmra.mrb[0].mxu0 %v1197
        %v1293 = vpop.f32.mrb[0].mxu0
        %v1294 = vadd.f32 0.0, %v1293
        %v1295 = vpop.f32.mrb[0].mxu0
        %v1296 = vpop.f32.mrb[0].mxu0
        %v1297 = vadd.f32 0.0, %v1296
        %v1298 = vpop.f32.mrb[0].mxu0
        %1299 = vmatprep.mubr.bf16.mxu0 0
        %1300 = vmatmul.mubr.bf16.gmra.mrb[0].mxu0 %v1200
        %v1301 = vpop.f32.mrb[0].mxu0
        %v1302 = vadd.f32 0.0, %v1301
        %v1303 = vpop.f32.mrb[0].mxu0
        %v1304 = vpop.f32.mrb[0].mxu0
        %v1305 = vadd.f32 0.0, %v1304
        %v1306 = vpop.f32.mrb[0].mxu0
        %1307 = vmatprep.mubr.bf16.mxu0 0
        %1308 = vmatmul.mubr.bf16.gmra.mrb[0].mxu0 %v1203
        %v1309 = vpop.f32.mrb[0].mxu0
        %v1310 = vadd.f32 0.0, %v1309
        %v1311 = vpop.f32.mrb[0].mxu0
        %v1312 = vpop.f32.mrb[0].mxu0
        %v1313 = vadd.f32 0.0, %v1312
        %v1314 = vpop.f32.mrb[0].mxu0
        %1315 = vmatprep.mubr.bf16.mxu0 0
        %1316 = vmatmul.mubr.bf16.gmra.mrb[0].mxu0 %v1206
        %v1317 = vpop.f32.mrb[0].mxu0
        %v1318 = vadd.f32 0.0, %v1317
        %v1319 = vpop.f32.mrb[0].mxu0
        %v1320 = vpop.f32.mrb[0].mxu0
        %v1321 = vadd.f32 0.0, %v1320
        %v1322 = vpop.f32.mrb[0].mxu0
        %1323 = vmatprep.mubr.bf16.mxu0 0
        %1324 = vmatmul.mubr.bf16.gmra.mrb[0].mxu0 %v1209
        %v1325 = vpop.f32.mrb[0].mxu0
        %v1326 = vadd.f32 0.0, %v1325
        %v1327 = vpop.f32.mrb[0].mxu0
        %v1328 = vpop.f32.mrb[0].mxu0
        %v1329 = vadd.f32 0.0, %v1328
        %v1330 = vpop.f32.mrb[0].mxu0
        %1331 = vmatprep.mubr.bf16.mxu0 0
        %1332 = vmatmul.mubr.bf16.gmra.mrb[0].mxu0 %v1212
        %v1333 = vpop.f32.mrb[0].mxu0
        %v1334 = vadd.f32 0.0, %v1333
        %v1335 = vpop.f32.mrb[0].mxu0
        %v1336 = vpop.f32.mrb[0].mxu0
        %v1337 = vadd.f32 0.0, %v1336
        %v1338 = vpop.f32.mrb[0].mxu0
        %1339 = vmatprep.mubr.bf16.mxu0 0
        %1340 = vmatmul.mubr.bf16.gmra.mrb[0].mxu0 %v1215
        %v1341 = vpop.f32.mrb[0].mxu0
        %v1342 = vadd.f32 0.0, %v1341
        %v1343 = vpop.f32.mrb[0].mxu0
        %v1344 = vpop.f32.mrb[0].mxu0
        %v1345 = vadd.f32 0.0, %v1344
        %v1346 = vpop.f32.mrb[0].mxu0
        %1347 = vmatprep.mubr.bf16.mxu0 0
        %1348 = vmatmul.mubr.bf16.gmra.mrb[0].mxu0 %v1218
        %v1349 = vpop.f32.mrb[0].mxu0
        %v1350 = vadd.f32 0.0, %v1349
        %v1351 = vpop.f32.mrb[0].mxu0
        %v1352 = vpop.f32.mrb[0].mxu0
        %v1353 = vadd.f32 0.0, %v1352
        %v1354 = vpop.f32.mrb[0].mxu0
        %1355 = vmatprep.mubr.bf16.mxu0 0
        %1356 = vmatmul.mubr.bf16.gmra.mrb[0].mxu0 %v1221
        %v1357 = vpop.f32.mrb[0].mxu0
        %v1358 = vadd.f32 0.0, %v1357
        %v1359 = vpop.f32.mrb[0].mxu0
        %v1360 = vpop.f32.mrb[0].mxu0
        %v1361 = vadd.f32 0.0, %v1360
        %v1362 = vpop.f32.mrb[0].mxu0
        %1363 = vmatprep.mubr.bf16.mxu0 0
        %1364 = vmatmul.mubr.bf16.gmra.mrb[0].mxu0 %v1224
        %v1365 = vpop.f32.mrb[0].mxu0
        %v1366 = vadd.f32 0.0, %v1365
        %v1367 = vpop.f32.mrb[0].mxu0
        %v1368 = vpop.f32.mrb[0].mxu0
        %v1369 = vadd.f32 0.0, %v1368
        %v1370 = vpop.f32.mrb[0].mxu0
        %1371 = vmatprep.mubr.bf16.mxu0 0
        %1372 = vmatmul.mubr.bf16.gmra.mrb[0].mxu0 %v1227
        %v1373 = vpop.f32.mrb[0].mxu0
        %v1374 = vadd.f32 0.0, %v1373
        %v1375 = vpop.f32.mrb[0].mxu0
        %v1376 = vpop.f32.mrb[0].mxu0
        %v1377 = vadd.f32 0.0, %v1376
        %v1378 = vpop.f32.mrb[0].mxu0
        %1379 = vmatprep.mubr.bf16.mxu0 0
        %1380 = vmatmul.mubr.bf16.gmra.mrb[0].mxu0 %v1230
        %v1381 = vpop.f32.mrb[0].mxu0
        %v1382 = vadd.f32 0.0, %v1381
        %v1383 = vpop.f32.mrb[0].mxu0
        %v1384 = vpop.f32.mrb[0].mxu0
        %v1385 = vadd.f32 0.0, %v1384
        %v1386 = vpop.f32.mrb[0].mxu0
        %1387 = vmatprep.mubr.bf16.mxu0 0
        %1388 = vmatmul.mubr.bf16.gmra.mrb[0].mxu0 %v1233
        %v1389 = vpop.f32.mrb[0].mxu0
        %v1390 = vadd.f32 0.0, %v1389
        %v1391 = vpop.f32.mrb[0].mxu0
        %v1392 = vpop.f32.mrb[0].mxu0
        %v1393 = vadd.f32 0.0, %v1392
        %v1394 = vpop.f32.mrb[0].mxu0
        %1395 = vdwg.mxu0
        %v1396 = vadd.f32 %v703, %v1270
        %v1397 = vadd.f32 %v704, %v1273
        %v1398 = vadd.f32 %v705, %v1278
        %v1399 = vadd.f32 %v706, %v1281
        %v1400 = vadd.f32 %v707, %v1286
        %v1401 = vadd.f32 %v708, %v1289
        %v1402 = vadd.f32 %v709, %v1294
        %v1403 = vadd.f32 %v710, %v1297
        %v1404 = vadd.f32 %v711, %v1302
        %v1405 = vadd.f32 %v712, %v1305
        %v1406 = vadd.f32 %v713, %v1310
        %v1407 = vadd.f32 %v714, %v1313
        %v1408 = vadd.f32 %v715, %v1318
        %v1409 = vadd.f32 %v716, %v1321
        %v1410 = vadd.f32 %v717, %v1326
        %v1411 = vadd.f32 %v718, %v1329
        %v1412 = vadd.f32 %v719, %v1334
        %v1413 = vadd.f32 %v720, %v1337
        %v1414 = vadd.f32 %v721, %v1342
        %v1415 = vadd.f32 %v722, %v1345
        %v1416 = vadd.f32 %v723, %v1350
        %v1417 = vadd.f32 %v724, %v1353
        %v1418 = vadd.f32 %v725, %v1358
        %v1419 = vadd.f32 %v726, %v1361
        %v1420 = vadd.f32 %v727, %v1366
        %v1421 = vadd.f32 %v728, %v1369
        %v1422 = vadd.f32 %v729, %v1374
        %v1423 = vadd.f32 %v730, %v1377
        %v1424 = vadd.f32 %v731, %v1382
        %v1425 = vadd.f32 %v732, %v1385
        %v1426 = vadd.f32 %v733, %v1390
        %v1427 = vadd.f32 %v734, %v1393
        %1428 = vst.msk [vmem:[#allocation2] sm:$0xff] %vm186, %v1396
        %1429 = vst.msk [vmem:[#allocation2 + $0x8] sm:$0xff] %vm186, %v1397
        %1430 = vst.msk [vmem:[#allocation2 + $0x10] sm:$0xff] %vm186, %v1398
        %1431 = vst.msk [vmem:[#allocation2 + $0x18] sm:$0xff] %vm186, %v1399
        %1432 = vst.msk [vmem:[#allocation2 + $0x20] sm:$0xff] %vm186, %v1400
        %1433 = vst.msk [vmem:[#allocation2 + $0x28] sm:$0xff] %vm186, %v1401
        %1434 = vst.msk [vmem:[#allocation2 + $0x30] sm:$0xff] %vm186, %v1402
        %1435 = vst.msk [vmem:[#allocation2 + $0x38] sm:$0xff] %vm186, %v1403
        %1436 = vst.msk [vmem:[#allocation2 + $0x40] sm:$0xff] %vm186, %v1404
        %1437 = vst.msk [vmem:[#allocation2 + $0x48] sm:$0xff] %vm186, %v1405
        %1438 = vst.msk [vmem:[#allocation2 + $0x50] sm:$0xff] %vm186, %v1406
        %1439 = vst.msk [vmem:[#allocation2 + $0x58] sm:$0xff] %vm186, %v1407
        %1440 = vst.msk [vmem:[#allocation2 + $0x60] sm:$0xff] %vm186, %v1408
        %1441 = vst.msk [vmem:[#allocation2 + $0x68] sm:$0xff] %vm186, %v1409
        %1442 = vst.msk [vmem:[#allocation2 + $0x70] sm:$0xff] %vm186, %v1410
        %1443 = vst.msk [vmem:[#allocation2 + $0x78] sm:$0xff] %vm186, %v1411
        %1444 = vst.msk [vmem:[#allocation2 + $0x80] sm:$0xff] %vm186, %v1412
        %1445 = vst.msk [vmem:[#allocation2 + $0x88] sm:$0xff] %vm186, %v1413
        %1446 = vst.msk [vmem:[#allocation2 + $0x90] sm:$0xff] %vm186, %v1414
        %1447 = vst.msk [vmem:[#allocation2 + $0x98] sm:$0xff] %vm186, %v1415
        %1448 = vst.msk [vmem:[#allocation2 + $0xa0] sm:$0xff] %vm186, %v1416
        %1449 = vst.msk [vmem:[#allocation2 + $0xa8] sm:$0xff] %vm186, %v1417
        %1450 = vst.msk [vmem:[#allocation2 + $0xb0] sm:$0xff] %vm186, %v1418
        %1451 = vst.msk [vmem:[#allocation2 + $0xb8] sm:$0xff] %vm186, %v1419
        %1452 = vst.msk [vmem:[#allocation2 + $0xc0] sm:$0xff] %vm186, %v1420
        %1453 = vst.msk [vmem:[#allocation2 + $0xc8] sm:$0xff] %vm186, %v1421
        %1454 = vst.msk [vmem:[#allocation2 + $0xd0] sm:$0xff] %vm186, %v1422
        %1455 = vst.msk [vmem:[#allocation2 + $0xd8] sm:$0xff] %vm186, %v1423
        %1456 = vst.msk [vmem:[#allocation2 + $0xe0] sm:$0xff] %vm186, %v1424
        %1457 = vst.msk [vmem:[#allocation2 + $0xe8] sm:$0xff] %vm186, %v1425
        %1458 = vst.msk [vmem:[#allocation2 + $0xf0] sm:$0xff] %vm186, %v1426
        %1459 = vst.msk [vmem:[#allocation2 + $0xf8] sm:$0xff] %vm186, %v1427
        %v1460 = vld [vmem:[%s221] sm:$0xe]
        %v1461 = vld [vmem:[%s221 + $0x4] sm:$0xf]
        %v1462 = vld [vmem:[%s221 + $0x8] sm:$0x1]
        %v1463 = vld [vmem:[%s221 + $0xc] sm:$0xe]
        %v1464 = vld [vmem:[%s221 + $0x10] sm:$0xf]
        %v1465 = vld [vmem:[%s221 + $0x14] sm:$0x1]
        %v1466 = vld [vmem:[%s221 + $0x18] sm:$0xe]
        %v1467 = vld [vmem:[%s221 + $0x1c] sm:$0xf]
        %v1468 = vld [vmem:[%s221 + $0x20] sm:$0x1]
        %v1469 = vld [vmem:[%s221 + $0x24] sm:$0xe]
        %v1470 = vld [vmem:[%s221 + $0x28] sm:$0xf]
        %v1471 = vld [vmem:[%s221 + $0x2c] sm:$0x1]
        %v1472 = vld [vmem:[%s221 + $0x30] sm:$0xe]
        %v1473 = vld [vmem:[%s221 + $0x34] sm:$0xf]
        %v1474 = vld [vmem:[%s221 + $0x38] sm:$0x1]
        %v1475 = vld [vmem:[%s221 + $0x3c] sm:$0xe]
        %v1476 = vld [vmem:[%s221 + $0x40] sm:$0xf]
        %v1477 = vld [vmem:[%s221 + $0x44] sm:$0x1]
        %v1478 = vld [vmem:[%s221 + $0x48] sm:$0xe]
        %v1479 = vld [vmem:[%s221 + $0x4c] sm:$0xf]
        %v1480 = vld [vmem:[%s221 + $0x50] sm:$0x1]
        %v1481 = vld [vmem:[%s221 + $0x54] sm:$0xe]
        %v1482 = vld [vmem:[%s221 + $0x58] sm:$0xf]
        %v1483 = vld [vmem:[%s221 + $0x5c] sm:$0x1]
        %v1484 = vld [vmem:[%s221 + $0x60] sm:$0xe]
        %v1485 = vld [vmem:[%s221 + $0x64] sm:$0xf]
        %v1486 = vld [vmem:[%s221 + $0x68] sm:$0x1]
        %v1487 = vld [vmem:[%s221 + $0x6c] sm:$0xe]
        %v1488 = vld [vmem:[%s221 + $0x70] sm:$0xf]
        %v1489 = vld [vmem:[%s221 + $0x74] sm:$0x1]
        %v1490 = vld [vmem:[%s221 + $0x78] sm:$0xe]
        %v1491 = vld [vmem:[%s221 + $0x7c] sm:$0xf]
        %v1492 = vld [vmem:[%s221 + $0x80] sm:$0x1]
        %v1493 = vld [vmem:[%s221 + $0x84] sm:$0xe]
        %v1494 = vld [vmem:[%s221 + $0x88] sm:$0xf]
        %v1495 = vld [vmem:[%s221 + $0x8c] sm:$0x1]
        %v1496 = vld [vmem:[%s221 + $0x90] sm:$0xe]
        %v1497 = vld [vmem:[%s221 + $0x94] sm:$0xf]
        %v1498 = vld [vmem:[%s221 + $0x98] sm:$0x1]
        %v1499 = vld [vmem:[%s221 + $0x9c] sm:$0xe]
        %v1500 = vld [vmem:[%s221 + $0xa0] sm:$0xf]
        %v1501 = vld [vmem:[%s221 + $0xa4] sm:$0x1]
        %v1502 = vld [vmem:[%s221 + $0xa8] sm:$0xe]
        %v1503 = vld [vmem:[%s221 + $0xac] sm:$0xf]
        %v1504 = vld [vmem:[%s221 + $0xb0] sm:$0x1]
        %v1505 = vld [vmem:[%s221 + $0xb4] sm:$0xe]
        %v1506 = vld [vmem:[%s221 + $0xb8] sm:$0xf]
        %v1507 = vld [vmem:[%s221 + $0xbc] sm:$0x1]
        %v1508 = vld [vmem:[#allocation2] sm:$0xff]
        %v1509 = vld [vmem:[#allocation2 + $0x8] sm:$0xff]
        %v1510 = vld [vmem:[#allocation2 + $0x10] sm:$0xff]
        %v1511 = vld [vmem:[#allocation2 + $0x18] sm:$0xff]
        %v1512 = vld [vmem:[#allocation2 + $0x20] sm:$0xff]
        %v1513 = vld [vmem:[#allocation2 + $0x28] sm:$0xff]
        %v1514 = vld [vmem:[#allocation2 + $0x30] sm:$0xff]
        %v1515 = vld [vmem:[#allocation2 + $0x38] sm:$0xff]
        %v1516 = vld [vmem:[#allocation2 + $0x40] sm:$0xff]
        %v1517 = vld [vmem:[#allocation2 + $0x48] sm:$0xff]
        %v1518 = vld [vmem:[#allocation2 + $0x50] sm:$0xff]
        %v1519 = vld [vmem:[#allocation2 + $0x58] sm:$0xff]
        %v1520 = vld [vmem:[#allocation2 + $0x60] sm:$0xff]
        %v1521 = vld [vmem:[#allocation2 + $0x68] sm:$0xff]
        %v1522 = vld [vmem:[#allocation2 + $0x70] sm:$0xff]
        %v1523 = vld [vmem:[#allocation2 + $0x78] sm:$0xff]
        %v1524 = vld [vmem:[#allocation2 + $0x80] sm:$0xff]
        %v1525 = vld [vmem:[#allocation2 + $0x88] sm:$0xff]
        %v1526 = vld [vmem:[#allocation2 + $0x90] sm:$0xff]
        %v1527 = vld [vmem:[#allocation2 + $0x98] sm:$0xff]
        %v1528 = vld [vmem:[#allocation2 + $0xa0] sm:$0xff]
        %v1529 = vld [vmem:[#allocation2 + $0xa8] sm:$0xff]
        %v1530 = vld [vmem:[#allocation2 + $0xb0] sm:$0xff]
        %v1531 = vld [vmem:[#allocation2 + $0xb8] sm:$0xff]
        %v1532 = vld [vmem:[#allocation2 + $0xc0] sm:$0xff]
        %v1533 = vld [vmem:[#allocation2 + $0xc8] sm:$0xff]
        %v1534 = vld [vmem:[#allocation2 + $0xd0] sm:$0xff]
        %v1535 = vld [vmem:[#allocation2 + $0xd8] sm:$0xff]
        %v1536 = vld [vmem:[#allocation2 + $0xe0] sm:$0xff]
        %v1537 = vld [vmem:[#allocation2 + $0xe8] sm:$0xff]
        %v1538 = vld [vmem:[#allocation2 + $0xf0] sm:$0xff]
        %v1539 = vld [vmem:[#allocation2 + $0xf8] sm:$0xff]
        %vm1588 = vcmask 1042432
        %vm1589 = vcmask 1046532
        %vm1590 = vmor %vm1588, %vm1589
        %v1591 = vrot.slane %v1460, 5
        %v1592 = vrot.slane %v1591, 4
        %v1593 = vrot.slane %v1461, 5
        %v1594 = vsel %vm1590, %v1592, %v1593
        %v1595 = vrot.slane %v1593, 4
        %v1596 = vrot.slane %v1462, 5
        %v1597 = vsel %vm1590, %v1595, %v1596
        %v1598 = vrot.slane %v1463, 5
        %v1599 = vrot.slane %v1598, 4
        %v1600 = vrot.slane %v1464, 5
        %v1601 = vsel %vm1590, %v1599, %v1600
        %v1602 = vrot.slane %v1600, 4
        %v1603 = vrot.slane %v1465, 5
        %v1604 = vsel %vm1590, %v1602, %v1603
        %v1605 = vrot.slane %v1466, 5
        %v1606 = vrot.slane %v1605, 4
        %v1607 = vrot.slane %v1467, 5
        %v1608 = vsel %vm1590, %v1606, %v1607
        %v1609 = vrot.slane %v1607, 4
        %v1610 = vrot.slane %v1468, 5
        %v1611 = vsel %vm1590, %v1609, %v1610
        %v1612 = vrot.slane %v1469, 5
        %v1613 = vrot.slane %v1612, 4
        %v1614 = vrot.slane %v1470, 5
        %v1615 = vsel %vm1590, %v1613, %v1614
        %v1616 = vrot.slane %v1614, 4
        %v1617 = vrot.slane %v1471, 5
        %v1618 = vsel %vm1590, %v1616, %v1617
        %v1619 = vrot.slane %v1472, 5
        %v1620 = vrot.slane %v1619, 4
        %v1621 = vrot.slane %v1473, 5
        %v1622 = vsel %vm1590, %v1620, %v1621
        %v1623 = vrot.slane %v1621, 4
        %v1624 = vrot.slane %v1474, 5
        %v1625 = vsel %vm1590, %v1623, %v1624
        %v1626 = vrot.slane %v1475, 5
        %v1627 = vrot.slane %v1626, 4
        %v1628 = vrot.slane %v1476, 5
        %v1629 = vsel %vm1590, %v1627, %v1628
        %v1630 = vrot.slane %v1628, 4
        %v1631 = vrot.slane %v1477, 5
        %v1632 = vsel %vm1590, %v1630, %v1631
        %v1633 = vrot.slane %v1478, 5
        %v1634 = vrot.slane %v1633, 4
        %v1635 = vrot.slane %v1479, 5
        %v1636 = vsel %vm1590, %v1634, %v1635
        %v1637 = vrot.slane %v1635, 4
        %v1638 = vrot.slane %v1480, 5
        %v1639 = vsel %vm1590, %v1637, %v1638
        %v1640 = vrot.slane %v1481, 5
        %v1641 = vrot.slane %v1640, 4
        %v1642 = vrot.slane %v1482, 5
        %v1643 = vsel %vm1590, %v1641, %v1642
        %v1644 = vrot.slane %v1642, 4
        %v1645 = vrot.slane %v1483, 5
        %v1646 = vsel %vm1590, %v1644, %v1645
        %v1647 = vrot.slane %v1484, 5
        %v1648 = vrot.slane %v1647, 4
        %v1649 = vrot.slane %v1485, 5
        %v1650 = vsel %vm1590, %v1648, %v1649
        %v1651 = vrot.slane %v1649, 4
        %v1652 = vrot.slane %v1486, 5
        %v1653 = vsel %vm1590, %v1651, %v1652
        %v1654 = vrot.slane %v1487, 5
        %v1655 = vrot.slane %v1654, 4
        %v1656 = vrot.slane %v1488, 5
        %v1657 = vsel %vm1590, %v1655, %v1656
        %v1658 = vrot.slane %v1656, 4
        %v1659 = vrot.slane %v1489, 5
        %v1660 = vsel %vm1590, %v1658, %v1659
        %v1661 = vrot.slane %v1490, 5
        %v1662 = vrot.slane %v1661, 4
        %v1663 = vrot.slane %v1491, 5
        %v1664 = vsel %vm1590, %v1662, %v1663
        %v1665 = vrot.slane %v1663, 4
        %v1666 = vrot.slane %v1492, 5
        %v1667 = vsel %vm1590, %v1665, %v1666
        %v1668 = vrot.slane %v1493, 5
        %v1669 = vrot.slane %v1668, 4
        %v1670 = vrot.slane %v1494, 5
        %v1671 = vsel %vm1590, %v1669, %v1670
        %v1672 = vrot.slane %v1670, 4
        %v1673 = vrot.slane %v1495, 5
        %v1674 = vsel %vm1590, %v1672, %v1673
        %v1675 = vrot.slane %v1496, 5
        %v1676 = vrot.slane %v1675, 4
        %v1677 = vrot.slane %v1497, 5
        %v1678 = vsel %vm1590, %v1676, %v1677
        %v1679 = vrot.slane %v1677, 4
        %v1680 = vrot.slane %v1498, 5
        %v1681 = vsel %vm1590, %v1679, %v1680
        %v1682 = vrot.slane %v1499, 5
        %v1683 = vrot.slane %v1682, 4
        %v1684 = vrot.slane %v1500, 5
        %v1685 = vsel %vm1590, %v1683, %v1684
        %v1686 = vrot.slane %v1684, 4
        %v1687 = vrot.slane %v1501, 5
        %v1688 = vsel %vm1590, %v1686, %v1687
        %v1689 = vrot.slane %v1502, 5
        %v1690 = vrot.slane %v1689, 4
        %v1691 = vrot.slane %v1503, 5
        %v1692 = vsel %vm1590, %v1690, %v1691
        %v1693 = vrot.slane %v1691, 4
        %v1694 = vrot.slane %v1504, 5
        %v1695 = vsel %vm1590, %v1693, %v1694
        %v1696 = vrot.slane %v1505, 5
        %v1697 = vrot.slane %v1696, 4
        %v1698 = vrot.slane %v1506, 5
        %v1699 = vsel %vm1590, %v1697, %v1698
        %v1700 = vrot.slane %v1698, 4
        %v1701 = vrot.slane %v1507, 5
        %v1702 = vsel %vm1590, %v1700, %v1701
        %s1703 = scalar_lea.vmem %s1, 32
        %v1704 = vld [vmem:[%s1703] sm:$0xf]
        %v1705 = vld [vmem:[%s1703 + $0x4] sm:$0xf]
        %v1706 = vld [vmem:[%s1703 + $0x8] sm:$0xf]
        %v1707 = vld [vmem:[%s1703 + $0xc] sm:$0xf]
        %v1708 = vunpack.c.l.b16 %v1594
        %v1709 = vunpack.c.l.b16 %v1597
        %v1710 = vunpack.c.l.b16 %v1601
        %v1711 = vunpack.c.l.b16 %v1604
        %v1712 = vunpack.c.l.b16 %v1608
        %v1713 = vunpack.c.l.b16 %v1611
        %v1714 = vunpack.c.l.b16 %v1615
        %v1715 = vunpack.c.l.b16 %v1618
        %v1716 = vunpack.c.l.b16 %v1622
        %v1717 = vunpack.c.l.b16 %v1625
        %v1718 = vunpack.c.l.b16 %v1629
        %v1719 = vunpack.c.l.b16 %v1632
        %v1720 = vunpack.c.l.b16 %v1636
        %v1721 = vunpack.c.l.b16 %v1639
        %v1722 = vunpack.c.l.b16 %v1643
        %v1723 = vunpack.c.l.b16 %v1646
        %v1724 = vunpack.c.l.b16 %v1650
        %v1725 = vunpack.c.l.b16 %v1653
        %v1726 = vunpack.c.l.b16 %v1657
        %v1727 = vunpack.c.l.b16 %v1660
        %v1728 = vunpack.c.l.b16 %v1664
        %v1729 = vunpack.c.l.b16 %v1667
        %v1730 = vunpack.c.l.b16 %v1671
        %v1731 = vunpack.c.l.b16 %v1674
        %v1732 = vunpack.c.l.b16 %v1678
        %v1733 = vunpack.c.l.b16 %v1681
        %v1734 = vunpack.c.l.b16 %v1685
        %v1735 = vunpack.c.l.b16 %v1688
        %v1736 = vunpack.c.l.b16 %v1692
        %v1737 = vunpack.c.l.b16 %v1695
        %v1738 = vunpack.c.l.b16 %v1699
        %v1739 = vunpack.c.l.b16 %v1702
        %v1740 = vpack.c.b16 %v1709, %v1708
        %v1741 = vpack.c.b16 %v1711, %v1710
        %v1742 = vpack.c.b16 %v1713, %v1712
        %v1743 = vpack.c.b16 %v1715, %v1714
        %v1744 = vpack.c.b16 %v1717, %v1716
        %v1745 = vpack.c.b16 %v1719, %v1718
        %v1746 = vpack.c.b16 %v1721, %v1720
        %v1747 = vpack.c.b16 %v1723, %v1722
        %v1748 = vpack.c.b16 %v1725, %v1724
        %v1749 = vpack.c.b16 %v1727, %v1726
        %v1750 = vpack.c.b16 %v1729, %v1728
        %v1751 = vpack.c.b16 %v1731, %v1730
        %v1752 = vpack.c.b16 %v1733, %v1732
        %v1753 = vpack.c.b16 %v1735, %v1734
        %v1754 = vpack.c.b16 %v1737, %v1736
        %v1755 = vpack.c.b16 %v1739, %v1738
        %v1760 = vunpack.c.l.b16 %v1704
        %v1761 = vunpack.c.l.b16 %v1705
        %v1762 = vunpack.c.l.b16 %v1706
        %v1763 = vunpack.c.l.b16 %v1707
        %v1764 = vpack.c.b16 %v1761, %v1760
        %v1765 = vpack.c.b16 %v1763, %v1762
        %v1769 = vsel %vm186, %v1740, 0
        %v1772 = vsel %vm186, %v1741, 0
        %v1775 = vsel %vm186, %v1742, 0
        %v1778 = vsel %vm186, %v1743, 0
        %v1781 = vsel %vm186, %v1744, 0
        %v1784 = vsel %vm186, %v1745, 0
        %v1787 = vsel %vm186, %v1746, 0
        %v1790 = vsel %vm186, %v1747, 0
        %v1793 = vsel %vm186, %v1748, 0
        %v1796 = vsel %vm186, %v1749, 0
        %v1799 = vsel %vm186, %v1750, 0
        %v1802 = vsel %vm186, %v1751, 0
        %v1805 = vsel %vm186, %v1752, 0
        %v1808 = vsel %vm186, %v1753, 0
        %v1811 = vsel %vm186, %v1754, 0
        %v1814 = vsel %vm186, %v1755, 0
        %1816 = vmatprep.subr.bf16.mxu0 0
        %1817 = vmatpush1.bf16.msra.mxu0 %v1764
        %1818 = vmatprep.subr.bf16.mxu0 0
        %1819 = vmatpush1.bf16.msra.mxu0 %v1765
        %1820 = vmatprep.subr.bf16.mxu0 0
        %1821 = vmatpush1.bf16.msra.mxu0 0
        %1822 = vmatprep.subr.bf16.mxu0 0
        %1823 = vmatpush1.bf16.msra.mxu0 0
        %1824 = vmatprep.subr.bf16.mxu0 0
        %1825 = vmatpush1.bf16.msra.mxu0 0
        %1826 = vmatprep.subr.bf16.mxu0 0
        %1827 = vmatpush1.bf16.msra.mxu0 0
        %1828 = vmatprep.subr.bf16.mxu0 0
        %1829 = vmatpush1.bf16.msra.mxu0 0
        %1830 = vmatprep.subr.bf16.mxu0 0
        %1831 = vmatpush1.bf16.msra.mxu0 0
        %1832 = vmatprep.subr.bf16.mxu0 0
        %1833 = vmatpush1.bf16.msra.mxu0 0
        %1834 = vmatprep.subr.bf16.mxu0 0
        %1835 = vmatpush1.bf16.msra.mxu0 0
        %1836 = vmatprep.subr.bf16.mxu0 0
        %1837 = vmatpush1.bf16.msra.mxu0 0
        %1838 = vmatprep.subr.bf16.mxu0 0
        %1839 = vmatpush1.bf16.msra.mxu0 0
        %1840 = vmatprep.subr.bf16.mxu0 0
        %1841 = vmatpush1.bf16.msra.mxu0 0
        %1842 = vmatprep.subr.bf16.mxu0 0
        %1843 = vmatpush1.bf16.msra.mxu0 0
        %1844 = vmatprep.subr.bf16.mxu0 0
        %1845 = vmatpush1.bf16.msra.mxu0 0
        %1846 = vmatprep.subr.bf16.mxu0 0
        %1847 = vmatpush1.bf16.msra.mxu0 0
        %1848 = vmatprep.mubr.bf16.mxu0 0
        %1849 = vmatmul.mubr.bf16.gmra.mrb[0].mxu0 %v1769
        %v1850 = vpop.f32.mrb[0].mxu0
        %v1851 = vadd.f32 0.0, %v1850
        %v1852 = vpop.f32.mrb[0].mxu0
        %v1853 = vpop.f32.mrb[0].mxu0
        %v1854 = vadd.f32 0.0, %v1853
        %v1855 = vpop.f32.mrb[0].mxu0
        %1856 = vmatprep.mubr.bf16.mxu0 0
        %1857 = vmatmul.mubr.bf16.gmra.mrb[0].mxu0 %v1772
        %v1858 = vpop.f32.mrb[0].mxu0
        %v1859 = vadd.f32 0.0, %v1858
        %v1860 = vpop.f32.mrb[0].mxu0
        %v1861 = vpop.f32.mrb[0].mxu0
        %v1862 = vadd.f32 0.0, %v1861
        %v1863 = vpop.f32.mrb[0].mxu0
        %1864 = vmatprep.mubr.bf16.mxu0 0
        %1865 = vmatmul.mubr.bf16.gmra.mrb[0].mxu0 %v1775
        %v1866 = vpop.f32.mrb[0].mxu0
        %v1867 = vadd.f32 0.0, %v1866
        %v1868 = vpop.f32.mrb[0].mxu0
        %v1869 = vpop.f32.mrb[0].mxu0
        %v1870 = vadd.f32 0.0, %v1869
        %v1871 = vpop.f32.mrb[0].mxu0
        %1872 = vmatprep.mubr.bf16.mxu0 0
        %1873 = vmatmul.mubr.bf16.gmra.mrb[0].mxu0 %v1778
        %v1874 = vpop.f32.mrb[0].mxu0
        %v1875 = vadd.f32 0.0, %v1874
        %v1876 = vpop.f32.mrb[0].mxu0
        %v1877 = vpop.f32.mrb[0].mxu0
        %v1878 = vadd.f32 0.0, %v1877
        %v1879 = vpop.f32.mrb[0].mxu0
        %1880 = vmatprep.mubr.bf16.mxu0 0
        %1881 = vmatmul.mubr.bf16.gmra.mrb[0].mxu0 %v1781
        %v1882 = vpop.f32.mrb[0].mxu0
        %v1883 = vadd.f32 0.0, %v1882
        %v1884 = vpop.f32.mrb[0].mxu0
        %v1885 = vpop.f32.mrb[0].mxu0
        %v1886 = vadd.f32 0.0, %v1885
        %v1887 = vpop.f32.mrb[0].mxu0
        %1888 = vmatprep.mubr.bf16.mxu0 0
        %1889 = vmatmul.mubr.bf16.gmra.mrb[0].mxu0 %v1784
        %v1890 = vpop.f32.mrb[0].mxu0
        %v1891 = vadd.f32 0.0, %v1890
        %v1892 = vpop.f32.mrb[0].mxu0
        %v1893 = vpop.f32.mrb[0].mxu0
        %v1894 = vadd.f32 0.0, %v1893
        %v1895 = vpop.f32.mrb[0].mxu0
        %1896 = vmatprep.mubr.bf16.mxu0 0
        %1897 = vmatmul.mubr.bf16.gmra.mrb[0].mxu0 %v1787
        %v1898 = vpop.f32.mrb[0].mxu0
        %v1899 = vadd.f32 0.0, %v1898
        %v1900 = vpop.f32.mrb[0].mxu0
        %v1901 = vpop.f32.mrb[0].mxu0
        %v1902 = vadd.f32 0.0, %v1901
        %v1903 = vpop.f32.mrb[0].mxu0
        %1904 = vmatprep.mubr.bf16.mxu0 0
        %1905 = vmatmul.mubr.bf16.gmra.mrb[0].mxu0 %v1790
        %v1906 = vpop.f32.mrb[0].mxu0
        %v1907 = vadd.f32 0.0, %v1906
        %v1908 = vpop.f32.mrb[0].mxu0
        %v1909 = vpop.f32.mrb[0].mxu0
        %v1910 = vadd.f32 0.0, %v1909
        %v1911 = vpop.f32.mrb[0].mxu0
        %1912 = vmatprep.mubr.bf16.mxu0 0
        %1913 = vmatmul.mubr.bf16.gmra.mrb[0].mxu0 %v1793
        %v1914 = vpop.f32.mrb[0].mxu0
        %v1915 = vadd.f32 0.0, %v1914
        %v1916 = vpop.f32.mrb[0].mxu0
        %v1917 = vpop.f32.mrb[0].mxu0
        %v1918 = vadd.f32 0.0, %v1917
        %v1919 = vpop.f32.mrb[0].mxu0
        %1920 = vmatprep.mubr.bf16.mxu0 0
        %1921 = vmatmul.mubr.bf16.gmra.mrb[0].mxu0 %v1796
        %v1922 = vpop.f32.mrb[0].mxu0
        %v1923 = vadd.f32 0.0, %v1922
        %v1924 = vpop.f32.mrb[0].mxu0
        %v1925 = vpop.f32.mrb[0].mxu0
        %v1926 = vadd.f32 0.0, %v1925
        %v1927 = vpop.f32.mrb[0].mxu0
        %1928 = vmatprep.mubr.bf16.mxu0 0
        %1929 = vmatmul.mubr.bf16.gmra.mrb[0].mxu0 %v1799
        %v1930 = vpop.f32.mrb[0].mxu0
        %v1931 = vadd.f32 0.0, %v1930
        %v1932 = vpop.f32.mrb[0].mxu0
        %v1933 = vpop.f32.mrb[0].mxu0
        %v1934 = vadd.f32 0.0, %v1933
        %v1935 = vpop.f32.mrb[0].mxu0
        %1936 = vmatprep.mubr.bf16.mxu0 0
        %1937 = vmatmul.mubr.bf16.gmra.mrb[0].mxu0 %v1802
        %v1938 = vpop.f32.mrb[0].mxu0
        %v1939 = vadd.f32 0.0, %v1938
        %v1940 = vpop.f32.mrb[0].mxu0
        %v1941 = vpop.f32.mrb[0].mxu0
        %v1942 = vadd.f32 0.0, %v1941
        %v1943 = vpop.f32.mrb[0].mxu0
        %1944 = vmatprep.mubr.bf16.mxu0 0
        %1945 = vmatmul.mubr.bf16.gmra.mrb[0].mxu0 %v1805
        %v1946 = vpop.f32.mrb[0].mxu0
        %v1947 = vadd.f32 0.0, %v1946
        %v1948 = vpop.f32.mrb[0].mxu0
        %v1949 = vpop.f32.mrb[0].mxu0
        %v1950 = vadd.f32 0.0, %v1949
        %v1951 = vpop.f32.mrb[0].mxu0
        %1952 = vmatprep.mubr.bf16.mxu0 0
        %1953 = vmatmul.mubr.bf16.gmra.mrb[0].mxu0 %v1808
        %v1954 = vpop.f32.mrb[0].mxu0
        %v1955 = vadd.f32 0.0, %v1954
        %v1956 = vpop.f32.mrb[0].mxu0
        %v1957 = vpop.f32.mrb[0].mxu0
        %v1958 = vadd.f32 0.0, %v1957
        %v1959 = vpop.f32.mrb[0].mxu0
        %1960 = vmatprep.mubr.bf16.mxu0 0
        %1961 = vmatmul.mubr.bf16.gmra.mrb[0].mxu0 %v1811
        %v1962 = vpop.f32.mrb[0].mxu0
        %v1963 = vadd.f32 0.0, %v1962
        %v1964 = vpop.f32.mrb[0].mxu0
        %v1965 = vpop.f32.mrb[0].mxu0
        %v1966 = vadd.f32 0.0, %v1965
        %v1967 = vpop.f32.mrb[0].mxu0
        %1968 = vmatprep.mubr.bf16.mxu0 0
        %1969 = vmatmul.mubr.bf16.gmra.mrb[0].mxu0 %v1814
        %v1970 = vpop.f32.mrb[0].mxu0
        %v1971 = vadd.f32 0.0, %v1970
        %v1972 = vpop.f32.mrb[0].mxu0
        %v1973 = vpop.f32.mrb[0].mxu0
        %v1974 = vadd.f32 0.0, %v1973
        %v1975 = vpop.f32.mrb[0].mxu0
        %1976 = vdwg.mxu0
        %v1977 = vadd.f32 %v1508, %v1851
        %v1978 = vadd.f32 %v1509, %v1854
        %v1979 = vadd.f32 %v1510, %v1859
        %v1980 = vadd.f32 %v1511, %v1862
        %v1981 = vadd.f32 %v1512, %v1867
        %v1982 = vadd.f32 %v1513, %v1870
        %v1983 = vadd.f32 %v1514, %v1875
        %v1984 = vadd.f32 %v1515, %v1878
        %v1985 = vadd.f32 %v1516, %v1883
        %v1986 = vadd.f32 %v1517, %v1886
        %v1987 = vadd.f32 %v1518, %v1891
        %v1988 = vadd.f32 %v1519, %v1894
        %v1989 = vadd.f32 %v1520, %v1899
        %v1990 = vadd.f32 %v1521, %v1902
        %v1991 = vadd.f32 %v1522, %v1907
        %v1992 = vadd.f32 %v1523, %v1910
        %v1993 = vadd.f32 %v1524, %v1915
        %v1994 = vadd.f32 %v1525, %v1918
        %v1995 = vadd.f32 %v1526, %v1923
        %v1996 = vadd.f32 %v1527, %v1926
        %v1997 = vadd.f32 %v1528, %v1931
        %v1998 = vadd.f32 %v1529, %v1934
        %v1999 = vadd.f32 %v1530, %v1939
        %v2000 = vadd.f32 %v1531, %v1942
        %v2001 = vadd.f32 %v1532, %v1947
        %v2002 = vadd.f32 %v1533, %v1950
        %v2003 = vadd.f32 %v1534, %v1955
        %v2004 = vadd.f32 %v1535, %v1958
        %v2005 = vadd.f32 %v1536, %v1963
        %v2006 = vadd.f32 %v1537, %v1966
        %v2007 = vadd.f32 %v1538, %v1971
        %v2008 = vadd.f32 %v1539, %v1974
        %2009 = vst.msk [vmem:[#allocation2] sm:$0xff] %vm186, %v1977
        %2010 = vst.msk [vmem:[#allocation2 + $0x8] sm:$0xff] %vm186, %v1978
        %2011 = vst.msk [vmem:[#allocation2 + $0x10] sm:$0xff] %vm186, %v1979
        %2012 = vst.msk [vmem:[#allocation2 + $0x18] sm:$0xff] %vm186, %v1980
        %2013 = vst.msk [vmem:[#allocation2 + $0x20] sm:$0xff] %vm186, %v1981
        %2014 = vst.msk [vmem:[#allocation2 + $0x28] sm:$0xff] %vm186, %v1982
        %2015 = vst.msk [vmem:[#allocation2 + $0x30] sm:$0xff] %vm186, %v1983
        %2016 = vst.msk [vmem:[#allocation2 + $0x38] sm:$0xff] %vm186, %v1984
        %2017 = vst.msk [vmem:[#allocation2 + $0x40] sm:$0xff] %vm186, %v1985
        %2018 = vst.msk [vmem:[#allocation2 + $0x48] sm:$0xff] %vm186, %v1986
        %2019 = vst.msk [vmem:[#allocation2 + $0x50] sm:$0xff] %vm186, %v1987
        %2020 = vst.msk [vmem:[#allocation2 + $0x58] sm:$0xff] %vm186, %v1988
        %2021 = vst.msk [vmem:[#allocation2 + $0x60] sm:$0xff] %vm186, %v1989
        %2022 = vst.msk [vmem:[#allocation2 + $0x68] sm:$0xff] %vm186, %v1990
        %2023 = vst.msk [vmem:[#allocation2 + $0x70] sm:$0xff] %vm186, %v1991
        %2024 = vst.msk [vmem:[#allocation2 + $0x78] sm:$0xff] %vm186, %v1992
        %2025 = vst.msk [vmem:[#allocation2 + $0x80] sm:$0xff] %vm186, %v1993
        %2026 = vst.msk [vmem:[#allocation2 + $0x88] sm:$0xff] %vm186, %v1994
        %2027 = vst.msk [vmem:[#allocation2 + $0x90] sm:$0xff] %vm186, %v1995
        %2028 = vst.msk [vmem:[#allocation2 + $0x98] sm:$0xff] %vm186, %v1996
        %2029 = vst.msk [vmem:[#allocation2 + $0xa0] sm:$0xff] %vm186, %v1997
        %2030 = vst.msk [vmem:[#allocation2 + $0xa8] sm:$0xff] %vm186, %v1998
        %2031 = vst.msk [vmem:[#allocation2 + $0xb0] sm:$0xff] %vm186, %v1999
        %2032 = vst.msk [vmem:[#allocation2 + $0xb8] sm:$0xff] %vm186, %v2000
        %2033 = vst.msk [vmem:[#allocation2 + $0xc0] sm:$0xff] %vm186, %v2001
        %2034 = vst.msk [vmem:[#allocation2 + $0xc8] sm:$0xff] %vm186, %v2002
        %2035 = vst.msk [vmem:[#allocation2 + $0xd0] sm:$0xff] %vm186, %v2003
        %2036 = vst.msk [vmem:[#allocation2 + $0xd8] sm:$0xff] %vm186, %v2004
        %2037 = vst.msk [vmem:[#allocation2 + $0xe0] sm:$0xff] %vm186, %v2005
        %2038 = vst.msk [vmem:[#allocation2 + $0xe8] sm:$0xff] %vm186, %v2006
        %2039 = vst.msk [vmem:[#allocation2 + $0xf0] sm:$0xff] %vm186, %v2007
        %2040 = vst.msk [vmem:[#allocation2 + $0xf8] sm:$0xff] %vm186, %v2008
        %s2041 = sadd.s32 %s185, 1
        %s2042 = smul.u32 %s2041, 3
        %s2043 = smul.addr %s2042, 4
        %s2044 = scalar_lea.vmem %s182, %s2043
        %v2045 = vld [vmem:[%s2044] sm:$0xf]
        %v2046 = vld [vmem:[%s2044 + $0x4] sm:$0xf]
        %v2047 = vld [vmem:[%s2044 + $0xc] sm:$0xf]
        %v2048 = vld [vmem:[%s2044 + $0x10] sm:$0xf]
        %v2049 = vld [vmem:[%s2044 + $0x18] sm:$0xf]
        %v2050 = vld [vmem:[%s2044 + $0x1c] sm:$0xf]
        %v2051 = vld [vmem:[%s2044 + $0x24] sm:$0xf]
        %v2052 = vld [vmem:[%s2044 + $0x28] sm:$0xf]
        %v2053 = vld [vmem:[%s2044 + $0x30] sm:$0xf]
        %v2054 = vld [vmem:[%s2044 + $0x34] sm:$0xf]
        %v2055 = vld [vmem:[%s2044 + $0x3c] sm:$0xf]
        %v2056 = vld [vmem:[%s2044 + $0x40] sm:$0xf]
        %v2057 = vld [vmem:[%s2044 + $0x48] sm:$0xf]
        %v2058 = vld [vmem:[%s2044 + $0x4c] sm:$0xf]
        %v2059 = vld [vmem:[%s2044 + $0x54] sm:$0xf]
        %v2060 = vld [vmem:[%s2044 + $0x58] sm:$0xf]
        %v2061 = vld [vmem:[%s2044 + $0x60] sm:$0xf]
        %v2062 = vld [vmem:[%s2044 + $0x64] sm:$0xf]
        %v2063 = vld [vmem:[%s2044 + $0x6c] sm:$0xf]
        %v2064 = vld [vmem:[%s2044 + $0x70] sm:$0xf]
        %v2065 = vld [vmem:[%s2044 + $0x78] sm:$0xf]
        %v2066 = vld [vmem:[%s2044 + $0x7c] sm:$0xf]
        %v2067 = vld [vmem:[%s2044 + $0x84] sm:$0xf]
        %v2068 = vld [vmem:[%s2044 + $0x88] sm:$0xf]
        %v2069 = vld [vmem:[%s2044 + $0x90] sm:$0xf]
        %v2070 = vld [vmem:[%s2044 + $0x94] sm:$0xf]
        %v2071 = vld [vmem:[%s2044 + $0x9c] sm:$0xf]
        %v2072 = vld [vmem:[%s2044 + $0xa0] sm:$0xf]
        %v2073 = vld [vmem:[%s2044 + $0xa8] sm:$0xf]
        %v2074 = vld [vmem:[%s2044 + $0xac] sm:$0xf]
        %v2075 = vld [vmem:[%s2044 + $0xb4] sm:$0xf]
        %v2076 = vld [vmem:[%s2044 + $0xb8] sm:$0xf]
        %v2077 = vld [vmem:[#allocation2] sm:$0xff]
        %v2078 = vld [vmem:[#allocation2 + $0x8] sm:$0xff]
        %v2079 = vld [vmem:[#allocation2 + $0x10] sm:$0xff]
        %v2080 = vld [vmem:[#allocation2 + $0x18] sm:$0xff]
        %v2081 = vld [vmem:[#allocation2 + $0x20] sm:$0xff]
        %v2082 = vld [vmem:[#allocation2 + $0x28] sm:$0xff]
        %v2083 = vld [vmem:[#allocation2 + $0x30] sm:$0xff]
        %v2084 = vld [vmem:[#allocation2 + $0x38] sm:$0xff]
        %v2085 = vld [vmem:[#allocation2 + $0x40] sm:$0xff]
        %v2086 = vld [vmem:[#allocation2 + $0x48] sm:$0xff]
        %v2087 = vld [vmem:[#allocation2 + $0x50] sm:$0xff]
        %v2088 = vld [vmem:[#allocation2 + $0x58] sm:$0xff]
        %v2089 = vld [vmem:[#allocation2 + $0x60] sm:$0xff]
        %v2090 = vld [vmem:[#allocation2 + $0x68] sm:$0xff]
        %v2091 = vld [vmem:[#allocation2 + $0x70] sm:$0xff]
        %v2092 = vld [vmem:[#allocation2 + $0x78] sm:$0xff]
        %v2093 = vld [vmem:[#allocation2 + $0x80] sm:$0xff]
        %v2094 = vld [vmem:[#allocation2 + $0x88] sm:$0xff]
        %v2095 = vld [vmem:[#allocation2 + $0x90] sm:$0xff]
        %v2096 = vld [vmem:[#allocation2 + $0x98] sm:$0xff]
        %v2097 = vld [vmem:[#allocation2 + $0xa0] sm:$0xff]
        %v2098 = vld [vmem:[#allocation2 + $0xa8] sm:$0xff]
        %v2099 = vld [vmem:[#allocation2 + $0xb0] sm:$0xff]
        %v2100 = vld [vmem:[#allocation2 + $0xb8] sm:$0xff]
        %v2101 = vld [vmem:[#allocation2 + $0xc0] sm:$0xff]
        %v2102 = vld [vmem:[#allocation2 + $0xc8] sm:$0xff]
        %v2103 = vld [vmem:[#allocation2 + $0xd0] sm:$0xff]
        %v2104 = vld [vmem:[#allocation2 + $0xd8] sm:$0xff]
        %v2105 = vld [vmem:[#allocation2 + $0xe0] sm:$0xff]
        %v2106 = vld [vmem:[#allocation2 + $0xe8] sm:$0xff]
        %v2107 = vld [vmem:[#allocation2 + $0xf0] sm:$0xff]
        %v2108 = vld [vmem:[#allocation2 + $0xf8] sm:$0xff]
        %s2109 = scalar_lea.vmem %s1, 48
        %v2110 = vld [vmem:[%s2109] sm:$0xf]
        %v2111 = vld [vmem:[%s2109 + $0x4] sm:$0xf]
        %v2112 = vld [vmem:[%s2109 + $0x8] sm:$0xf]
        %v2113 = vld [vmem:[%s2109 + $0xc] sm:$0xf]
        %v2146 = vunpack.c.l.b16 %v2045
        %v2147 = vunpack.c.l.b16 %v2046
        %v2148 = vunpack.c.l.b16 %v2047
        %v2149 = vunpack.c.l.b16 %v2048
        %v2150 = vunpack.c.l.b16 %v2049
        %v2151 = vunpack.c.l.b16 %v2050
        %v2152 = vunpack.c.l.b16 %v2051
        %v2153 = vunpack.c.l.b16 %v2052
        %v2154 = vunpack.c.l.b16 %v2053
        %v2155 = vunpack.c.l.b16 %v2054
        %v2156 = vunpack.c.l.b16 %v2055
        %v2157 = vunpack.c.l.b16 %v2056
        %v2158 = vunpack.c.l.b16 %v2057
        %v2159 = vunpack.c.l.b16 %v2058
        %v2160 = vunpack.c.l.b16 %v2059
        %v2161 = vunpack.c.l.b16 %v2060
        %v2162 = vunpack.c.l.b16 %v2061
        %v2163 = vunpack.c.l.b16 %v2062
        %v2164 = vunpack.c.l.b16 %v2063
        %v2165 = vunpack.c.l.b16 %v2064
        %v2166 = vunpack.c.l.b16 %v2065
        %v2167 = vunpack.c.l.b16 %v2066
        %v2168 = vunpack.c.l.b16 %v2067
        %v2169 = vunpack.c.l.b16 %v2068
        %v2170 = vunpack.c.l.b16 %v2069
        %v2171 = vunpack.c.l.b16 %v2070
        %v2172 = vunpack.c.l.b16 %v2071
        %v2173 = vunpack.c.l.b16 %v2072
        %v2174 = vunpack.c.l.b16 %v2073
        %v2175 = vunpack.c.l.b16 %v2074
        %v2176 = vunpack.c.l.b16 %v2075
        %v2177 = vunpack.c.l.b16 %v2076
        %v2178 = vpack.c.b16 %v2147, %v2146
        %v2179 = vpack.c.b16 %v2149, %v2148
        %v2180 = vpack.c.b16 %v2151, %v2150
        %v2181 = vpack.c.b16 %v2153, %v2152
        %v2182 = vpack.c.b16 %v2155, %v2154
        %v2183 = vpack.c.b16 %v2157, %v2156
        %v2184 = vpack.c.b16 %v2159, %v2158
        %v2185 = vpack.c.b16 %v2161, %v2160
        %v2186 = vpack.c.b16 %v2163, %v2162
        %v2187 = vpack.c.b16 %v2165, %v2164
        %v2188 = vpack.c.b16 %v2167, %v2166
        %v2189 = vpack.c.b16 %v2169, %v2168
        %v2190 = vpack.c.b16 %v2171, %v2170
        %v2191 = vpack.c.b16 %v2173, %v2172
        %v2192 = vpack.c.b16 %v2175, %v2174
        %v2193 = vpack.c.b16 %v2177, %v2176
        %v2198 = vunpack.c.l.b16 %v2110
        %v2199 = vunpack.c.l.b16 %v2111
        %v2200 = vunpack.c.l.b16 %v2112
        %v2201 = vunpack.c.l.b16 %v2113
        %v2202 = vpack.c.b16 %v2199, %v2198
        %v2203 = vpack.c.b16 %v2201, %v2200
        %v2207 = vsel %vm186, %v2178, 0
        %v2210 = vsel %vm186, %v2179, 0
        %v2213 = vsel %vm186, %v2180, 0
        %v2216 = vsel %vm186, %v2181, 0
        %v2219 = vsel %vm186, %v2182, 0
        %v2222 = vsel %vm186, %v2183, 0
        %v2225 = vsel %vm186, %v2184, 0
        %v2228 = vsel %vm186, %v2185, 0
        %v2231 = vsel %vm186, %v2186, 0
        %v2234 = vsel %vm186, %v2187, 0
        %v2237 = vsel %vm186, %v2188, 0
        %v2240 = vsel %vm186, %v2189, 0
        %v2243 = vsel %vm186, %v2190, 0
        %v2246 = vsel %vm186, %v2191, 0
        %v2249 = vsel %vm186, %v2192, 0
        %v2252 = vsel %vm186, %v2193, 0
        %2254 = vmatprep.subr.bf16.mxu0 0
        %2255 = vmatpush1.bf16.msra.mxu0 %v2202
        %2256 = vmatprep.subr.bf16.mxu0 0
        %2257 = vmatpush1.bf16.msra.mxu0 %v2203
        %2258 = vmatprep.subr.bf16.mxu0 0
        %2259 = vmatpush1.bf16.msra.mxu0 0
        %2260 = vmatprep.subr.bf16.mxu0 0
        %2261 = vmatpush1.bf16.msra.mxu0 0
        %2262 = vmatprep.subr.bf16.mxu0 0
        %2263 = vmatpush1.bf16.msra.mxu0 0
        %2264 = vmatprep.subr.bf16.mxu0 0
        %2265 = vmatpush1.bf16.msra.mxu0 0
        %2266 = vmatprep.subr.bf16.mxu0 0
        %2267 = vmatpush1.bf16.msra.mxu0 0
        %2268 = vmatprep.subr.bf16.mxu0 0
        %2269 = vmatpush1.bf16.msra.mxu0 0
        %2270 = vmatprep.subr.bf16.mxu0 0
        %2271 = vmatpush1.bf16.msra.mxu0 0
        %2272 = vmatprep.subr.bf16.mxu0 0
        %2273 = vmatpush1.bf16.msra.mxu0 0
        %2274 = vmatprep.subr.bf16.mxu0 0
        %2275 = vmatpush1.bf16.msra.mxu0 0
        %2276 = vmatprep.subr.bf16.mxu0 0
        %2277 = vmatpush1.bf16.msra.mxu0 0
        %2278 = vmatprep.subr.bf16.mxu0 0
        %2279 = vmatpush1.bf16.msra.mxu0 0
        %2280 = vmatprep.subr.bf16.mxu0 0
        %2281 = vmatpush1.bf16.msra.mxu0 0
        %2282 = vmatprep.subr.bf16.mxu0 0
        %2283 = vmatpush1.bf16.msra.mxu0 0
        %2284 = vmatprep.subr.bf16.mxu0 0
        %2285 = vmatpush1.bf16.msra.mxu0 0
        %2286 = vmatprep.mubr.bf16.mxu0 0
        %2287 = vmatmul.mubr.bf16.gmra.mrb[0].mxu0 %v2207
        %v2288 = vpop.f32.mrb[0].mxu0
        %v2289 = vadd.f32 0.0, %v2288
        %v2290 = vpop.f32.mrb[0].mxu0
        %v2291 = vpop.f32.mrb[0].mxu0
        %v2292 = vadd.f32 0.0, %v2291
        %v2293 = vpop.f32.mrb[0].mxu0
        %2294 = vmatprep.mubr.bf16.mxu0 0
        %2295 = vmatmul.mubr.bf16.gmra.mrb[0].mxu0 %v2210
        %v2296 = vpop.f32.mrb[0].mxu0
        %v2297 = vadd.f32 0.0, %v2296
        %v2298 = vpop.f32.mrb[0].mxu0
        %v2299 = vpop.f32.mrb[0].mxu0
        %v2300 = vadd.f32 0.0, %v2299
        %v2301 = vpop.f32.mrb[0].mxu0
        %2302 = vmatprep.mubr.bf16.mxu0 0
        %2303 = vmatmul.mubr.bf16.gmra.mrb[0].mxu0 %v2213
        %v2304 = vpop.f32.mrb[0].mxu0
        %v2305 = vadd.f32 0.0, %v2304
        %v2306 = vpop.f32.mrb[0].mxu0
        %v2307 = vpop.f32.mrb[0].mxu0
        %v2308 = vadd.f32 0.0, %v2307
        %v2309 = vpop.f32.mrb[0].mxu0
        %2310 = vmatprep.mubr.bf16.mxu0 0
        %2311 = vmatmul.mubr.bf16.gmra.mrb[0].mxu0 %v2216
        %v2312 = vpop.f32.mrb[0].mxu0
        %v2313 = vadd.f32 0.0, %v2312
        %v2314 = vpop.f32.mrb[0].mxu0
        %v2315 = vpop.f32.mrb[0].mxu0
        %v2316 = vadd.f32 0.0, %v2315
        %v2317 = vpop.f32.mrb[0].mxu0
        %2318 = vmatprep.mubr.bf16.mxu0 0
        %2319 = vmatmul.mubr.bf16.gmra.mrb[0].mxu0 %v2219
        %v2320 = vpop.f32.mrb[0].mxu0
        %v2321 = vadd.f32 0.0, %v2320
        %v2322 = vpop.f32.mrb[0].mxu0
        %v2323 = vpop.f32.mrb[0].mxu0
        %v2324 = vadd.f32 0.0, %v2323
        %v2325 = vpop.f32.mrb[0].mxu0
        %2326 = vmatprep.mubr.bf16.mxu0 0
        %2327 = vmatmul.mubr.bf16.gmra.mrb[0].mxu0 %v2222
        %v2328 = vpop.f32.mrb[0].mxu0
        %v2329 = vadd.f32 0.0, %v2328
        %v2330 = vpop.f32.mrb[0].mxu0
        %v2331 = vpop.f32.mrb[0].mxu0
        %v2332 = vadd.f32 0.0, %v2331
        %v2333 = vpop.f32.mrb[0].mxu0
        %2334 = vmatprep.mubr.bf16.mxu0 0
        %2335 = vmatmul.mubr.bf16.gmra.mrb[0].mxu0 %v2225
        %v2336 = vpop.f32.mrb[0].mxu0
        %v2337 = vadd.f32 0.0, %v2336
        %v2338 = vpop.f32.mrb[0].mxu0
        %v2339 = vpop.f32.mrb[0].mxu0
        %v2340 = vadd.f32 0.0, %v2339
        %v2341 = vpop.f32.mrb[0].mxu0
        %2342 = vmatprep.mubr.bf16.mxu0 0
        %2343 = vmatmul.mubr.bf16.gmra.mrb[0].mxu0 %v2228
        %v2344 = vpop.f32.mrb[0].mxu0
        %v2345 = vadd.f32 0.0, %v2344
        %v2346 = vpop.f32.mrb[0].mxu0
        %v2347 = vpop.f32.mrb[0].mxu0
        %v2348 = vadd.f32 0.0, %v2347
        %v2349 = vpop.f32.mrb[0].mxu0
        %2350 = vmatprep.mubr.bf16.mxu0 0
        %2351 = vmatmul.mubr.bf16.gmra.mrb[0].mxu0 %v2231
        %v2352 = vpop.f32.mrb[0].mxu0
        %v2353 = vadd.f32 0.0, %v2352
        %v2354 = vpop.f32.mrb[0].mxu0
        %v2355 = vpop.f32.mrb[0].mxu0
        %v2356 = vadd.f32 0.0, %v2355
        %v2357 = vpop.f32.mrb[0].mxu0
        %2358 = vmatprep.mubr.bf16.mxu0 0
        %2359 = vmatmul.mubr.bf16.gmra.mrb[0].mxu0 %v2234
        %v2360 = vpop.f32.mrb[0].mxu0
        %v2361 = vadd.f32 0.0, %v2360
        %v2362 = vpop.f32.mrb[0].mxu0
        %v2363 = vpop.f32.mrb[0].mxu0
        %v2364 = vadd.f32 0.0, %v2363
        %v2365 = vpop.f32.mrb[0].mxu0
        %2366 = vmatprep.mubr.bf16.mxu0 0
        %2367 = vmatmul.mubr.bf16.gmra.mrb[0].mxu0 %v2237
        %v2368 = vpop.f32.mrb[0].mxu0
        %v2369 = vadd.f32 0.0, %v2368
        %v2370 = vpop.f32.mrb[0].mxu0
        %v2371 = vpop.f32.mrb[0].mxu0
        %v2372 = vadd.f32 0.0, %v2371
        %v2373 = vpop.f32.mrb[0].mxu0
        %2374 = vmatprep.mubr.bf16.mxu0 0
        %2375 = vmatmul.mubr.bf16.gmra.mrb[0].mxu0 %v2240
        %v2376 = vpop.f32.mrb[0].mxu0
        %v2377 = vadd.f32 0.0, %v2376
        %v2378 = vpop.f32.mrb[0].mxu0
        %v2379 = vpop.f32.mrb[0].mxu0
        %v2380 = vadd.f32 0.0, %v2379
        %v2381 = vpop.f32.mrb[0].mxu0
        %2382 = vmatprep.mubr.bf16.mxu0 0
        %2383 = vmatmul.mubr.bf16.gmra.mrb[0].mxu0 %v2243
        %v2384 = vpop.f32.mrb[0].mxu0
        %v2385 = vadd.f32 0.0, %v2384
        %v2386 = vpop.f32.mrb[0].mxu0
        %v2387 = vpop.f32.mrb[0].mxu0
        %v2388 = vadd.f32 0.0, %v2387
        %v2389 = vpop.f32.mrb[0].mxu0
        %2390 = vmatprep.mubr.bf16.mxu0 0
        %2391 = vmatmul.mubr.bf16.gmra.mrb[0].mxu0 %v2246
        %v2392 = vpop.f32.mrb[0].mxu0
        %v2393 = vadd.f32 0.0, %v2392
        %v2394 = vpop.f32.mrb[0].mxu0
        %v2395 = vpop.f32.mrb[0].mxu0
        %v2396 = vadd.f32 0.0, %v2395
        %v2397 = vpop.f32.mrb[0].mxu0
        %2398 = vmatprep.mubr.bf16.mxu0 0
        %2399 = vmatmul.mubr.bf16.gmra.mrb[0].mxu0 %v2249
        %v2400 = vpop.f32.mrb[0].mxu0
        %v2401 = vadd.f32 0.0, %v2400
        %v2402 = vpop.f32.mrb[0].mxu0
        %v2403 = vpop.f32.mrb[0].mxu0
        %v2404 = vadd.f32 0.0, %v2403
        %v2405 = vpop.f32.mrb[0].mxu0
        %2406 = vmatprep.mubr.bf16.mxu0 0
        %2407 = vmatmul.mubr.bf16.gmra.mrb[0].mxu0 %v2252
        %v2408 = vpop.f32.mrb[0].mxu0
        %v2409 = vadd.f32 0.0, %v2408
        %v2410 = vpop.f32.mrb[0].mxu0
        %v2411 = vpop.f32.mrb[0].mxu0
        %v2412 = vadd.f32 0.0, %v2411
        %v2413 = vpop.f32.mrb[0].mxu0
        %2414 = vdwg.mxu0
        %v2415 = vadd.f32 %v2077, %v2289
        %v2416 = vadd.f32 %v2078, %v2292
        %v2417 = vadd.f32 %v2079, %v2297
        %v2418 = vadd.f32 %v2080, %v2300
        %v2419 = vadd.f32 %v2081, %v2305
        %v2420 = vadd.f32 %v2082, %v2308
        %v2421 = vadd.f32 %v2083, %v2313
        %v2422 = vadd.f32 %v2084, %v2316
        %v2423 = vadd.f32 %v2085, %v2321
        %v2424 = vadd.f32 %v2086, %v2324
        %v2425 = vadd.f32 %v2087, %v2329
        %v2426 = vadd.f32 %v2088, %v2332
        %v2427 = vadd.f32 %v2089, %v2337
        %v2428 = vadd.f32 %v2090, %v2340
        %v2429 = vadd.f32 %v2091, %v2345
        %v2430 = vadd.f32 %v2092, %v2348
        %v2431 = vadd.f32 %v2093, %v2353
        %v2432 = vadd.f32 %v2094, %v2356
        %v2433 = vadd.f32 %v2095, %v2361
        %v2434 = vadd.f32 %v2096, %v2364
        %v2435 = vadd.f32 %v2097, %v2369
        %v2436 = vadd.f32 %v2098, %v2372
        %v2437 = vadd.f32 %v2099, %v2377
        %v2438 = vadd.f32 %v2100, %v2380
        %v2439 = vadd.f32 %v2101, %v2385
        %v2440 = vadd.f32 %v2102, %v2388
        %v2441 = vadd.f32 %v2103, %v2393
        %v2442 = vadd.f32 %v2104, %v2396
        %v2443 = vadd.f32 %v2105, %v2401
        %v2444 = vadd.f32 %v2106, %v2404
        %v2445 = vadd.f32 %v2107, %v2409
        %v2446 = vadd.f32 %v2108, %v2412
        %2447 = vst.msk [vmem:[#allocation2] sm:$0xff] %vm186, %v2415
        %2448 = vst.msk [vmem:[#allocation2 + $0x8] sm:$0xff] %vm186, %v2416
        %2449 = vst.msk [vmem:[#allocation2 + $0x10] sm:$0xff] %vm186, %v2417
        %2450 = vst.msk [vmem:[#allocation2 + $0x18] sm:$0xff] %vm186, %v2418
        %2451 = vst.msk [vmem:[#allocation2 + $0x20] sm:$0xff] %vm186, %v2419
        %2452 = vst.msk [vmem:[#allocation2 + $0x28] sm:$0xff] %vm186, %v2420
        %2453 = vst.msk [vmem:[#allocation2 + $0x30] sm:$0xff] %vm186, %v2421
        %2454 = vst.msk [vmem:[#allocation2 + $0x38] sm:$0xff] %vm186, %v2422
        %2455 = vst.msk [vmem:[#allocation2 + $0x40] sm:$0xff] %vm186, %v2423
        %2456 = vst.msk [vmem:[#allocation2 + $0x48] sm:$0xff] %vm186, %v2424
        %2457 = vst.msk [vmem:[#allocation2 + $0x50] sm:$0xff] %vm186, %v2425
        %2458 = vst.msk [vmem:[#allocation2 + $0x58] sm:$0xff] %vm186, %v2426
        %2459 = vst.msk [vmem:[#allocation2 + $0x60] sm:$0xff] %vm186, %v2427
        %2460 = vst.msk [vmem:[#allocation2 + $0x68] sm:$0xff] %vm186, %v2428
        %2461 = vst.msk [vmem:[#allocation2 + $0x70] sm:$0xff] %vm186, %v2429
        %2462 = vst.msk [vmem:[#allocation2 + $0x78] sm:$0xff] %vm186, %v2430
        %2463 = vst.msk [vmem:[#allocation2 + $0x80] sm:$0xff] %vm186, %v2431
        %2464 = vst.msk [vmem:[#allocation2 + $0x88] sm:$0xff] %vm186, %v2432
        %2465 = vst.msk [vmem:[#allocation2 + $0x90] sm:$0xff] %vm186, %v2433
        %2466 = vst.msk [vmem:[#allocation2 + $0x98] sm:$0xff] %vm186, %v2434
        %2467 = vst.msk [vmem:[#allocation2 + $0xa0] sm:$0xff] %vm186, %v2435
        %2468 = vst.msk [vmem:[#allocation2 + $0xa8] sm:$0xff] %vm186, %v2436
        %2469 = vst.msk [vmem:[#allocation2 + $0xb0] sm:$0xff] %vm186, %v2437
        %2470 = vst.msk [vmem:[#allocation2 + $0xb8] sm:$0xff] %vm186, %v2438
        %2471 = vst.msk [vmem:[#allocation2 + $0xc0] sm:$0xff] %vm186, %v2439
        %2472 = vst.msk [vmem:[#allocation2 + $0xc8] sm:$0xff] %vm186, %v2440
        %2473 = vst.msk [vmem:[#allocation2 + $0xd0] sm:$0xff] %vm186, %v2441
        %2474 = vst.msk [vmem:[#allocation2 + $0xd8] sm:$0xff] %vm186, %v2442
        %2475 = vst.msk [vmem:[#allocation2 + $0xe0] sm:$0xff] %vm186, %v2443
        %2476 = vst.msk [vmem:[#allocation2 + $0xe8] sm:$0xff] %vm186, %v2444
        %2477 = vst.msk [vmem:[#allocation2 + $0xf0] sm:$0xff] %vm186, %v2445
        %2478 = vst.msk [vmem:[#allocation2 + $0xf8] sm:$0xff] %vm186, %v2446
        %v2479 = vld [vmem:[%s2044] sm:$0xf]
        %v2480 = vld [vmem:[%s2044 + $0x4] sm:$0xf]
        %v2481 = vld [vmem:[%s2044 + $0x8] sm:$0x1]
        %v2482 = vld [vmem:[%s2044 + $0xc] sm:$0xf]
        %v2483 = vld [vmem:[%s2044 + $0x10] sm:$0xf]
        %v2484 = vld [vmem:[%s2044 + $0x14] sm:$0x1]
        %v2485 = vld [vmem:[%s2044 + $0x18] sm:$0xf]
        %v2486 = vld [vmem:[%s2044 + $0x1c] sm:$0xf]
        %v2487 = vld [vmem:[%s2044 + $0x20] sm:$0x1]
        %v2488 = vld [vmem:[%s2044 + $0x24] sm:$0xf]
        %v2489 = vld [vmem:[%s2044 + $0x28] sm:$0xf]
        %v2490 = vld [vmem:[%s2044 + $0x2c] sm:$0x1]
        %v2491 = vld [vmem:[%s2044 + $0x30] sm:$0xf]
        %v2492 = vld [vmem:[%s2044 + $0x34] sm:$0xf]
        %v2493 = vld [vmem:[%s2044 + $0x38] sm:$0x1]
        %v2494 = vld [vmem:[%s2044 + $0x3c] sm:$0xf]
        %v2495 = vld [vmem:[%s2044 + $0x40] sm:$0xf]
        %v2496 = vld [vmem:[%s2044 + $0x44] sm:$0x1]
        %v2497 = vld [vmem:[%s2044 + $0x48] sm:$0xf]
        %v2498 = vld [vmem:[%s2044 + $0x4c] sm:$0xf]
        %v2499 = vld [vmem:[%s2044 + $0x50] sm:$0x1]
        %v2500 = vld [vmem:[%s2044 + $0x54] sm:$0xf]
        %v2501 = vld [vmem:[%s2044 + $0x58] sm:$0xf]
        %v2502 = vld [vmem:[%s2044 + $0x5c] sm:$0x1]
        %v2503 = vld [vmem:[%s2044 + $0x60] sm:$0xf]
        %v2504 = vld [vmem:[%s2044 + $0x64] sm:$0xf]
        %v2505 = vld [vmem:[%s2044 + $0x68] sm:$0x1]
        %v2506 = vld [vmem:[%s2044 + $0x6c] sm:$0xf]
        %v2507 = vld [vmem:[%s2044 + $0x70] sm:$0xf]
        %v2508 = vld [vmem:[%s2044 + $0x74] sm:$0x1]
        %v2509 = vld [vmem:[%s2044 + $0x78] sm:$0xf]
        %v2510 = vld [vmem:[%s2044 + $0x7c] sm:$0xf]
        %v2511 = vld [vmem:[%s2044 + $0x80] sm:$0x1]
        %v2512 = vld [vmem:[%s2044 + $0x84] sm:$0xf]
        %v2513 = vld [vmem:[%s2044 + $0x88] sm:$0xf]
        %v2514 = vld [vmem:[%s2044 + $0x8c] sm:$0x1]
        %v2515 = vld [vmem:[%s2044 + $0x90] sm:$0xf]
        %v2516 = vld [vmem:[%s2044 + $0x94] sm:$0xf]
        %v2517 = vld [vmem:[%s2044 + $0x98] sm:$0x1]
        %v2518 = vld [vmem:[%s2044 + $0x9c] sm:$0xf]
        %v2519 = vld [vmem:[%s2044 + $0xa0] sm:$0xf]
        %v2520 = vld [vmem:[%s2044 + $0xa4] sm:$0x1]
        %v2521 = vld [vmem:[%s2044 + $0xa8] sm:$0xf]
        %v2522 = vld [vmem:[%s2044 + $0xac] sm:$0xf]
        %v2523 = vld [vmem:[%s2044 + $0xb0] sm:$0x1]
        %v2524 = vld [vmem:[%s2044 + $0xb4] sm:$0xf]
        %v2525 = vld [vmem:[%s2044 + $0xb8] sm:$0xf]
        %v2526 = vld [vmem:[%s2044 + $0xbc] sm:$0x1]
        %v2527 = vld [vmem:[#allocation2] sm:$0xff]
        %v2528 = vld [vmem:[#allocation2 + $0x8] sm:$0xff]
        %v2529 = vld [vmem:[#allocation2 + $0x10] sm:$0xff]
        %v2530 = vld [vmem:[#allocation2 + $0x18] sm:$0xff]
        %v2531 = vld [vmem:[#allocation2 + $0x20] sm:$0xff]
        %v2532 = vld [vmem:[#allocation2 + $0x28] sm:$0xff]
        %v2533 = vld [vmem:[#allocation2 + $0x30] sm:$0xff]
        %v2534 = vld [vmem:[#allocation2 + $0x38] sm:$0xff]
        %v2535 = vld [vmem:[#allocation2 + $0x40] sm:$0xff]
        %v2536 = vld [vmem:[#allocation2 + $0x48] sm:$0xff]
        %v2537 = vld [vmem:[#allocation2 + $0x50] sm:$0xff]
        %v2538 = vld [vmem:[#allocation2 + $0x58] sm:$0xff]
        %v2539 = vld [vmem:[#allocation2 + $0x60] sm:$0xff]
        %v2540 = vld [vmem:[#allocation2 + $0x68] sm:$0xff]
        %v2541 = vld [vmem:[#allocation2 + $0x70] sm:$0xff]
        %v2542 = vld [vmem:[#allocation2 + $0x78] sm:$0xff]
        %v2543 = vld [vmem:[#allocation2 + $0x80] sm:$0xff]
        %v2544 = vld [vmem:[#allocation2 + $0x88] sm:$0xff]
        %v2545 = vld [vmem:[#allocation2 + $0x90] sm:$0xff]
        %v2546 = vld [vmem:[#allocation2 + $0x98] sm:$0xff]
        %v2547 = vld [vmem:[#allocation2 + $0xa0] sm:$0xff]
        %v2548 = vld [vmem:[#allocation2 + $0xa8] sm:$0xff]
        %v2549 = vld [vmem:[#allocation2 + $0xb0] sm:$0xff]
        %v2550 = vld [vmem:[#allocation2 + $0xb8] sm:$0xff]
        %v2551 = vld [vmem:[#allocation2 + $0xc0] sm:$0xff]
        %v2552 = vld [vmem:[#allocation2 + $0xc8] sm:$0xff]
        %v2553 = vld [vmem:[#allocation2 + $0xd0] sm:$0xff]
        %v2554 = vld [vmem:[#allocation2 + $0xd8] sm:$0xff]
        %v2555 = vld [vmem:[#allocation2 + $0xe0] sm:$0xff]
        %v2556 = vld [vmem:[#allocation2 + $0xe8] sm:$0xff]
        %v2557 = vld [vmem:[#allocation2 + $0xf0] sm:$0xff]
        %v2558 = vld [vmem:[#allocation2 + $0xf8] sm:$0xff]
        %v2560 = vshrl.u32 %v2479, 16
        %v2562 = vrot.slane %v2560, 4
        %v2563 = vshll.u32 %v2479, 16
        %v2565 = vrot.slane %v2563, 5
        %v2566 = vor.u32 %v2562, %v2565
        %v2567 = vrot.slane %v2566, 4
        %v2569 = vshll.u32 %v2480, 16
        %v2571 = vrot.slane %v2569, 5
        %v2572 = vsel %vm737, %v2567, %v2571
        %v2573 = vshrl.u32 %v2480, 16
        %v2575 = vrot.slane %v2573, 4
        %v2576 = vor.u32 %v2575, %v2571
        %v2577 = vrot.slane %v2576, 4
        %v2579 = vshll.u32 %v2481, 16
        %v2581 = vrot.slane %v2579, 5
        %v2582 = vsel %vm737, %v2577, %v2581
        %v2584 = vshrl.u32 %v2482, 16
        %v2586 = vrot.slane %v2584, 4
        %v2587 = vshll.u32 %v2482, 16
        %v2589 = vrot.slane %v2587, 5
        %v2590 = vor.u32 %v2586, %v2589
        %v2591 = vrot.slane %v2590, 4
        %v2593 = vshll.u32 %v2483, 16
        %v2595 = vrot.slane %v2593, 5
        %v2596 = vsel %vm737, %v2591, %v2595
        %v2597 = vshrl.u32 %v2483, 16
        %v2599 = vrot.slane %v2597, 4
        %v2600 = vor.u32 %v2599, %v2595
        %v2601 = vrot.slane %v2600, 4
        %v2603 = vshll.u32 %v2484, 16
        %v2605 = vrot.slane %v2603, 5
        %v2606 = vsel %vm737, %v2601, %v2605
        %v2608 = vshrl.u32 %v2485, 16
        %v2610 = vrot.slane %v2608, 4
        %v2611 = vshll.u32 %v2485, 16
        %v2613 = vrot.slane %v2611, 5
        %v2614 = vor.u32 %v2610, %v2613
        %v2615 = vrot.slane %v2614, 4
        %v2617 = vshll.u32 %v2486, 16
        %v2619 = vrot.slane %v2617, 5
        %v2620 = vsel %vm737, %v2615, %v2619
        %v2621 = vshrl.u32 %v2486, 16
        %v2623 = vrot.slane %v2621, 4
        %v2624 = vor.u32 %v2623, %v2619
        %v2625 = vrot.slane %v2624, 4
        %v2627 = vshll.u32 %v2487, 16
        %v2629 = vrot.slane %v2627, 5
        %v2630 = vsel %vm737, %v2625, %v2629
        %v2632 = vshrl.u32 %v2488, 16
        %v2634 = vrot.slane %v2632, 4
        %v2635 = vshll.u32 %v2488, 16
        %v2637 = vrot.slane %v2635, 5
        %v2638 = vor.u32 %v2634, %v2637
        %v2639 = vrot.slane %v2638, 4
        %v2641 = vshll.u32 %v2489, 16
        %v2643 = vrot.slane %v2641, 5
        %v2644 = vsel %vm737, %v2639, %v2643
        %v2645 = vshrl.u32 %v2489, 16
        %v2647 = vrot.slane %v2645, 4
        %v2648 = vor.u32 %v2647, %v2643
        %v2649 = vrot.slane %v2648, 4
        %v2651 = vshll.u32 %v2490, 16
        %v2653 = vrot.slane %v2651, 5
        %v2654 = vsel %vm737, %v2649, %v2653
        %v2656 = vshrl.u32 %v2491, 16
        %v2658 = vrot.slane %v2656, 4
        %v2659 = vshll.u32 %v2491, 16
        %v2661 = vrot.slane %v2659, 5
        %v2662 = vor.u32 %v2658, %v2661
        %v2663 = vrot.slane %v2662, 4
        %v2665 = vshll.u32 %v2492, 16
        %v2667 = vrot.slane %v2665, 5
        %v2668 = vsel %vm737, %v2663, %v2667
        %v2669 = vshrl.u32 %v2492, 16
        %v2671 = vrot.slane %v2669, 4
        %v2672 = vor.u32 %v2671, %v2667
        %v2673 = vrot.slane %v2672, 4
        %v2675 = vshll.u32 %v2493, 16
        %v2677 = vrot.slane %v2675, 5
        %v2678 = vsel %vm737, %v2673, %v2677
        %v2680 = vshrl.u32 %v2494, 16
        %v2682 = vrot.slane %v2680, 4
        %v2683 = vshll.u32 %v2494, 16
        %v2685 = vrot.slane %v2683, 5
        %v2686 = vor.u32 %v2682, %v2685
        %v2687 = vrot.slane %v2686, 4
        %v2689 = vshll.u32 %v2495, 16
        %v2691 = vrot.slane %v2689, 5
        %v2692 = vsel %vm737, %v2687, %v2691
        %v2693 = vshrl.u32 %v2495, 16
        %v2695 = vrot.slane %v2693, 4
        %v2696 = vor.u32 %v2695, %v2691
        %v2697 = vrot.slane %v2696, 4
        %v2699 = vshll.u32 %v2496, 16
        %v2701 = vrot.slane %v2699, 5
        %v2702 = vsel %vm737, %v2697, %v2701
        %v2704 = vshrl.u32 %v2497, 16
        %v2706 = vrot.slane %v2704, 4
        %v2707 = vshll.u32 %v2497, 16
        %v2709 = vrot.slane %v2707, 5
        %v2710 = vor.u32 %v2706, %v2709
        %v2711 = vrot.slane %v2710, 4
        %v2713 = vshll.u32 %v2498, 16
        %v2715 = vrot.slane %v2713, 5
        %v2716 = vsel %vm737, %v2711, %v2715
        %v2717 = vshrl.u32 %v2498, 16
        %v2719 = vrot.slane %v2717, 4
        %v2720 = vor.u32 %v2719, %v2715
        %v2721 = vrot.slane %v2720, 4
        %v2723 = vshll.u32 %v2499, 16
        %v2725 = vrot.slane %v2723, 5
        %v2726 = vsel %vm737, %v2721, %v2725
        %v2728 = vshrl.u32 %v2500, 16
        %v2730 = vrot.slane %v2728, 4
        %v2731 = vshll.u32 %v2500, 16
        %v2733 = vrot.slane %v2731, 5
        %v2734 = vor.u32 %v2730, %v2733
        %v2735 = vrot.slane %v2734, 4
        %v2737 = vshll.u32 %v2501, 16
        %v2739 = vrot.slane %v2737, 5
        %v2740 = vsel %vm737, %v2735, %v2739
        %v2741 = vshrl.u32 %v2501, 16
        %v2743 = vrot.slane %v2741, 4
        %v2744 = vor.u32 %v2743, %v2739
        %v2745 = vrot.slane %v2744, 4
        %v2747 = vshll.u32 %v2502, 16
        %v2749 = vrot.slane %v2747, 5
        %v2750 = vsel %vm737, %v2745, %v2749
        %v2752 = vshrl.u32 %v2503, 16
        %v2754 = vrot.slane %v2752, 4
        %v2755 = vshll.u32 %v2503, 16
        %v2757 = vrot.slane %v2755, 5
        %v2758 = vor.u32 %v2754, %v2757
        %v2759 = vrot.slane %v2758, 4
        %v2761 = vshll.u32 %v2504, 16
        %v2763 = vrot.slane %v2761, 5
        %v2764 = vsel %vm737, %v2759, %v2763
        %v2765 = vshrl.u32 %v2504, 16
        %v2767 = vrot.slane %v2765, 4
        %v2768 = vor.u32 %v2767, %v2763
        %v2769 = vrot.slane %v2768, 4
        %v2771 = vshll.u32 %v2505, 16
        %v2773 = vrot.slane %v2771, 5
        %v2774 = vsel %vm737, %v2769, %v2773
        %v2776 = vshrl.u32 %v2506, 16
        %v2778 = vrot.slane %v2776, 4
        %v2779 = vshll.u32 %v2506, 16
        %v2781 = vrot.slane %v2779, 5
        %v2782 = vor.u32 %v2778, %v2781
        %v2783 = vrot.slane %v2782, 4
        %v2785 = vshll.u32 %v2507, 16
        %v2787 = vrot.slane %v2785, 5
        %v2788 = vsel %vm737, %v2783, %v2787
        %v2789 = vshrl.u32 %v2507, 16
        %v2791 = vrot.slane %v2789, 4
        %v2792 = vor.u32 %v2791, %v2787
        %v2793 = vrot.slane %v2792, 4
        %v2795 = vshll.u32 %v2508, 16
        %v2797 = vrot.slane %v2795, 5
        %v2798 = vsel %vm737, %v2793, %v2797
        %v2800 = vshrl.u32 %v2509, 16
        %v2802 = vrot.slane %v2800, 4
        %v2803 = vshll.u32 %v2509, 16
        %v2805 = vrot.slane %v2803, 5
        %v2806 = vor.u32 %v2802, %v2805
        %v2807 = vrot.slane %v2806, 4
        %v2809 = vshll.u32 %v2510, 16
        %v2811 = vrot.slane %v2809, 5
        %v2812 = vsel %vm737, %v2807, %v2811
        %v2813 = vshrl.u32 %v2510, 16
        %v2815 = vrot.slane %v2813, 4
        %v2816 = vor.u32 %v2815, %v2811
        %v2817 = vrot.slane %v2816, 4
        %v2819 = vshll.u32 %v2511, 16
        %v2821 = vrot.slane %v2819, 5
        %v2822 = vsel %vm737, %v2817, %v2821
        %v2824 = vshrl.u32 %v2512, 16
        %v2826 = vrot.slane %v2824, 4
        %v2827 = vshll.u32 %v2512, 16
        %v2829 = vrot.slane %v2827, 5
        %v2830 = vor.u32 %v2826, %v2829
        %v2831 = vrot.slane %v2830, 4
        %v2833 = vshll.u32 %v2513, 16
        %v2835 = vrot.slane %v2833, 5
        %v2836 = vsel %vm737, %v2831, %v2835
        %v2837 = vshrl.u32 %v2513, 16
        %v2839 = vrot.slane %v2837, 4
        %v2840 = vor.u32 %v2839, %v2835
        %v2841 = vrot.slane %v2840, 4
        %v2843 = vshll.u32 %v2514, 16
        %v2845 = vrot.slane %v2843, 5
        %v2846 = vsel %vm737, %v2841, %v2845
        %v2848 = vshrl.u32 %v2515, 16
        %v2850 = vrot.slane %v2848, 4
        %v2851 = vshll.u32 %v2515, 16
        %v2853 = vrot.slane %v2851, 5
        %v2854 = vor.u32 %v2850, %v2853
        %v2855 = vrot.slane %v2854, 4
        %v2857 = vshll.u32 %v2516, 16
        %v2859 = vrot.slane %v2857, 5
        %v2860 = vsel %vm737, %v2855, %v2859
        %v2861 = vshrl.u32 %v2516, 16
        %v2863 = vrot.slane %v2861, 4
        %v2864 = vor.u32 %v2863, %v2859
        %v2865 = vrot.slane %v2864, 4
        %v2867 = vshll.u32 %v2517, 16
        %v2869 = vrot.slane %v2867, 5
        %v2870 = vsel %vm737, %v2865, %v2869
        %v2872 = vshrl.u32 %v2518, 16
        %v2874 = vrot.slane %v2872, 4
        %v2875 = vshll.u32 %v2518, 16
        %v2877 = vrot.slane %v2875, 5
        %v2878 = vor.u32 %v2874, %v2877
        %v2879 = vrot.slane %v2878, 4
        %v2881 = vshll.u32 %v2519, 16
        %v2883 = vrot.slane %v2881, 5
        %v2884 = vsel %vm737, %v2879, %v2883
        %v2885 = vshrl.u32 %v2519, 16
        %v2887 = vrot.slane %v2885, 4
        %v2888 = vor.u32 %v2887, %v2883
        %v2889 = vrot.slane %v2888, 4
        %v2891 = vshll.u32 %v2520, 16
        %v2893 = vrot.slane %v2891, 5
        %v2894 = vsel %vm737, %v2889, %v2893
        %v2896 = vshrl.u32 %v2521, 16
        %v2898 = vrot.slane %v2896, 4
        %v2899 = vshll.u32 %v2521, 16
        %v2901 = vrot.slane %v2899, 5
        %v2902 = vor.u32 %v2898, %v2901
        %v2903 = vrot.slane %v2902, 4
        %v2905 = vshll.u32 %v2522, 16
        %v2907 = vrot.slane %v2905, 5
        %v2908 = vsel %vm737, %v2903, %v2907
        %v2909 = vshrl.u32 %v2522, 16
        %v2911 = vrot.slane %v2909, 4
        %v2912 = vor.u32 %v2911, %v2907
        %v2913 = vrot.slane %v2912, 4
        %v2915 = vshll.u32 %v2523, 16
        %v2917 = vrot.slane %v2915, 5
        %v2918 = vsel %vm737, %v2913, %v2917
        %v2920 = vshrl.u32 %v2524, 16
        %v2922 = vrot.slane %v2920, 4
        %v2923 = vshll.u32 %v2524, 16
        %v2925 = vrot.slane %v2923, 5
        %v2926 = vor.u32 %v2922, %v2925
        %v2927 = vrot.slane %v2926, 4
        %v2929 = vshll.u32 %v2525, 16
        %v2931 = vrot.slane %v2929, 5
        %v2932 = vsel %vm737, %v2927, %v2931
        %v2933 = vshrl.u32 %v2525, 16
        %v2935 = vrot.slane %v2933, 4
        %v2936 = vor.u32 %v2935, %v2931
        %v2937 = vrot.slane %v2936, 4
        %v2939 = vshll.u32 %v2526, 16
        %v2941 = vrot.slane %v2939, 5
        %v2942 = vsel %vm737, %v2937, %v2941
        %s2943 = scalar_lea.vmem %s1, 64
        %v2944 = vld [vmem:[%s2943] sm:$0xf]
        %v2945 = vld [vmem:[%s2943 + $0x4] sm:$0xf]
        %v2946 = vld [vmem:[%s2943 + $0x8] sm:$0xf]
        %v2947 = vld [vmem:[%s2943 + $0xc] sm:$0xf]
        %v2948 = vunpack.c.l.b16 %v2572
        %v2949 = vunpack.c.l.b16 %v2582
        %v2950 = vunpack.c.l.b16 %v2596
        %v2951 = vunpack.c.l.b16 %v2606
        %v2952 = vunpack.c.l.b16 %v2620
        %v2953 = vunpack.c.l.b16 %v2630
        %v2954 = vunpack.c.l.b16 %v2644
        %v2955 = vunpack.c.l.b16 %v2654
        %v2956 = vunpack.c.l.b16 %v2668
        %v2957 = vunpack.c.l.b16 %v2678
        %v2958 = vunpack.c.l.b16 %v2692
        %v2959 = vunpack.c.l.b16 %v2702
        %v2960 = vunpack.c.l.b16 %v2716
        %v2961 = vunpack.c.l.b16 %v2726
        %v2962 = vunpack.c.l.b16 %v2740
        %v2963 = vunpack.c.l.b16 %v2750
        %v2964 = vunpack.c.l.b16 %v2764
        %v2965 = vunpack.c.l.b16 %v2774
        %v2966 = vunpack.c.l.b16 %v2788
        %v2967 = vunpack.c.l.b16 %v2798
        %v2968 = vunpack.c.l.b16 %v2812
        %v2969 = vunpack.c.l.b16 %v2822
        %v2970 = vunpack.c.l.b16 %v2836
        %v2971 = vunpack.c.l.b16 %v2846
        %v2972 = vunpack.c.l.b16 %v2860
        %v2973 = vunpack.c.l.b16 %v2870
        %v2974 = vunpack.c.l.b16 %v2884
        %v2975 = vunpack.c.l.b16 %v2894
        %v2976 = vunpack.c.l.b16 %v2908
        %v2977 = vunpack.c.l.b16 %v2918
        %v2978 = vunpack.c.l.b16 %v2932
        %v2979 = vunpack.c.l.b16 %v2942
        %v2980 = vpack.c.b16 %v2949, %v2948
        %v2981 = vpack.c.b16 %v2951, %v2950
        %v2982 = vpack.c.b16 %v2953, %v2952
        %v2983 = vpack.c.b16 %v2955, %v2954
        %v2984 = vpack.c.b16 %v2957, %v2956
        %v2985 = vpack.c.b16 %v2959, %v2958
        %v2986 = vpack.c.b16 %v2961, %v2960
        %v2987 = vpack.c.b16 %v2963, %v2962
        %v2988 = vpack.c.b16 %v2965, %v2964
        %v2989 = vpack.c.b16 %v2967, %v2966
        %v2990 = vpack.c.b16 %v2969, %v2968
        %v2991 = vpack.c.b16 %v2971, %v2970
        %v2992 = vpack.c.b16 %v2973, %v2972
        %v2993 = vpack.c.b16 %v2975, %v2974
        %v2994 = vpack.c.b16 %v2977, %v2976
        %v2995 = vpack.c.b16 %v2979, %v2978
        %v3000 = vunpack.c.l.b16 %v2944
        %v3001 = vunpack.c.l.b16 %v2945
        %v3002 = vunpack.c.l.b16 %v2946
        %v3003 = vunpack.c.l.b16 %v2947
        %v3004 = vpack.c.b16 %v3001, %v3000
        %v3005 = vpack.c.b16 %v3003, %v3002
        %v3009 = vsel %vm186, %v2980, 0
        %v3012 = vsel %vm186, %v2981, 0
        %v3015 = vsel %vm186, %v2982, 0
        %v3018 = vsel %vm186, %v2983, 0
        %v3021 = vsel %vm186, %v2984, 0
        %v3024 = vsel %vm186, %v2985, 0
        %v3027 = vsel %vm186, %v2986, 0
        %v3030 = vsel %vm186, %v2987, 0
        %v3033 = vsel %vm186, %v2988, 0
        %v3036 = vsel %vm186, %v2989, 0
        %v3039 = vsel %vm186, %v2990, 0
        %v3042 = vsel %vm186, %v2991, 0
        %v3045 = vsel %vm186, %v2992, 0
        %v3048 = vsel %vm186, %v2993, 0
        %v3051 = vsel %vm186, %v2994, 0
        %v3054 = vsel %vm186, %v2995, 0
        %3056 = vmatprep.subr.bf16.mxu0 0
        %3057 = vmatpush1.bf16.msra.mxu0 %v3004
        %3058 = vmatprep.subr.bf16.mxu0 0
        %3059 = vmatpush1.bf16.msra.mxu0 %v3005
        %3060 = vmatprep.subr.bf16.mxu0 0
        %3061 = vmatpush1.bf16.msra.mxu0 0
        %3062 = vmatprep.subr.bf16.mxu0 0
        %3063 = vmatpush1.bf16.msra.mxu0 0
        %3064 = vmatprep.subr.bf16.mxu0 0
        %3065 = vmatpush1.bf16.msra.mxu0 0
        %3066 = vmatprep.subr.bf16.mxu0 0
        %3067 = vmatpush1.bf16.msra.mxu0 0
        %3068 = vmatprep.subr.bf16.mxu0 0
        %3069 = vmatpush1.bf16.msra.mxu0 0
        %3070 = vmatprep.subr.bf16.mxu0 0
        %3071 = vmatpush1.bf16.msra.mxu0 0
        %3072 = vmatprep.subr.bf16.mxu0 0
        %3073 = vmatpush1.bf16.msra.mxu0 0
        %3074 = vmatprep.subr.bf16.mxu0 0
        %3075 = vmatpush1.bf16.msra.mxu0 0
        %3076 = vmatprep.subr.bf16.mxu0 0
        %3077 = vmatpush1.bf16.msra.mxu0 0
        %3078 = vmatprep.subr.bf16.mxu0 0
        %3079 = vmatpush1.bf16.msra.mxu0 0
        %3080 = vmatprep.subr.bf16.mxu0 0
        %3081 = vmatpush1.bf16.msra.mxu0 0
        %3082 = vmatprep.subr.bf16.mxu0 0
        %3083 = vmatpush1.bf16.msra.mxu0 0
        %3084 = vmatprep.subr.bf16.mxu0 0
        %3085 = vmatpush1.bf16.msra.mxu0 0
        %3086 = vmatprep.subr.bf16.mxu0 0
        %3087 = vmatpush1.bf16.msra.mxu0 0
        %3088 = vmatprep.mubr.bf16.mxu0 0
        %3089 = vmatmul.mubr.bf16.gmra.mrb[0].mxu0 %v3009
        %v3090 = vpop.f32.mrb[0].mxu0
        %v3091 = vadd.f32 0.0, %v3090
        %v3092 = vpop.f32.mrb[0].mxu0
        %v3093 = vpop.f32.mrb[0].mxu0
        %v3094 = vadd.f32 0.0, %v3093
        %v3095 = vpop.f32.mrb[0].mxu0
        %3096 = vmatprep.mubr.bf16.mxu0 0
        %3097 = vmatmul.mubr.bf16.gmra.mrb[0].mxu0 %v3012
        %v3098 = vpop.f32.mrb[0].mxu0
        %v3099 = vadd.f32 0.0, %v3098
        %v3100 = vpop.f32.mrb[0].mxu0
        %v3101 = vpop.f32.mrb[0].mxu0
        %v3102 = vadd.f32 0.0, %v3101
        %v3103 = vpop.f32.mrb[0].mxu0
        %3104 = vmatprep.mubr.bf16.mxu0 0
        %3105 = vmatmul.mubr.bf16.gmra.mrb[0].mxu0 %v3015
        %v3106 = vpop.f32.mrb[0].mxu0
        %v3107 = vadd.f32 0.0, %v3106
        %v3108 = vpop.f32.mrb[0].mxu0
        %v3109 = vpop.f32.mrb[0].mxu0
        %v3110 = vadd.f32 0.0, %v3109
        %v3111 = vpop.f32.mrb[0].mxu0
        %3112 = vmatprep.mubr.bf16.mxu0 0
        %3113 = vmatmul.mubr.bf16.gmra.mrb[0].mxu0 %v3018
        %v3114 = vpop.f32.mrb[0].mxu0
        %v3115 = vadd.f32 0.0, %v3114
        %v3116 = vpop.f32.mrb[0].mxu0
        %v3117 = vpop.f32.mrb[0].mxu0
        %v3118 = vadd.f32 0.0, %v3117
        %v3119 = vpop.f32.mrb[0].mxu0
        %3120 = vmatprep.mubr.bf16.mxu0 0
        %3121 = vmatmul.mubr.bf16.gmra.mrb[0].mxu0 %v3021
        %v3122 = vpop.f32.mrb[0].mxu0
        %v3123 = vadd.f32 0.0, %v3122
        %v3124 = vpop.f32.mrb[0].mxu0
        %v3125 = vpop.f32.mrb[0].mxu0
        %v3126 = vadd.f32 0.0, %v3125
        %v3127 = vpop.f32.mrb[0].mxu0
        %3128 = vmatprep.mubr.bf16.mxu0 0
        %3129 = vmatmul.mubr.bf16.gmra.mrb[0].mxu0 %v3024
        %v3130 = vpop.f32.mrb[0].mxu0
        %v3131 = vadd.f32 0.0, %v3130
        %v3132 = vpop.f32.mrb[0].mxu0
        %v3133 = vpop.f32.mrb[0].mxu0
        %v3134 = vadd.f32 0.0, %v3133
        %v3135 = vpop.f32.mrb[0].mxu0
        %3136 = vmatprep.mubr.bf16.mxu0 0
        %3137 = vmatmul.mubr.bf16.gmra.mrb[0].mxu0 %v3027
        %v3138 = vpop.f32.mrb[0].mxu0
        %v3139 = vadd.f32 0.0, %v3138
        %v3140 = vpop.f32.mrb[0].mxu0
        %v3141 = vpop.f32.mrb[0].mxu0
        %v3142 = vadd.f32 0.0, %v3141
        %v3143 = vpop.f32.mrb[0].mxu0
        %3144 = vmatprep.mubr.bf16.mxu0 0
        %3145 = vmatmul.mubr.bf16.gmra.mrb[0].mxu0 %v3030
        %v3146 = vpop.f32.mrb[0].mxu0
        %v3147 = vadd.f32 0.0, %v3146
        %v3148 = vpop.f32.mrb[0].mxu0
        %v3149 = vpop.f32.mrb[0].mxu0
        %v3150 = vadd.f32 0.0, %v3149
        %v3151 = vpop.f32.mrb[0].mxu0
        %3152 = vmatprep.mubr.bf16.mxu0 0
        %3153 = vmatmul.mubr.bf16.gmra.mrb[0].mxu0 %v3033
        %v3154 = vpop.f32.mrb[0].mxu0
        %v3155 = vadd.f32 0.0, %v3154
        %v3156 = vpop.f32.mrb[0].mxu0
        %v3157 = vpop.f32.mrb[0].mxu0
        %v3158 = vadd.f32 0.0, %v3157
        %v3159 = vpop.f32.mrb[0].mxu0
        %3160 = vmatprep.mubr.bf16.mxu0 0
        %3161 = vmatmul.mubr.bf16.gmra.mrb[0].mxu0 %v3036
        %v3162 = vpop.f32.mrb[0].mxu0
        %v3163 = vadd.f32 0.0, %v3162
        %v3164 = vpop.f32.mrb[0].mxu0
        %v3165 = vpop.f32.mrb[0].mxu0
        %v3166 = vadd.f32 0.0, %v3165
        %v3167 = vpop.f32.mrb[0].mxu0
        %3168 = vmatprep.mubr.bf16.mxu0 0
        %3169 = vmatmul.mubr.bf16.gmra.mrb[0].mxu0 %v3039
        %v3170 = vpop.f32.mrb[0].mxu0
        %v3171 = vadd.f32 0.0, %v3170
        %v3172 = vpop.f32.mrb[0].mxu0
        %v3173 = vpop.f32.mrb[0].mxu0
        %v3174 = vadd.f32 0.0, %v3173
        %v3175 = vpop.f32.mrb[0].mxu0
        %3176 = vmatprep.mubr.bf16.mxu0 0
        %3177 = vmatmul.mubr.bf16.gmra.mrb[0].mxu0 %v3042
        %v3178 = vpop.f32.mrb[0].mxu0
        %v3179 = vadd.f32 0.0, %v3178
        %v3180 = vpop.f32.mrb[0].mxu0
        %v3181 = vpop.f32.mrb[0].mxu0
        %v3182 = vadd.f32 0.0, %v3181
        %v3183 = vpop.f32.mrb[0].mxu0
        %3184 = vmatprep.mubr.bf16.mxu0 0
        %3185 = vmatmul.mubr.bf16.gmra.mrb[0].mxu0 %v3045
        %v3186 = vpop.f32.mrb[0].mxu0
        %v3187 = vadd.f32 0.0, %v3186
        %v3188 = vpop.f32.mrb[0].mxu0
        %v3189 = vpop.f32.mrb[0].mxu0
        %v3190 = vadd.f32 0.0, %v3189
        %v3191 = vpop.f32.mrb[0].mxu0
        %3192 = vmatprep.mubr.bf16.mxu0 0
        %3193 = vmatmul.mubr.bf16.gmra.mrb[0].mxu0 %v3048
        %v3194 = vpop.f32.mrb[0].mxu0
        %v3195 = vadd.f32 0.0, %v3194
        %v3196 = vpop.f32.mrb[0].mxu0
        %v3197 = vpop.f32.mrb[0].mxu0
        %v3198 = vadd.f32 0.0, %v3197
        %v3199 = vpop.f32.mrb[0].mxu0
        %3200 = vmatprep.mubr.bf16.mxu0 0
        %3201 = vmatmul.mubr.bf16.gmra.mrb[0].mxu0 %v3051
        %v3202 = vpop.f32.mrb[0].mxu0
        %v3203 = vadd.f32 0.0, %v3202
        %v3204 = vpop.f32.mrb[0].mxu0
        %v3205 = vpop.f32.mrb[0].mxu0
        %v3206 = vadd.f32 0.0, %v3205
        %v3207 = vpop.f32.mrb[0].mxu0
        %3208 = vmatprep.mubr.bf16.mxu0 0
        %3209 = vmatmul.mubr.bf16.gmra.mrb[0].mxu0 %v3054
        %v3210 = vpop.f32.mrb[0].mxu0
        %v3211 = vadd.f32 0.0, %v3210
        %v3212 = vpop.f32.mrb[0].mxu0
        %v3213 = vpop.f32.mrb[0].mxu0
        %v3214 = vadd.f32 0.0, %v3213
        %v3215 = vpop.f32.mrb[0].mxu0
        %3216 = vdwg.mxu0
        %v3217 = vadd.f32 %v2527, %v3091
        %v3218 = vadd.f32 %v2528, %v3094
        %v3219 = vadd.f32 %v2529, %v3099
        %v3220 = vadd.f32 %v2530, %v3102
        %v3221 = vadd.f32 %v2531, %v3107
        %v3222 = vadd.f32 %v2532, %v3110
        %v3223 = vadd.f32 %v2533, %v3115
        %v3224 = vadd.f32 %v2534, %v3118
        %v3225 = vadd.f32 %v2535, %v3123
        %v3226 = vadd.f32 %v2536, %v3126
        %v3227 = vadd.f32 %v2537, %v3131
        %v3228 = vadd.f32 %v2538, %v3134
        %v3229 = vadd.f32 %v2539, %v3139
        %v3230 = vadd.f32 %v2540, %v3142
        %v3231 = vadd.f32 %v2541, %v3147
        %v3232 = vadd.f32 %v2542, %v3150
        %v3233 = vadd.f32 %v2543, %v3155
        %v3234 = vadd.f32 %v2544, %v3158
        %v3235 = vadd.f32 %v2545, %v3163
        %v3236 = vadd.f32 %v2546, %v3166
        %v3237 = vadd.f32 %v2547, %v3171
        %v3238 = vadd.f32 %v2548, %v3174
        %v3239 = vadd.f32 %v2549, %v3179
        %v3240 = vadd.f32 %v2550, %v3182
        %v3241 = vadd.f32 %v2551, %v3187
        %v3242 = vadd.f32 %v2552, %v3190
        %v3243 = vadd.f32 %v2553, %v3195
        %v3244 = vadd.f32 %v2554, %v3198
        %v3245 = vadd.f32 %v2555, %v3203
        %v3246 = vadd.f32 %v2556, %v3206
        %v3247 = vadd.f32 %v2557, %v3211
        %v3248 = vadd.f32 %v2558, %v3214
        %3249 = vst.msk [vmem:[#allocation2] sm:$0xff] %vm186, %v3217
        %3250 = vst.msk [vmem:[#allocation2 + $0x8] sm:$0xff] %vm186, %v3218
        %3251 = vst.msk [vmem:[#allocation2 + $0x10] sm:$0xff] %vm186, %v3219
        %3252 = vst.msk [vmem:[#allocation2 + $0x18] sm:$0xff] %vm186, %v3220
        %3253 = vst.msk [vmem:[#allocation2 + $0x20] sm:$0xff] %vm186, %v3221
        %3254 = vst.msk [vmem:[#allocation2 + $0x28] sm:$0xff] %vm186, %v3222
        %3255 = vst.msk [vmem:[#allocation2 + $0x30] sm:$0xff] %vm186, %v3223
        %3256 = vst.msk [vmem:[#allocation2 + $0x38] sm:$0xff] %vm186, %v3224
        %3257 = vst.msk [vmem:[#allocation2 + $0x40] sm:$0xff] %vm186, %v3225
        %3258 = vst.msk [vmem:[#allocation2 + $0x48] sm:$0xff] %vm186, %v3226
        %3259 = vst.msk [vmem:[#allocation2 + $0x50] sm:$0xff] %vm186, %v3227
        %3260 = vst.msk [vmem:[#allocation2 + $0x58] sm:$0xff] %vm186, %v3228
        %3261 = vst.msk [vmem:[#allocation2 + $0x60] sm:$0xff] %vm186, %v3229
        %3262 = vst.msk [vmem:[#allocation2 + $0x68] sm:$0xff] %vm186, %v3230
        %3263 = vst.msk [vmem:[#allocation2 + $0x70] sm:$0xff] %vm186, %v3231
        %3264 = vst.msk [vmem:[#allocation2 + $0x78] sm:$0xff] %vm186, %v3232
        %3265 = vst.msk [vmem:[#allocation2 + $0x80] sm:$0xff] %vm186, %v3233
        %3266 = vst.msk [vmem:[#allocation2 + $0x88] sm:$0xff] %vm186, %v3234
        %3267 = vst.msk [vmem:[#allocation2 + $0x90] sm:$0xff] %vm186, %v3235
        %3268 = vst.msk [vmem:[#allocation2 + $0x98] sm:$0xff] %vm186, %v3236
        %3269 = vst.msk [vmem:[#allocation2 + $0xa0] sm:$0xff] %vm186, %v3237
        %3270 = vst.msk [vmem:[#allocation2 + $0xa8] sm:$0xff] %vm186, %v3238
        %3271 = vst.msk [vmem:[#allocation2 + $0xb0] sm:$0xff] %vm186, %v3239
        %3272 = vst.msk [vmem:[#allocation2 + $0xb8] sm:$0xff] %vm186, %v3240
        %3273 = vst.msk [vmem:[#allocation2 + $0xc0] sm:$0xff] %vm186, %v3241
        %3274 = vst.msk [vmem:[#allocation2 + $0xc8] sm:$0xff] %vm186, %v3242
        %3275 = vst.msk [vmem:[#allocation2 + $0xd0] sm:$0xff] %vm186, %v3243
        %3276 = vst.msk [vmem:[#allocation2 + $0xd8] sm:$0xff] %vm186, %v3244
        %3277 = vst.msk [vmem:[#allocation2 + $0xe0] sm:$0xff] %vm186, %v3245
        %3278 = vst.msk [vmem:[#allocation2 + $0xe8] sm:$0xff] %vm186, %v3246
        %3279 = vst.msk [vmem:[#allocation2 + $0xf0] sm:$0xff] %vm186, %v3247
        %3280 = vst.msk [vmem:[#allocation2 + $0xf8] sm:$0xff] %vm186, %v3248
        %v3281 = vld [vmem:[%s2044] sm:$0xe]
        %v3282 = vld [vmem:[%s2044 + $0x4] sm:$0xf]
        %v3283 = vld [vmem:[%s2044 + $0x8] sm:$0x1]
        %v3284 = vld [vmem:[%s2044 + $0xc] sm:$0xe]
        %v3285 = vld [vmem:[%s2044 + $0x10] sm:$0xf]
        %v3286 = vld [vmem:[%s2044 + $0x14] sm:$0x1]
        %v3287 = vld [vmem:[%s2044 + $0x18] sm:$0xe]
        %v3288 = vld [vmem:[%s2044 + $0x1c] sm:$0xf]
        %v3289 = vld [vmem:[%s2044 + $0x20] sm:$0x1]
        %v3290 = vld [vmem:[%s2044 + $0x24] sm:$0xe]
        %v3291 = vld [vmem:[%s2044 + $0x28] sm:$0xf]
        %v3292 = vld [vmem:[%s2044 + $0x2c] sm:$0x1]
        %v3293 = vld [vmem:[%s2044 + $0x30] sm:$0xe]
        %v3294 = vld [vmem:[%s2044 + $0x34] sm:$0xf]
        %v3295 = vld [vmem:[%s2044 + $0x38] sm:$0x1]
        %v3296 = vld [vmem:[%s2044 + $0x3c] sm:$0xe]
        %v3297 = vld [vmem:[%s2044 + $0x40] sm:$0xf]
        %v3298 = vld [vmem:[%s2044 + $0x44] sm:$0x1]
        %v3299 = vld [vmem:[%s2044 + $0x48] sm:$0xe]
        %v3300 = vld [vmem:[%s2044 + $0x4c] sm:$0xf]
        %v3301 = vld [vmem:[%s2044 + $0x50] sm:$0x1]
        %v3302 = vld [vmem:[%s2044 + $0x54] sm:$0xe]
        %v3303 = vld [vmem:[%s2044 + $0x58] sm:$0xf]
        %v3304 = vld [vmem:[%s2044 + $0x5c] sm:$0x1]
        %v3305 = vld [vmem:[%s2044 + $0x60] sm:$0xe]
        %v3306 = vld [vmem:[%s2044 + $0x64] sm:$0xf]
        %v3307 = vld [vmem:[%s2044 + $0x68] sm:$0x1]
        %v3308 = vld [vmem:[%s2044 + $0x6c] sm:$0xe]
        %v3309 = vld [vmem:[%s2044 + $0x70] sm:$0xf]
        %v3310 = vld [vmem:[%s2044 + $0x74] sm:$0x1]
        %v3311 = vld [vmem:[%s2044 + $0x78] sm:$0xe]
        %v3312 = vld [vmem:[%s2044 + $0x7c] sm:$0xf]
        %v3313 = vld [vmem:[%s2044 + $0x80] sm:$0x1]
        %v3314 = vld [vmem:[%s2044 + $0x84] sm:$0xe]
        %v3315 = vld [vmem:[%s2044 + $0x88] sm:$0xf]
        %v3316 = vld [vmem:[%s2044 + $0x8c] sm:$0x1]
        %v3317 = vld [vmem:[%s2044 + $0x90] sm:$0xe]
        %v3318 = vld [vmem:[%s2044 + $0x94] sm:$0xf]
        %v3319 = vld [vmem:[%s2044 + $0x98] sm:$0x1]
        %v3320 = vld [vmem:[%s2044 + $0x9c] sm:$0xe]
        %v3321 = vld [vmem:[%s2044 + $0xa0] sm:$0xf]
        %v3322 = vld [vmem:[%s2044 + $0xa4] sm:$0x1]
        %v3323 = vld [vmem:[%s2044 + $0xa8] sm:$0xe]
        %v3324 = vld [vmem:[%s2044 + $0xac] sm:$0xf]
        %v3325 = vld [vmem:[%s2044 + $0xb0] sm:$0x1]
        %v3326 = vld [vmem:[%s2044 + $0xb4] sm:$0xe]
        %v3327 = vld [vmem:[%s2044 + $0xb8] sm:$0xf]
        %v3328 = vld [vmem:[%s2044 + $0xbc] sm:$0x1]
        %v3329 = vld [vmem:[#allocation2] sm:$0xff]
        %v3330 = vld [vmem:[#allocation2 + $0x8] sm:$0xff]
        %v3331 = vld [vmem:[#allocation2 + $0x10] sm:$0xff]
        %v3332 = vld [vmem:[#allocation2 + $0x18] sm:$0xff]
        %v3333 = vld [vmem:[#allocation2 + $0x20] sm:$0xff]
        %v3334 = vld [vmem:[#allocation2 + $0x28] sm:$0xff]
        %v3335 = vld [vmem:[#allocation2 + $0x30] sm:$0xff]
        %v3336 = vld [vmem:[#allocation2 + $0x38] sm:$0xff]
        %v3337 = vld [vmem:[#allocation2 + $0x40] sm:$0xff]
        %v3338 = vld [vmem:[#allocation2 + $0x48] sm:$0xff]
        %v3339 = vld [vmem:[#allocation2 + $0x50] sm:$0xff]
        %v3340 = vld [vmem:[#allocation2 + $0x58] sm:$0xff]
        %v3341 = vld [vmem:[#allocation2 + $0x60] sm:$0xff]
        %v3342 = vld [vmem:[#allocation2 + $0x68] sm:$0xff]
        %v3343 = vld [vmem:[#allocation2 + $0x70] sm:$0xff]
        %v3344 = vld [vmem:[#allocation2 + $0x78] sm:$0xff]
        %v3345 = vld [vmem:[#allocation2 + $0x80] sm:$0xff]
        %v3346 = vld [vmem:[#allocation2 + $0x88] sm:$0xff]
        %v3347 = vld [vmem:[#allocation2 + $0x90] sm:$0xff]
        %v3348 = vld [vmem:[#allocation2 + $0x98] sm:$0xff]
        %v3349 = vld [vmem:[#allocation2 + $0xa0] sm:$0xff]
        %v3350 = vld [vmem:[#allocation2 + $0xa8] sm:$0xff]
        %v3351 = vld [vmem:[#allocation2 + $0xb0] sm:$0xff]
        %v3352 = vld [vmem:[#allocation2 + $0xb8] sm:$0xff]
        %v3353 = vld [vmem:[#allocation2 + $0xc0] sm:$0xff]
        %v3354 = vld [vmem:[#allocation2 + $0xc8] sm:$0xff]
        %v3355 = vld [vmem:[#allocation2 + $0xd0] sm:$0xff]
        %v3356 = vld [vmem:[#allocation2 + $0xd8] sm:$0xff]
        %v3357 = vld [vmem:[#allocation2 + $0xe0] sm:$0xff]
        %v3358 = vld [vmem:[#allocation2 + $0xe8] sm:$0xff]
        %v3359 = vld [vmem:[#allocation2 + $0xf0] sm:$0xff]
        %v3360 = vld [vmem:[#allocation2 + $0xf8] sm:$0xff]
        %v3409 = vrot.slane %v3281, 5
        %v3410 = vrot.slane %v3409, 4
        %v3411 = vrot.slane %v3282, 5
        %v3412 = vsel %vm1590, %v3410, %v3411
        %v3413 = vrot.slane %v3411, 4
        %v3414 = vrot.slane %v3283, 5
        %v3415 = vsel %vm1590, %v3413, %v3414
        %v3416 = vrot.slane %v3284, 5
        %v3417 = vrot.slane %v3416, 4
        %v3418 = vrot.slane %v3285, 5
        %v3419 = vsel %vm1590, %v3417, %v3418
        %v3420 = vrot.slane %v3418, 4
        %v3421 = vrot.slane %v3286, 5
        %v3422 = vsel %vm1590, %v3420, %v3421
        %v3423 = vrot.slane %v3287, 5
        %v3424 = vrot.slane %v3423, 4
        %v3425 = vrot.slane %v3288, 5
        %v3426 = vsel %vm1590, %v3424, %v3425
        %v3427 = vrot.slane %v3425, 4
        %v3428 = vrot.slane %v3289, 5
        %v3429 = vsel %vm1590, %v3427, %v3428
        %v3430 = vrot.slane %v3290, 5
        %v3431 = vrot.slane %v3430, 4
        %v3432 = vrot.slane %v3291, 5
        %v3433 = vsel %vm1590, %v3431, %v3432
        %v3434 = vrot.slane %v3432, 4
        %v3435 = vrot.slane %v3292, 5
        %v3436 = vsel %vm1590, %v3434, %v3435
        %v3437 = vrot.slane %v3293, 5
        %v3438 = vrot.slane %v3437, 4
        %v3439 = vrot.slane %v3294, 5
        %v3440 = vsel %vm1590, %v3438, %v3439
        %v3441 = vrot.slane %v3439, 4
        %v3442 = vrot.slane %v3295, 5
        %v3443 = vsel %vm1590, %v3441, %v3442
        %v3444 = vrot.slane %v3296, 5
        %v3445 = vrot.slane %v3444, 4
        %v3446 = vrot.slane %v3297, 5
        %v3447 = vsel %vm1590, %v3445, %v3446
        %v3448 = vrot.slane %v3446, 4
        %v3449 = vrot.slane %v3298, 5
        %v3450 = vsel %vm1590, %v3448, %v3449
        %v3451 = vrot.slane %v3299, 5
        %v3452 = vrot.slane %v3451, 4
        %v3453 = vrot.slane %v3300, 5
        %v3454 = vsel %vm1590, %v3452, %v3453
        %v3455 = vrot.slane %v3453, 4
        %v3456 = vrot.slane %v3301, 5
        %v3457 = vsel %vm1590, %v3455, %v3456
        %v3458 = vrot.slane %v3302, 5
        %v3459 = vrot.slane %v3458, 4
        %v3460 = vrot.slane %v3303, 5
        %v3461 = vsel %vm1590, %v3459, %v3460
        %v3462 = vrot.slane %v3460, 4
        %v3463 = vrot.slane %v3304, 5
        %v3464 = vsel %vm1590, %v3462, %v3463
        %v3465 = vrot.slane %v3305, 5
        %v3466 = vrot.slane %v3465, 4
        %v3467 = vrot.slane %v3306, 5
        %v3468 = vsel %vm1590, %v3466, %v3467
        %v3469 = vrot.slane %v3467, 4
        %v3470 = vrot.slane %v3307, 5
        %v3471 = vsel %vm1590, %v3469, %v3470
        %v3472 = vrot.slane %v3308, 5
        %v3473 = vrot.slane %v3472, 4
        %v3474 = vrot.slane %v3309, 5
        %v3475 = vsel %vm1590, %v3473, %v3474
        %v3476 = vrot.slane %v3474, 4
        %v3477 = vrot.slane %v3310, 5
        %v3478 = vsel %vm1590, %v3476, %v3477
        %v3479 = vrot.slane %v3311, 5
        %v3480 = vrot.slane %v3479, 4
        %v3481 = vrot.slane %v3312, 5
        %v3482 = vsel %vm1590, %v3480, %v3481
        %v3483 = vrot.slane %v3481, 4
        %v3484 = vrot.slane %v3313, 5
        %v3485 = vsel %vm1590, %v3483, %v3484
        %v3486 = vrot.slane %v3314, 5
        %v3487 = vrot.slane %v3486, 4
        %v3488 = vrot.slane %v3315, 5
        %v3489 = vsel %vm1590, %v3487, %v3488
        %v3490 = vrot.slane %v3488, 4
        %v3491 = vrot.slane %v3316, 5
        %v3492 = vsel %vm1590, %v3490, %v3491
        %v3493 = vrot.slane %v3317, 5
        %v3494 = vrot.slane %v3493, 4
        %v3495 = vrot.slane %v3318, 5
        %v3496 = vsel %vm1590, %v3494, %v3495
        %v3497 = vrot.slane %v3495, 4
        %v3498 = vrot.slane %v3319, 5
        %v3499 = vsel %vm1590, %v3497, %v3498
        %v3500 = vrot.slane %v3320, 5
        %v3501 = vrot.slane %v3500, 4
        %v3502 = vrot.slane %v3321, 5
        %v3503 = vsel %vm1590, %v3501, %v3502
        %v3504 = vrot.slane %v3502, 4
        %v3505 = vrot.slane %v3322, 5
        %v3506 = vsel %vm1590, %v3504, %v3505
        %v3507 = vrot.slane %v3323, 5
        %v3508 = vrot.slane %v3507, 4
        %v3509 = vrot.slane %v3324, 5
        %v3510 = vsel %vm1590, %v3508, %v3509
        %v3511 = vrot.slane %v3509, 4
        %v3512 = vrot.slane %v3325, 5
        %v3513 = vsel %vm1590, %v3511, %v3512
        %v3514 = vrot.slane %v3326, 5
        %v3515 = vrot.slane %v3514, 4
        %v3516 = vrot.slane %v3327, 5
        %v3517 = vsel %vm1590, %v3515, %v3516
        %v3518 = vrot.slane %v3516, 4
        %v3519 = vrot.slane %v3328, 5
        %v3520 = vsel %vm1590, %v3518, %v3519
        %s3521 = scalar_lea.vmem %s1, 80
        %v3522 = vld [vmem:[%s3521] sm:$0xf]
        %v3523 = vld [vmem:[%s3521 + $0x4] sm:$0xf]
        %v3524 = vld [vmem:[%s3521 + $0x8] sm:$0xf]
        %v3525 = vld [vmem:[%s3521 + $0xc] sm:$0xf]
        %v3526 = vunpack.c.l.b16 %v3412
        %v3527 = vunpack.c.l.b16 %v3415
        %v3528 = vunpack.c.l.b16 %v3419
        %v3529 = vunpack.c.l.b16 %v3422
        %v3530 = vunpack.c.l.b16 %v3426
        %v3531 = vunpack.c.l.b16 %v3429
        %v3532 = vunpack.c.l.b16 %v3433
        %v3533 = vunpack.c.l.b16 %v3436
        %v3534 = vunpack.c.l.b16 %v3440
        %v3535 = vunpack.c.l.b16 %v3443
        %v3536 = vunpack.c.l.b16 %v3447
        %v3537 = vunpack.c.l.b16 %v3450
        %v3538 = vunpack.c.l.b16 %v3454
        %v3539 = vunpack.c.l.b16 %v3457
        %v3540 = vunpack.c.l.b16 %v3461
        %v3541 = vunpack.c.l.b16 %v3464
        %v3542 = vunpack.c.l.b16 %v3468
        %v3543 = vunpack.c.l.b16 %v3471
        %v3544 = vunpack.c.l.b16 %v3475
        %v3545 = vunpack.c.l.b16 %v3478
        %v3546 = vunpack.c.l.b16 %v3482
        %v3547 = vunpack.c.l.b16 %v3485
        %v3548 = vunpack.c.l.b16 %v3489
        %v3549 = vunpack.c.l.b16 %v3492
        %v3550 = vunpack.c.l.b16 %v3496
        %v3551 = vunpack.c.l.b16 %v3499
        %v3552 = vunpack.c.l.b16 %v3503
        %v3553 = vunpack.c.l.b16 %v3506
        %v3554 = vunpack.c.l.b16 %v3510
        %v3555 = vunpack.c.l.b16 %v3513
        %v3556 = vunpack.c.l.b16 %v3517
        %v3557 = vunpack.c.l.b16 %v3520
        %v3558 = vpack.c.b16 %v3527, %v3526
        %v3559 = vpack.c.b16 %v3529, %v3528
        %v3560 = vpack.c.b16 %v3531, %v3530
        %v3561 = vpack.c.b16 %v3533, %v3532
        %v3562 = vpack.c.b16 %v3535, %v3534
        %v3563 = vpack.c.b16 %v3537, %v3536
        %v3564 = vpack.c.b16 %v3539, %v3538
        %v3565 = vpack.c.b16 %v3541, %v3540
        %v3566 = vpack.c.b16 %v3543, %v3542
        %v3567 = vpack.c.b16 %v3545, %v3544
        %v3568 = vpack.c.b16 %v3547, %v3546
        %v3569 = vpack.c.b16 %v3549, %v3548
        %v3570 = vpack.c.b16 %v3551, %v3550
        %v3571 = vpack.c.b16 %v3553, %v3552
        %v3572 = vpack.c.b16 %v3555, %v3554
        %v3573 = vpack.c.b16 %v3557, %v3556
        %v3578 = vunpack.c.l.b16 %v3522
        %v3579 = vunpack.c.l.b16 %v3523
        %v3580 = vunpack.c.l.b16 %v3524
        %v3581 = vunpack.c.l.b16 %v3525
        %v3582 = vpack.c.b16 %v3579, %v3578
        %v3583 = vpack.c.b16 %v3581, %v3580
        %v3587 = vsel %vm186, %v3558, 0
        %v3590 = vsel %vm186, %v3559, 0
        %v3593 = vsel %vm186, %v3560, 0
        %v3596 = vsel %vm186, %v3561, 0
        %v3599 = vsel %vm186, %v3562, 0
        %v3602 = vsel %vm186, %v3563, 0
        %v3605 = vsel %vm186, %v3564, 0
        %v3608 = vsel %vm186, %v3565, 0
        %v3611 = vsel %vm186, %v3566, 0
        %v3614 = vsel %vm186, %v3567, 0
        %v3617 = vsel %vm186, %v3568, 0
        %v3620 = vsel %vm186, %v3569, 0
        %v3623 = vsel %vm186, %v3570, 0
        %v3626 = vsel %vm186, %v3571, 0
        %v3629 = vsel %vm186, %v3572, 0
        %v3632 = vsel %vm186, %v3573, 0
        %3634 = vmatprep.subr.bf16.mxu0 0
        %3635 = vmatpush1.bf16.msra.mxu0 %v3582
        %3636 = vmatprep.subr.bf16.mxu0 0
        %3637 = vmatpush1.bf16.msra.mxu0 %v3583
        %3638 = vmatprep.subr.bf16.mxu0 0
        %3639 = vmatpush1.bf16.msra.mxu0 0
        %3640 = vmatprep.subr.bf16.mxu0 0
        %3641 = vmatpush1.bf16.msra.mxu0 0
        %3642 = vmatprep.subr.bf16.mxu0 0
        %3643 = vmatpush1.bf16.msra.mxu0 0
        %3644 = vmatprep.subr.bf16.mxu0 0
        %3645 = vmatpush1.bf16.msra.mxu0 0
        %3646 = vmatprep.subr.bf16.mxu0 0
        %3647 = vmatpush1.bf16.msra.mxu0 0
        %3648 = vmatprep.subr.bf16.mxu0 0
        %3649 = vmatpush1.bf16.msra.mxu0 0
        %3650 = vmatprep.subr.bf16.mxu0 0
        %3651 = vmatpush1.bf16.msra.mxu0 0
        %3652 = vmatprep.subr.bf16.mxu0 0
        %3653 = vmatpush1.bf16.msra.mxu0 0
        %3654 = vmatprep.subr.bf16.mxu0 0
        %3655 = vmatpush1.bf16.msra.mxu0 0
        %3656 = vmatprep.subr.bf16.mxu0 0
        %3657 = vmatpush1.bf16.msra.mxu0 0
        %3658 = vmatprep.subr.bf16.mxu0 0
        %3659 = vmatpush1.bf16.msra.mxu0 0
        %3660 = vmatprep.subr.bf16.mxu0 0
        %3661 = vmatpush1.bf16.msra.mxu0 0
        %3662 = vmatprep.subr.bf16.mxu0 0
        %3663 = vmatpush1.bf16.msra.mxu0 0
        %3664 = vmatprep.subr.bf16.mxu0 0
        %3665 = vmatpush1.bf16.msra.mxu0 0
        %3666 = vmatprep.mubr.bf16.mxu0 0
        %3667 = vmatmul.mubr.bf16.gmra.mrb[0].mxu0 %v3587
        %v3668 = vpop.f32.mrb[0].mxu0
        %v3669 = vadd.f32 0.0, %v3668
        %v3670 = vpop.f32.mrb[0].mxu0
        %v3671 = vpop.f32.mrb[0].mxu0
        %v3672 = vadd.f32 0.0, %v3671
        %v3673 = vpop.f32.mrb[0].mxu0
        %3674 = vmatprep.mubr.bf16.mxu0 0
        %3675 = vmatmul.mubr.bf16.gmra.mrb[0].mxu0 %v3590
        %v3676 = vpop.f32.mrb[0].mxu0
        %v3677 = vadd.f32 0.0, %v3676
        %v3678 = vpop.f32.mrb[0].mxu0
        %v3679 = vpop.f32.mrb[0].mxu0
        %v3680 = vadd.f32 0.0, %v3679
        %v3681 = vpop.f32.mrb[0].mxu0
        %3682 = vmatprep.mubr.bf16.mxu0 0
        %3683 = vmatmul.mubr.bf16.gmra.mrb[0].mxu0 %v3593
        %v3684 = vpop.f32.mrb[0].mxu0
        %v3685 = vadd.f32 0.0, %v3684
        %v3686 = vpop.f32.mrb[0].mxu0
        %v3687 = vpop.f32.mrb[0].mxu0
        %v3688 = vadd.f32 0.0, %v3687
        %v3689 = vpop.f32.mrb[0].mxu0
        %3690 = vmatprep.mubr.bf16.mxu0 0
        %3691 = vmatmul.mubr.bf16.gmra.mrb[0].mxu0 %v3596
        %v3692 = vpop.f32.mrb[0].mxu0
        %v3693 = vadd.f32 0.0, %v3692
        %v3694 = vpop.f32.mrb[0].mxu0
        %v3695 = vpop.f32.mrb[0].mxu0
        %v3696 = vadd.f32 0.0, %v3695
        %v3697 = vpop.f32.mrb[0].mxu0
        %3698 = vmatprep.mubr.bf16.mxu0 0
        %3699 = vmatmul.mubr.bf16.gmra.mrb[0].mxu0 %v3599
        %v3700 = vpop.f32.mrb[0].mxu0
        %v3701 = vadd.f32 0.0, %v3700
        %v3702 = vpop.f32.mrb[0].mxu0
        %v3703 = vpop.f32.mrb[0].mxu0
        %v3704 = vadd.f32 0.0, %v3703
        %v3705 = vpop.f32.mrb[0].mxu0
        %3706 = vmatprep.mubr.bf16.mxu0 0
        %3707 = vmatmul.mubr.bf16.gmra.mrb[0].mxu0 %v3602
        %v3708 = vpop.f32.mrb[0].mxu0
        %v3709 = vadd.f32 0.0, %v3708
        %v3710 = vpop.f32.mrb[0].mxu0
        %v3711 = vpop.f32.mrb[0].mxu0
        %v3712 = vadd.f32 0.0, %v3711
        %v3713 = vpop.f32.mrb[0].mxu0
        %3714 = vmatprep.mubr.bf16.mxu0 0
        %3715 = vmatmul.mubr.bf16.gmra.mrb[0].mxu0 %v3605
        %v3716 = vpop.f32.mrb[0].mxu0
        %v3717 = vadd.f32 0.0, %v3716
        %v3718 = vpop.f32.mrb[0].mxu0
        %v3719 = vpop.f32.mrb[0].mxu0
        %v3720 = vadd.f32 0.0, %v3719
        %v3721 = vpop.f32.mrb[0].mxu0
        %3722 = vmatprep.mubr.bf16.mxu0 0
        %3723 = vmatmul.mubr.bf16.gmra.mrb[0].mxu0 %v3608
        %v3724 = vpop.f32.mrb[0].mxu0
        %v3725 = vadd.f32 0.0, %v3724
        %v3726 = vpop.f32.mrb[0].mxu0
        %v3727 = vpop.f32.mrb[0].mxu0
        %v3728 = vadd.f32 0.0, %v3727
        %v3729 = vpop.f32.mrb[0].mxu0
        %3730 = vmatprep.mubr.bf16.mxu0 0
        %3731 = vmatmul.mubr.bf16.gmra.mrb[0].mxu0 %v3611
        %v3732 = vpop.f32.mrb[0].mxu0
        %v3733 = vadd.f32 0.0, %v3732
        %v3734 = vpop.f32.mrb[0].mxu0
        %v3735 = vpop.f32.mrb[0].mxu0
        %v3736 = vadd.f32 0.0, %v3735
        %v3737 = vpop.f32.mrb[0].mxu0
        %3738 = vmatprep.mubr.bf16.mxu0 0
        %3739 = vmatmul.mubr.bf16.gmra.mrb[0].mxu0 %v3614
        %v3740 = vpop.f32.mrb[0].mxu0
        %v3741 = vadd.f32 0.0, %v3740
        %v3742 = vpop.f32.mrb[0].mxu0
        %v3743 = vpop.f32.mrb[0].mxu0
        %v3744 = vadd.f32 0.0, %v3743
        %v3745 = vpop.f32.mrb[0].mxu0
        %3746 = vmatprep.mubr.bf16.mxu0 0
        %3747 = vmatmul.mubr.bf16.gmra.mrb[0].mxu0 %v3617
        %v3748 = vpop.f32.mrb[0].mxu0
        %v3749 = vadd.f32 0.0, %v3748
        %v3750 = vpop.f32.mrb[0].mxu0
        %v3751 = vpop.f32.mrb[0].mxu0
        %v3752 = vadd.f32 0.0, %v3751
        %v3753 = vpop.f32.mrb[0].mxu0
        %3754 = vmatprep.mubr.bf16.mxu0 0
        %3755 = vmatmul.mubr.bf16.gmra.mrb[0].mxu0 %v3620
        %v3756 = vpop.f32.mrb[0].mxu0
        %v3757 = vadd.f32 0.0, %v3756
        %v3758 = vpop.f32.mrb[0].mxu0
        %v3759 = vpop.f32.mrb[0].mxu0
        %v3760 = vadd.f32 0.0, %v3759
        %v3761 = vpop.f32.mrb[0].mxu0
        %3762 = vmatprep.mubr.bf16.mxu0 0
        %3763 = vmatmul.mubr.bf16.gmra.mrb[0].mxu0 %v3623
        %v3764 = vpop.f32.mrb[0].mxu0
        %v3765 = vadd.f32 0.0, %v3764
        %v3766 = vpop.f32.mrb[0].mxu0
        %v3767 = vpop.f32.mrb[0].mxu0
        %v3768 = vadd.f32 0.0, %v3767
        %v3769 = vpop.f32.mrb[0].mxu0
        %3770 = vmatprep.mubr.bf16.mxu0 0
        %3771 = vmatmul.mubr.bf16.gmra.mrb[0].mxu0 %v3626
        %v3772 = vpop.f32.mrb[0].mxu0
        %v3773 = vadd.f32 0.0, %v3772
        %v3774 = vpop.f32.mrb[0].mxu0
        %v3775 = vpop.f32.mrb[0].mxu0
        %v3776 = vadd.f32 0.0, %v3775
        %v3777 = vpop.f32.mrb[0].mxu0
        %3778 = vmatprep.mubr.bf16.mxu0 0
        %3779 = vmatmul.mubr.bf16.gmra.mrb[0].mxu0 %v3629
        %v3780 = vpop.f32.mrb[0].mxu0
        %v3781 = vadd.f32 0.0, %v3780
        %v3782 = vpop.f32.mrb[0].mxu0
        %v3783 = vpop.f32.mrb[0].mxu0
        %v3784 = vadd.f32 0.0, %v3783
        %v3785 = vpop.f32.mrb[0].mxu0
        %3786 = vmatprep.mubr.bf16.mxu0 0
        %3787 = vmatmul.mubr.bf16.gmra.mrb[0].mxu0 %v3632
        %v3788 = vpop.f32.mrb[0].mxu0
        %v3789 = vadd.f32 0.0, %v3788
        %v3790 = vpop.f32.mrb[0].mxu0
        %v3791 = vpop.f32.mrb[0].mxu0
        %v3792 = vadd.f32 0.0, %v3791
        %v3793 = vpop.f32.mrb[0].mxu0
        %3794 = vdwg.mxu0
        %v3795 = vadd.f32 %v3329, %v3669
        %v3796 = vadd.f32 %v3330, %v3672
        %v3797 = vadd.f32 %v3331, %v3677
        %v3798 = vadd.f32 %v3332, %v3680
        %v3799 = vadd.f32 %v3333, %v3685
        %v3800 = vadd.f32 %v3334, %v3688
        %v3801 = vadd.f32 %v3335, %v3693
        %v3802 = vadd.f32 %v3336, %v3696
        %v3803 = vadd.f32 %v3337, %v3701
        %v3804 = vadd.f32 %v3338, %v3704
        %v3805 = vadd.f32 %v3339, %v3709
        %v3806 = vadd.f32 %v3340, %v3712
        %v3807 = vadd.f32 %v3341, %v3717
        %v3808 = vadd.f32 %v3342, %v3720
        %v3809 = vadd.f32 %v3343, %v3725
        %v3810 = vadd.f32 %v3344, %v3728
        %v3811 = vadd.f32 %v3345, %v3733
        %v3812 = vadd.f32 %v3346, %v3736
        %v3813 = vadd.f32 %v3347, %v3741
        %v3814 = vadd.f32 %v3348, %v3744
        %v3815 = vadd.f32 %v3349, %v3749
        %v3816 = vadd.f32 %v3350, %v3752
        %v3817 = vadd.f32 %v3351, %v3757
        %v3818 = vadd.f32 %v3352, %v3760
        %v3819 = vadd.f32 %v3353, %v3765
        %v3820 = vadd.f32 %v3354, %v3768
        %v3821 = vadd.f32 %v3355, %v3773
        %v3822 = vadd.f32 %v3356, %v3776
        %v3823 = vadd.f32 %v3357, %v3781
        %v3824 = vadd.f32 %v3358, %v3784
        %v3825 = vadd.f32 %v3359, %v3789
        %v3826 = vadd.f32 %v3360, %v3792
        %3827 = vst.msk [vmem:[#allocation2] sm:$0xff] %vm186, %v3795
        %3828 = vst.msk [vmem:[#allocation2 + $0x8] sm:$0xff] %vm186, %v3796
        %3829 = vst.msk [vmem:[#allocation2 + $0x10] sm:$0xff] %vm186, %v3797
        %3830 = vst.msk [vmem:[#allocation2 + $0x18] sm:$0xff] %vm186, %v3798
        %3831 = vst.msk [vmem:[#allocation2 + $0x20] sm:$0xff] %vm186, %v3799
        %3832 = vst.msk [vmem:[#allocation2 + $0x28] sm:$0xff] %vm186, %v3800
        %3833 = vst.msk [vmem:[#allocation2 + $0x30] sm:$0xff] %vm186, %v3801
        %3834 = vst.msk [vmem:[#allocation2 + $0x38] sm:$0xff] %vm186, %v3802
        %3835 = vst.msk [vmem:[#allocation2 + $0x40] sm:$0xff] %vm186, %v3803
        %3836 = vst.msk [vmem:[#allocation2 + $0x48] sm:$0xff] %vm186, %v3804
        %3837 = vst.msk [vmem:[#allocation2 + $0x50] sm:$0xff] %vm186, %v3805
        %3838 = vst.msk [vmem:[#allocation2 + $0x58] sm:$0xff] %vm186, %v3806
        %3839 = vst.msk [vmem:[#allocation2 + $0x60] sm:$0xff] %vm186, %v3807
        %3840 = vst.msk [vmem:[#allocation2 + $0x68] sm:$0xff] %vm186, %v3808
        %3841 = vst.msk [vmem:[#allocation2 + $0x70] sm:$0xff] %vm186, %v3809
        %3842 = vst.msk [vmem:[#allocation2 + $0x78] sm:$0xff] %vm186, %v3810
        %3843 = vst.msk [vmem:[#allocation2 + $0x80] sm:$0xff] %vm186, %v3811
        %3844 = vst.msk [vmem:[#allocation2 + $0x88] sm:$0xff] %vm186, %v3812
        %3845 = vst.msk [vmem:[#allocation2 + $0x90] sm:$0xff] %vm186, %v3813
        %3846 = vst.msk [vmem:[#allocation2 + $0x98] sm:$0xff] %vm186, %v3814
        %3847 = vst.msk [vmem:[#allocation2 + $0xa0] sm:$0xff] %vm186, %v3815
        %3848 = vst.msk [vmem:[#allocation2 + $0xa8] sm:$0xff] %vm186, %v3816
        %3849 = vst.msk [vmem:[#allocation2 + $0xb0] sm:$0xff] %vm186, %v3817
        %3850 = vst.msk [vmem:[#allocation2 + $0xb8] sm:$0xff] %vm186, %v3818
        %3851 = vst.msk [vmem:[#allocation2 + $0xc0] sm:$0xff] %vm186, %v3819
        %3852 = vst.msk [vmem:[#allocation2 + $0xc8] sm:$0xff] %vm186, %v3820
        %3853 = vst.msk [vmem:[#allocation2 + $0xd0] sm:$0xff] %vm186, %v3821
        %3854 = vst.msk [vmem:[#allocation2 + $0xd8] sm:$0xff] %vm186, %v3822
        %3855 = vst.msk [vmem:[#allocation2 + $0xe0] sm:$0xff] %vm186, %v3823
        %3856 = vst.msk [vmem:[#allocation2 + $0xe8] sm:$0xff] %vm186, %v3824
        %3857 = vst.msk [vmem:[#allocation2 + $0xf0] sm:$0xff] %vm186, %v3825
        %3858 = vst.msk [vmem:[#allocation2 + $0xf8] sm:$0xff] %vm186, %v3826
        %s3859 = sadd.s32 %s185, 2
        %s3860 = smul.u32 %s3859, 3
        %s3861 = smul.addr %s3860, 4
        %s3862 = scalar_lea.vmem %s182, %s3861
        %v3863 = vld [vmem:[%s3862] sm:$0xf]
        %v3864 = vld [vmem:[%s3862 + $0x4] sm:$0xf]
        %v3865 = vld [vmem:[%s3862 + $0xc] sm:$0xf]
        %v3866 = vld [vmem:[%s3862 + $0x10] sm:$0xf]
        %v3867 = vld [vmem:[%s3862 + $0x18] sm:$0xf]
        %v3868 = vld [vmem:[%s3862 + $0x1c] sm:$0xf]
        %v3869 = vld [vmem:[%s3862 + $0x24] sm:$0xf]
        %v3870 = vld [vmem:[%s3862 + $0x28] sm:$0xf]
        %v3871 = vld [vmem:[%s3862 + $0x30] sm:$0xf]
        %v3872 = vld [vmem:[%s3862 + $0x34] sm:$0xf]
        %v3873 = vld [vmem:[%s3862 + $0x3c] sm:$0xf]
        %v3874 = vld [vmem:[%s3862 + $0x40] sm:$0xf]
        %v3875 = vld [vmem:[%s3862 + $0x48] sm:$0xf]
        %v3876 = vld [vmem:[%s3862 + $0x4c] sm:$0xf]
        %v3877 = vld [vmem:[%s3862 + $0x54] sm:$0xf]
        %v3878 = vld [vmem:[%s3862 + $0x58] sm:$0xf]
        %v3879 = vld [vmem:[%s3862 + $0x60] sm:$0xf]
        %v3880 = vld [vmem:[%s3862 + $0x64] sm:$0xf]
        %v3881 = vld [vmem:[%s3862 + $0x6c] sm:$0xf]
        %v3882 = vld [vmem:[%s3862 + $0x70] sm:$0xf]
        %v3883 = vld [vmem:[%s3862 + $0x78] sm:$0xf]
        %v3884 = vld [vmem:[%s3862 + $0x7c] sm:$0xf]
        %v3885 = vld [vmem:[%s3862 + $0x84] sm:$0xf]
        %v3886 = vld [vmem:[%s3862 + $0x88] sm:$0xf]
        %v3887 = vld [vmem:[%s3862 + $0x90] sm:$0xf]
        %v3888 = vld [vmem:[%s3862 + $0x94] sm:$0xf]
        %v3889 = vld [vmem:[%s3862 + $0x9c] sm:$0xf]
        %v3890 = vld [vmem:[%s3862 + $0xa0] sm:$0xf]
        %v3891 = vld [vmem:[%s3862 + $0xa8] sm:$0xf]
        %v3892 = vld [vmem:[%s3862 + $0xac] sm:$0xf]
        %v3893 = vld [vmem:[%s3862 + $0xb4] sm:$0xf]
        %v3894 = vld [vmem:[%s3862 + $0xb8] sm:$0xf]
        %v3895 = vld [vmem:[#allocation2] sm:$0xff]
        %v3896 = vld [vmem:[#allocation2 + $0x8] sm:$0xff]
        %v3897 = vld [vmem:[#allocation2 + $0x10] sm:$0xff]
        %v3898 = vld [vmem:[#allocation2 + $0x18] sm:$0xff]
        %v3899 = vld [vmem:[#allocation2 + $0x20] sm:$0xff]
        %v3900 = vld [vmem:[#allocation2 + $0x28] sm:$0xff]
        %v3901 = vld [vmem:[#allocation2 + $0x30] sm:$0xff]
        %v3902 = vld [vmem:[#allocation2 + $0x38] sm:$0xff]
        %v3903 = vld [vmem:[#allocation2 + $0x40] sm:$0xff]
        %v3904 = vld [vmem:[#allocation2 + $0x48] sm:$0xff]
        %v3905 = vld [vmem:[#allocation2 + $0x50] sm:$0xff]
        %v3906 = vld [vmem:[#allocation2 + $0x58] sm:$0xff]
        %v3907 = vld [vmem:[#allocation2 + $0x60] sm:$0xff]
        %v3908 = vld [vmem:[#allocation2 + $0x68] sm:$0xff]
        %v3909 = vld [vmem:[#allocation2 + $0x70] sm:$0xff]
        %v3910 = vld [vmem:[#allocation2 + $0x78] sm:$0xff]
        %v3911 = vld [vmem:[#allocation2 + $0x80] sm:$0xff]
        %v3912 = vld [vmem:[#allocation2 + $0x88] sm:$0xff]
        %v3913 = vld [vmem:[#allocation2 + $0x90] sm:$0xff]
        %v3914 = vld [vmem:[#allocation2 + $0x98] sm:$0xff]
        %v3915 = vld [vmem:[#allocation2 + $0xa0] sm:$0xff]
        %v3916 = vld [vmem:[#allocation2 + $0xa8] sm:$0xff]
        %v3917 = vld [vmem:[#allocation2 + $0xb0] sm:$0xff]
        %v3918 = vld [vmem:[#allocation2 + $0xb8] sm:$0xff]
        %v3919 = vld [vmem:[#allocation2 + $0xc0] sm:$0xff]
        %v3920 = vld [vmem:[#allocation2 + $0xc8] sm:$0xff]
        %v3921 = vld [vmem:[#allocation2 + $0xd0] sm:$0xff]
        %v3922 = vld [vmem:[#allocation2 + $0xd8] sm:$0xff]
        %v3923 = vld [vmem:[#allocation2 + $0xe0] sm:$0xff]
        %v3924 = vld [vmem:[#allocation2 + $0xe8] sm:$0xff]
        %v3925 = vld [vmem:[#allocation2 + $0xf0] sm:$0xff]
        %v3926 = vld [vmem:[#allocation2 + $0xf8] sm:$0xff]
        %s3927 = scalar_lea.vmem %s1, 96
        %v3928 = vld [vmem:[%s3927] sm:$0xf]
        %v3929 = vld [vmem:[%s3927 + $0x4] sm:$0xf]
        %v3930 = vld [vmem:[%s3927 + $0x8] sm:$0xf]
        %v3931 = vld [vmem:[%s3927 + $0xc] sm:$0xf]
        %v3964 = vunpack.c.l.b16 %v3863
        %v3965 = vunpack.c.l.b16 %v3864
        %v3966 = vunpack.c.l.b16 %v3865
        %v3967 = vunpack.c.l.b16 %v3866
        %v3968 = vunpack.c.l.b16 %v3867
        %v3969 = vunpack.c.l.b16 %v3868
        %v3970 = vunpack.c.l.b16 %v3869
        %v3971 = vunpack.c.l.b16 %v3870
        %v3972 = vunpack.c.l.b16 %v3871
        %v3973 = vunpack.c.l.b16 %v3872
        %v3974 = vunpack.c.l.b16 %v3873
        %v3975 = vunpack.c.l.b16 %v3874
        %v3976 = vunpack.c.l.b16 %v3875
        %v3977 = vunpack.c.l.b16 %v3876
        %v3978 = vunpack.c.l.b16 %v3877
        %v3979 = vunpack.c.l.b16 %v3878
        %v3980 = vunpack.c.l.b16 %v3879
        %v3981 = vunpack.c.l.b16 %v3880
        %v3982 = vunpack.c.l.b16 %v3881
        %v3983 = vunpack.c.l.b16 %v3882
        %v3984 = vunpack.c.l.b16 %v3883
        %v3985 = vunpack.c.l.b16 %v3884
        %v3986 = vunpack.c.l.b16 %v3885
        %v3987 = vunpack.c.l.b16 %v3886
        %v3988 = vunpack.c.l.b16 %v3887
        %v3989 = vunpack.c.l.b16 %v3888
        %v3990 = vunpack.c.l.b16 %v3889
        %v3991 = vunpack.c.l.b16 %v3890
        %v3992 = vunpack.c.l.b16 %v3891
        %v3993 = vunpack.c.l.b16 %v3892
        %v3994 = vunpack.c.l.b16 %v3893
        %v3995 = vunpack.c.l.b16 %v3894
        %v3996 = vpack.c.b16 %v3965, %v3964
        %v3997 = vpack.c.b16 %v3967, %v3966
        %v3998 = vpack.c.b16 %v3969, %v3968
        %v3999 = vpack.c.b16 %v3971, %v3970
        %v4000 = vpack.c.b16 %v3973, %v3972
        %v4001 = vpack.c.b16 %v3975, %v3974
        %v4002 = vpack.c.b16 %v3977, %v3976
        %v4003 = vpack.c.b16 %v3979, %v3978
        %v4004 = vpack.c.b16 %v3981, %v3980
        %v4005 = vpack.c.b16 %v3983, %v3982
        %v4006 = vpack.c.b16 %v3985, %v3984
        %v4007 = vpack.c.b16 %v3987, %v3986
        %v4008 = vpack.c.b16 %v3989, %v3988
        %v4009 = vpack.c.b16 %v3991, %v3990
        %v4010 = vpack.c.b16 %v3993, %v3992
        %v4011 = vpack.c.b16 %v3995, %v3994
        %v4016 = vunpack.c.l.b16 %v3928
        %v4017 = vunpack.c.l.b16 %v3929
        %v4018 = vunpack.c.l.b16 %v3930
        %v4019 = vunpack.c.l.b16 %v3931
        %v4020 = vpack.c.b16 %v4017, %v4016
        %v4021 = vpack.c.b16 %v4019, %v4018
        %v4025 = vsel %vm186, %v3996, 0
        %v4028 = vsel %vm186, %v3997, 0
        %v4031 = vsel %vm186, %v3998, 0
        %v4034 = vsel %vm186, %v3999, 0
        %v4037 = vsel %vm186, %v4000, 0
        %v4040 = vsel %vm186, %v4001, 0
        %v4043 = vsel %vm186, %v4002, 0
        %v4046 = vsel %vm186, %v4003, 0
        %v4049 = vsel %vm186, %v4004, 0
        %v4052 = vsel %vm186, %v4005, 0
        %v4055 = vsel %vm186, %v4006, 0
        %v4058 = vsel %vm186, %v4007, 0
        %v4061 = vsel %vm186, %v4008, 0
        %v4064 = vsel %vm186, %v4009, 0
        %v4067 = vsel %vm186, %v4010, 0
        %v4070 = vsel %vm186, %v4011, 0
        %4072 = vmatprep.subr.bf16.mxu0 0
        %4073 = vmatpush1.bf16.msra.mxu0 %v4020
        %4074 = vmatprep.subr.bf16.mxu0 0
        %4075 = vmatpush1.bf16.msra.mxu0 %v4021
        %4076 = vmatprep.subr.bf16.mxu0 0
        %4077 = vmatpush1.bf16.msra.mxu0 0
        %4078 = vmatprep.subr.bf16.mxu0 0
        %4079 = vmatpush1.bf16.msra.mxu0 0
        %4080 = vmatprep.subr.bf16.mxu0 0
        %4081 = vmatpush1.bf16.msra.mxu0 0
        %4082 = vmatprep.subr.bf16.mxu0 0
        %4083 = vmatpush1.bf16.msra.mxu0 0
        %4084 = vmatprep.subr.bf16.mxu0 0
        %4085 = vmatpush1.bf16.msra.mxu0 0
        %4086 = vmatprep.subr.bf16.mxu0 0
        %4087 = vmatpush1.bf16.msra.mxu0 0
        %4088 = vmatprep.subr.bf16.mxu0 0
        %4089 = vmatpush1.bf16.msra.mxu0 0
        %4090 = vmatprep.subr.bf16.mxu0 0
        %4091 = vmatpush1.bf16.msra.mxu0 0
        %4092 = vmatprep.subr.bf16.mxu0 0
        %4093 = vmatpush1.bf16.msra.mxu0 0
        %4094 = vmatprep.subr.bf16.mxu0 0
        %4095 = vmatpush1.bf16.msra.mxu0 0
        %4096 = vmatprep.subr.bf16.mxu0 0
        %4097 = vmatpush1.bf16.msra.mxu0 0
        %4098 = vmatprep.subr.bf16.mxu0 0
        %4099 = vmatpush1.bf16.msra.mxu0 0
        %4100 = vmatprep.subr.bf16.mxu0 0
        %4101 = vmatpush1.bf16.msra.mxu0 0
        %4102 = vmatprep.subr.bf16.mxu0 0
        %4103 = vmatpush1.bf16.msra.mxu0 0
        %4104 = vmatprep.mubr.bf16.mxu0 0
        %4105 = vmatmul.mubr.bf16.gmra.mrb[0].mxu0 %v4025
        %v4106 = vpop.f32.mrb[0].mxu0
        %v4107 = vadd.f32 0.0, %v4106
        %v4108 = vpop.f32.mrb[0].mxu0
        %v4109 = vpop.f32.mrb[0].mxu0
        %v4110 = vadd.f32 0.0, %v4109
        %v4111 = vpop.f32.mrb[0].mxu0
        %4112 = vmatprep.mubr.bf16.mxu0 0
        %4113 = vmatmul.mubr.bf16.gmra.mrb[0].mxu0 %v4028
        %v4114 = vpop.f32.mrb[0].mxu0
        %v4115 = vadd.f32 0.0, %v4114
        %v4116 = vpop.f32.mrb[0].mxu0
        %v4117 = vpop.f32.mrb[0].mxu0
        %v4118 = vadd.f32 0.0, %v4117
        %v4119 = vpop.f32.mrb[0].mxu0
        %4120 = vmatprep.mubr.bf16.mxu0 0
        %4121 = vmatmul.mubr.bf16.gmra.mrb[0].mxu0 %v4031
        %v4122 = vpop.f32.mrb[0].mxu0
        %v4123 = vadd.f32 0.0, %v4122
        %v4124 = vpop.f32.mrb[0].mxu0
        %v4125 = vpop.f32.mrb[0].mxu0
        %v4126 = vadd.f32 0.0, %v4125
        %v4127 = vpop.f32.mrb[0].mxu0
        %4128 = vmatprep.mubr.bf16.mxu0 0
        %4129 = vmatmul.mubr.bf16.gmra.mrb[0].mxu0 %v4034
        %v4130 = vpop.f32.mrb[0].mxu0
        %v4131 = vadd.f32 0.0, %v4130
        %v4132 = vpop.f32.mrb[0].mxu0
        %v4133 = vpop.f32.mrb[0].mxu0
        %v4134 = vadd.f32 0.0, %v4133
        %v4135 = vpop.f32.mrb[0].mxu0
        %4136 = vmatprep.mubr.bf16.mxu0 0
        %4137 = vmatmul.mubr.bf16.gmra.mrb[0].mxu0 %v4037
        %v4138 = vpop.f32.mrb[0].mxu0
        %v4139 = vadd.f32 0.0, %v4138
        %v4140 = vpop.f32.mrb[0].mxu0
        %v4141 = vpop.f32.mrb[0].mxu0
        %v4142 = vadd.f32 0.0, %v4141
        %v4143 = vpop.f32.mrb[0].mxu0
        %4144 = vmatprep.mubr.bf16.mxu0 0
        %4145 = vmatmul.mubr.bf16.gmra.mrb[0].mxu0 %v4040
        %v4146 = vpop.f32.mrb[0].mxu0
        %v4147 = vadd.f32 0.0, %v4146
        %v4148 = vpop.f32.mrb[0].mxu0
        %v4149 = vpop.f32.mrb[0].mxu0
        %v4150 = vadd.f32 0.0, %v4149
        %v4151 = vpop.f32.mrb[0].mxu0
        %4152 = vmatprep.mubr.bf16.mxu0 0
        %4153 = vmatmul.mubr.bf16.gmra.mrb[0].mxu0 %v4043
        %v4154 = vpop.f32.mrb[0].mxu0
        %v4155 = vadd.f32 0.0, %v4154
        %v4156 = vpop.f32.mrb[0].mxu0
        %v4157 = vpop.f32.mrb[0].mxu0
        %v4158 = vadd.f32 0.0, %v4157
        %v4159 = vpop.f32.mrb[0].mxu0
        %4160 = vmatprep.mubr.bf16.mxu0 0
        %4161 = vmatmul.mubr.bf16.gmra.mrb[0].mxu0 %v4046
        %v4162 = vpop.f32.mrb[0].mxu0
        %v4163 = vadd.f32 0.0, %v4162
        %v4164 = vpop.f32.mrb[0].mxu0
        %v4165 = vpop.f32.mrb[0].mxu0
        %v4166 = vadd.f32 0.0, %v4165
        %v4167 = vpop.f32.mrb[0].mxu0
        %4168 = vmatprep.mubr.bf16.mxu0 0
        %4169 = vmatmul.mubr.bf16.gmra.mrb[0].mxu0 %v4049
        %v4170 = vpop.f32.mrb[0].mxu0
        %v4171 = vadd.f32 0.0, %v4170
        %v4172 = vpop.f32.mrb[0].mxu0
        %v4173 = vpop.f32.mrb[0].mxu0
        %v4174 = vadd.f32 0.0, %v4173
        %v4175 = vpop.f32.mrb[0].mxu0
        %4176 = vmatprep.mubr.bf16.mxu0 0
        %4177 = vmatmul.mubr.bf16.gmra.mrb[0].mxu0 %v4052
        %v4178 = vpop.f32.mrb[0].mxu0
        %v4179 = vadd.f32 0.0, %v4178
        %v4180 = vpop.f32.mrb[0].mxu0
        %v4181 = vpop.f32.mrb[0].mxu0
        %v4182 = vadd.f32 0.0, %v4181
        %v4183 = vpop.f32.mrb[0].mxu0
        %4184 = vmatprep.mubr.bf16.mxu0 0
        %4185 = vmatmul.mubr.bf16.gmra.mrb[0].mxu0 %v4055
        %v4186 = vpop.f32.mrb[0].mxu0
        %v4187 = vadd.f32 0.0, %v4186
        %v4188 = vpop.f32.mrb[0].mxu0
        %v4189 = vpop.f32.mrb[0].mxu0
        %v4190 = vadd.f32 0.0, %v4189
        %v4191 = vpop.f32.mrb[0].mxu0
        %4192 = vmatprep.mubr.bf16.mxu0 0
        %4193 = vmatmul.mubr.bf16.gmra.mrb[0].mxu0 %v4058
        %v4194 = vpop.f32.mrb[0].mxu0
        %v4195 = vadd.f32 0.0, %v4194
        %v4196 = vpop.f32.mrb[0].mxu0
        %v4197 = vpop.f32.mrb[0].mxu0
        %v4198 = vadd.f32 0.0, %v4197
        %v4199 = vpop.f32.mrb[0].mxu0
        %4200 = vmatprep.mubr.bf16.mxu0 0
        %4201 = vmatmul.mubr.bf16.gmra.mrb[0].mxu0 %v4061
        %v4202 = vpop.f32.mrb[0].mxu0
        %v4203 = vadd.f32 0.0, %v4202
        %v4204 = vpop.f32.mrb[0].mxu0
        %v4205 = vpop.f32.mrb[0].mxu0
        %v4206 = vadd.f32 0.0, %v4205
        %v4207 = vpop.f32.mrb[0].mxu0
        %4208 = vmatprep.mubr.bf16.mxu0 0
        %4209 = vmatmul.mubr.bf16.gmra.mrb[0].mxu0 %v4064
        %v4210 = vpop.f32.mrb[0].mxu0
        %v4211 = vadd.f32 0.0, %v4210
        %v4212 = vpop.f32.mrb[0].mxu0
        %v4213 = vpop.f32.mrb[0].mxu0
        %v4214 = vadd.f32 0.0, %v4213
        %v4215 = vpop.f32.mrb[0].mxu0
        %4216 = vmatprep.mubr.bf16.mxu0 0
        %4217 = vmatmul.mubr.bf16.gmra.mrb[0].mxu0 %v4067
        %v4218 = vpop.f32.mrb[0].mxu0
        %v4219 = vadd.f32 0.0, %v4218
        %v4220 = vpop.f32.mrb[0].mxu0
        %v4221 = vpop.f32.mrb[0].mxu0
        %v4222 = vadd.f32 0.0, %v4221
        %v4223 = vpop.f32.mrb[0].mxu0
        %4224 = vmatprep.mubr.bf16.mxu0 0
        %4225 = vmatmul.mubr.bf16.gmra.mrb[0].mxu0 %v4070
        %v4226 = vpop.f32.mrb[0].mxu0
        %v4227 = vadd.f32 0.0, %v4226
        %v4228 = vpop.f32.mrb[0].mxu0
        %v4229 = vpop.f32.mrb[0].mxu0
        %v4230 = vadd.f32 0.0, %v4229
        %v4231 = vpop.f32.mrb[0].mxu0
        %4232 = vdwg.mxu0
        %v4233 = vadd.f32 %v3895, %v4107
        %v4234 = vadd.f32 %v3896, %v4110
        %v4235 = vadd.f32 %v3897, %v4115
        %v4236 = vadd.f32 %v3898, %v4118
        %v4237 = vadd.f32 %v3899, %v4123
        %v4238 = vadd.f32 %v3900, %v4126
        %v4239 = vadd.f32 %v3901, %v4131
        %v4240 = vadd.f32 %v3902, %v4134
        %v4241 = vadd.f32 %v3903, %v4139
        %v4242 = vadd.f32 %v3904, %v4142
        %v4243 = vadd.f32 %v3905, %v4147
        %v4244 = vadd.f32 %v3906, %v4150
        %v4245 = vadd.f32 %v3907, %v4155
        %v4246 = vadd.f32 %v3908, %v4158
        %v4247 = vadd.f32 %v3909, %v4163
        %v4248 = vadd.f32 %v3910, %v4166
        %v4249 = vadd.f32 %v3911, %v4171
        %v4250 = vadd.f32 %v3912, %v4174
        %v4251 = vadd.f32 %v3913, %v4179
        %v4252 = vadd.f32 %v3914, %v4182
        %v4253 = vadd.f32 %v3915, %v4187
        %v4254 = vadd.f32 %v3916, %v4190
        %v4255 = vadd.f32 %v3917, %v4195
        %v4256 = vadd.f32 %v3918, %v4198
        %v4257 = vadd.f32 %v3919, %v4203
        %v4258 = vadd.f32 %v3920, %v4206
        %v4259 = vadd.f32 %v3921, %v4211
        %v4260 = vadd.f32 %v3922, %v4214
        %v4261 = vadd.f32 %v3923, %v4219
        %v4262 = vadd.f32 %v3924, %v4222
        %v4263 = vadd.f32 %v3925, %v4227
        %v4264 = vadd.f32 %v3926, %v4230
        %4265 = vst.msk [vmem:[#allocation2] sm:$0xff] %vm186, %v4233
        %4266 = vst.msk [vmem:[#allocation2 + $0x8] sm:$0xff] %vm186, %v4234
        %4267 = vst.msk [vmem:[#allocation2 + $0x10] sm:$0xff] %vm186, %v4235
        %4268 = vst.msk [vmem:[#allocation2 + $0x18] sm:$0xff] %vm186, %v4236
        %4269 = vst.msk [vmem:[#allocation2 + $0x20] sm:$0xff] %vm186, %v4237
        %4270 = vst.msk [vmem:[#allocation2 + $0x28] sm:$0xff] %vm186, %v4238
        %4271 = vst.msk [vmem:[#allocation2 + $0x30] sm:$0xff] %vm186, %v4239
        %4272 = vst.msk [vmem:[#allocation2 + $0x38] sm:$0xff] %vm186, %v4240
        %4273 = vst.msk [vmem:[#allocation2 + $0x40] sm:$0xff] %vm186, %v4241
        %4274 = vst.msk [vmem:[#allocation2 + $0x48] sm:$0xff] %vm186, %v4242
        %4275 = vst.msk [vmem:[#allocation2 + $0x50] sm:$0xff] %vm186, %v4243
        %4276 = vst.msk [vmem:[#allocation2 + $0x58] sm:$0xff] %vm186, %v4244
        %4277 = vst.msk [vmem:[#allocation2 + $0x60] sm:$0xff] %vm186, %v4245
        %4278 = vst.msk [vmem:[#allocation2 + $0x68] sm:$0xff] %vm186, %v4246
        %4279 = vst.msk [vmem:[#allocation2 + $0x70] sm:$0xff] %vm186, %v4247
        %4280 = vst.msk [vmem:[#allocation2 + $0x78] sm:$0xff] %vm186, %v4248
        %4281 = vst.msk [vmem:[#allocation2 + $0x80] sm:$0xff] %vm186, %v4249
        %4282 = vst.msk [vmem:[#allocation2 + $0x88] sm:$0xff] %vm186, %v4250
        %4283 = vst.msk [vmem:[#allocation2 + $0x90] sm:$0xff] %vm186, %v4251
        %4284 = vst.msk [vmem:[#allocation2 + $0x98] sm:$0xff] %vm186, %v4252
        %4285 = vst.msk [vmem:[#allocation2 + $0xa0] sm:$0xff] %vm186, %v4253
        %4286 = vst.msk [vmem:[#allocation2 + $0xa8] sm:$0xff] %vm186, %v4254
        %4287 = vst.msk [vmem:[#allocation2 + $0xb0] sm:$0xff] %vm186, %v4255
        %4288 = vst.msk [vmem:[#allocation2 + $0xb8] sm:$0xff] %vm186, %v4256
        %4289 = vst.msk [vmem:[#allocation2 + $0xc0] sm:$0xff] %vm186, %v4257
        %4290 = vst.msk [vmem:[#allocation2 + $0xc8] sm:$0xff] %vm186, %v4258
        %4291 = vst.msk [vmem:[#allocation2 + $0xd0] sm:$0xff] %vm186, %v4259
        %4292 = vst.msk [vmem:[#allocation2 + $0xd8] sm:$0xff] %vm186, %v4260
        %4293 = vst.msk [vmem:[#allocation2 + $0xe0] sm:$0xff] %vm186, %v4261
        %4294 = vst.msk [vmem:[#allocation2 + $0xe8] sm:$0xff] %vm186, %v4262
        %4295 = vst.msk [vmem:[#allocation2 + $0xf0] sm:$0xff] %vm186, %v4263
        %4296 = vst.msk [vmem:[#allocation2 + $0xf8] sm:$0xff] %vm186, %v4264
        %v4297 = vld [vmem:[%s3862] sm:$0xf]
        %v4298 = vld [vmem:[%s3862 + $0x4] sm:$0xf]
        %v4299 = vld [vmem:[%s3862 + $0x8] sm:$0x1]
        %v4300 = vld [vmem:[%s3862 + $0xc] sm:$0xf]
        %v4301 = vld [vmem:[%s3862 + $0x10] sm:$0xf]
        %v4302 = vld [vmem:[%s3862 + $0x14] sm:$0x1]
        %v4303 = vld [vmem:[%s3862 + $0x18] sm:$0xf]
        %v4304 = vld [vmem:[%s3862 + $0x1c] sm:$0xf]
        %v4305 = vld [vmem:[%s3862 + $0x20] sm:$0x1]
        %v4306 = vld [vmem:[%s3862 + $0x24] sm:$0xf]
        %v4307 = vld [vmem:[%s3862 + $0x28] sm:$0xf]
        %v4308 = vld [vmem:[%s3862 + $0x2c] sm:$0x1]
        %v4309 = vld [vmem:[%s3862 + $0x30] sm:$0xf]
        %v4310 = vld [vmem:[%s3862 + $0x34] sm:$0xf]
        %v4311 = vld [vmem:[%s3862 + $0x38] sm:$0x1]
        %v4312 = vld [vmem:[%s3862 + $0x3c] sm:$0xf]
        %v4313 = vld [vmem:[%s3862 + $0x40] sm:$0xf]
        %v4314 = vld [vmem:[%s3862 + $0x44] sm:$0x1]
        %v4315 = vld [vmem:[%s3862 + $0x48] sm:$0xf]
        %v4316 = vld [vmem:[%s3862 + $0x4c] sm:$0xf]
        %v4317 = vld [vmem:[%s3862 + $0x50] sm:$0x1]
        %v4318 = vld [vmem:[%s3862 + $0x54] sm:$0xf]
        %v4319 = vld [vmem:[%s3862 + $0x58] sm:$0xf]
        %v4320 = vld [vmem:[%s3862 + $0x5c] sm:$0x1]
        %v4321 = vld [vmem:[%s3862 + $0x60] sm:$0xf]
        %v4322 = vld [vmem:[%s3862 + $0x64] sm:$0xf]
        %v4323 = vld [vmem:[%s3862 + $0x68] sm:$0x1]
        %v4324 = vld [vmem:[%s3862 + $0x6c] sm:$0xf]
        %v4325 = vld [vmem:[%s3862 + $0x70] sm:$0xf]
        %v4326 = vld [vmem:[%s3862 + $0x74] sm:$0x1]
        %v4327 = vld [vmem:[%s3862 + $0x78] sm:$0xf]
        %v4328 = vld [vmem:[%s3862 + $0x7c] sm:$0xf]
        %v4329 = vld [vmem:[%s3862 + $0x80] sm:$0x1]
        %v4330 = vld [vmem:[%s3862 + $0x84] sm:$0xf]
        %v4331 = vld [vmem:[%s3862 + $0x88] sm:$0xf]
        %v4332 = vld [vmem:[%s3862 + $0x8c] sm:$0x1]
        %v4333 = vld [vmem:[%s3862 + $0x90] sm:$0xf]
        %v4334 = vld [vmem:[%s3862 + $0x94] sm:$0xf]
        %v4335 = vld [vmem:[%s3862 + $0x98] sm:$0x1]
        %v4336 = vld [vmem:[%s3862 + $0x9c] sm:$0xf]
        %v4337 = vld [vmem:[%s3862 + $0xa0] sm:$0xf]
        %v4338 = vld [vmem:[%s3862 + $0xa4] sm:$0x1]
        %v4339 = vld [vmem:[%s3862 + $0xa8] sm:$0xf]
        %v4340 = vld [vmem:[%s3862 + $0xac] sm:$0xf]
        %v4341 = vld [vmem:[%s3862 + $0xb0] sm:$0x1]
        %v4342 = vld [vmem:[%s3862 + $0xb4] sm:$0xf]
        %v4343 = vld [vmem:[%s3862 + $0xb8] sm:$0xf]
        %v4344 = vld [vmem:[%s3862 + $0xbc] sm:$0x1]
        %v4345 = vld [vmem:[#allocation2] sm:$0xff]
        %v4346 = vld [vmem:[#allocation2 + $0x8] sm:$0xff]
        %v4347 = vld [vmem:[#allocation2 + $0x10] sm:$0xff]
        %v4348 = vld [vmem:[#allocation2 + $0x18] sm:$0xff]
        %v4349 = vld [vmem:[#allocation2 + $0x20] sm:$0xff]
        %v4350 = vld [vmem:[#allocation2 + $0x28] sm:$0xff]
        %v4351 = vld [vmem:[#allocation2 + $0x30] sm:$0xff]
        %v4352 = vld [vmem:[#allocation2 + $0x38] sm:$0xff]
        %v4353 = vld [vmem:[#allocation2 + $0x40] sm:$0xff]
        %v4354 = vld [vmem:[#allocation2 + $0x48] sm:$0xff]
        %v4355 = vld [vmem:[#allocation2 + $0x50] sm:$0xff]
        %v4356 = vld [vmem:[#allocation2 + $0x58] sm:$0xff]
        %v4357 = vld [vmem:[#allocation2 + $0x60] sm:$0xff]
        %v4358 = vld [vmem:[#allocation2 + $0x68] sm:$0xff]
        %v4359 = vld [vmem:[#allocation2 + $0x70] sm:$0xff]
        %v4360 = vld [vmem:[#allocation2 + $0x78] sm:$0xff]
        %v4361 = vld [vmem:[#allocation2 + $0x80] sm:$0xff]
        %v4362 = vld [vmem:[#allocation2 + $0x88] sm:$0xff]
        %v4363 = vld [vmem:[#allocation2 + $0x90] sm:$0xff]
        %v4364 = vld [vmem:[#allocation2 + $0x98] sm:$0xff]
        %v4365 = vld [vmem:[#allocation2 + $0xa0] sm:$0xff]
        %v4366 = vld [vmem:[#allocation2 + $0xa8] sm:$0xff]
        %v4367 = vld [vmem:[#allocation2 + $0xb0] sm:$0xff]
        %v4368 = vld [vmem:[#allocation2 + $0xb8] sm:$0xff]
        %v4369 = vld [vmem:[#allocation2 + $0xc0] sm:$0xff]
        %v4370 = vld [vmem:[#allocation2 + $0xc8] sm:$0xff]
        %v4371 = vld [vmem:[#allocation2 + $0xd0] sm:$0xff]
        %v4372 = vld [vmem:[#allocation2 + $0xd8] sm:$0xff]
        %v4373 = vld [vmem:[#allocation2 + $0xe0] sm:$0xff]
        %v4374 = vld [vmem:[#allocation2 + $0xe8] sm:$0xff]
        %v4375 = vld [vmem:[#allocation2 + $0xf0] sm:$0xff]
        %v4376 = vld [vmem:[#allocation2 + $0xf8] sm:$0xff]
        %v4378 = vshrl.u32 %v4297, 16
        %v4380 = vrot.slane %v4378, 4
        %v4381 = vshll.u32 %v4297, 16
        %v4383 = vrot.slane %v4381, 5
        %v4384 = vor.u32 %v4380, %v4383
        %v4385 = vrot.slane %v4384, 4
        %v4387 = vshll.u32 %v4298, 16
        %v4389 = vrot.slane %v4387, 5
        %v4390 = vsel %vm737, %v4385, %v4389
        %v4391 = vshrl.u32 %v4298, 16
        %v4393 = vrot.slane %v4391, 4
        %v4394 = vor.u32 %v4393, %v4389
        %v4395 = vrot.slane %v4394, 4
        %v4397 = vshll.u32 %v4299, 16
        %v4399 = vrot.slane %v4397, 5
        %v4400 = vsel %vm737, %v4395, %v4399
        %v4402 = vshrl.u32 %v4300, 16
        %v4404 = vrot.slane %v4402, 4
        %v4405 = vshll.u32 %v4300, 16
        %v4407 = vrot.slane %v4405, 5
        %v4408 = vor.u32 %v4404, %v4407
        %v4409 = vrot.slane %v4408, 4
        %v4411 = vshll.u32 %v4301, 16
        %v4413 = vrot.slane %v4411, 5
        %v4414 = vsel %vm737, %v4409, %v4413
        %v4415 = vshrl.u32 %v4301, 16
        %v4417 = vrot.slane %v4415, 4
        %v4418 = vor.u32 %v4417, %v4413
        %v4419 = vrot.slane %v4418, 4
        %v4421 = vshll.u32 %v4302, 16
        %v4423 = vrot.slane %v4421, 5
        %v4424 = vsel %vm737, %v4419, %v4423
        %v4426 = vshrl.u32 %v4303, 16
        %v4428 = vrot.slane %v4426, 4
        %v4429 = vshll.u32 %v4303, 16
        %v4431 = vrot.slane %v4429, 5
        %v4432 = vor.u32 %v4428, %v4431
        %v4433 = vrot.slane %v4432, 4
        %v4435 = vshll.u32 %v4304, 16
        %v4437 = vrot.slane %v4435, 5
        %v4438 = vsel %vm737, %v4433, %v4437
        %v4439 = vshrl.u32 %v4304, 16
        %v4441 = vrot.slane %v4439, 4
        %v4442 = vor.u32 %v4441, %v4437
        %v4443 = vrot.slane %v4442, 4
        %v4445 = vshll.u32 %v4305, 16
        %v4447 = vrot.slane %v4445, 5
        %v4448 = vsel %vm737, %v4443, %v4447
        %v4450 = vshrl.u32 %v4306, 16
        %v4452 = vrot.slane %v4450, 4
        %v4453 = vshll.u32 %v4306, 16
        %v4455 = vrot.slane %v4453, 5
        %v4456 = vor.u32 %v4452, %v4455
        %v4457 = vrot.slane %v4456, 4
        %v4459 = vshll.u32 %v4307, 16
        %v4461 = vrot.slane %v4459, 5
        %v4462 = vsel %vm737, %v4457, %v4461
        %v4463 = vshrl.u32 %v4307, 16
        %v4465 = vrot.slane %v4463, 4
        %v4466 = vor.u32 %v4465, %v4461
        %v4467 = vrot.slane %v4466, 4
        %v4469 = vshll.u32 %v4308, 16
        %v4471 = vrot.slane %v4469, 5
        %v4472 = vsel %vm737, %v4467, %v4471
        %v4474 = vshrl.u32 %v4309, 16
        %v4476 = vrot.slane %v4474, 4
        %v4477 = vshll.u32 %v4309, 16
        %v4479 = vrot.slane %v4477, 5
        %v4480 = vor.u32 %v4476, %v4479
        %v4481 = vrot.slane %v4480, 4
        %v4483 = vshll.u32 %v4310, 16
        %v4485 = vrot.slane %v4483, 5
        %v4486 = vsel %vm737, %v4481, %v4485
        %v4487 = vshrl.u32 %v4310, 16
        %v4489 = vrot.slane %v4487, 4
        %v4490 = vor.u32 %v4489, %v4485
        %v4491 = vrot.slane %v4490, 4
        %v4493 = vshll.u32 %v4311, 16
        %v4495 = vrot.slane %v4493, 5
        %v4496 = vsel %vm737, %v4491, %v4495
        %v4498 = vshrl.u32 %v4312, 16
        %v4500 = vrot.slane %v4498, 4
        %v4501 = vshll.u32 %v4312, 16
        %v4503 = vrot.slane %v4501, 5
        %v4504 = vor.u32 %v4500, %v4503
        %v4505 = vrot.slane %v4504, 4
        %v4507 = vshll.u32 %v4313, 16
        %v4509 = vrot.slane %v4507, 5
        %v4510 = vsel %vm737, %v4505, %v4509
        %v4511 = vshrl.u32 %v4313, 16
        %v4513 = vrot.slane %v4511, 4
        %v4514 = vor.u32 %v4513, %v4509
        %v4515 = vrot.slane %v4514, 4
        %v4517 = vshll.u32 %v4314, 16
        %v4519 = vrot.slane %v4517, 5
        %v4520 = vsel %vm737, %v4515, %v4519
        %v4522 = vshrl.u32 %v4315, 16
        %v4524 = vrot.slane %v4522, 4
        %v4525 = vshll.u32 %v4315, 16
        %v4527 = vrot.slane %v4525, 5
        %v4528 = vor.u32 %v4524, %v4527
        %v4529 = vrot.slane %v4528, 4
        %v4531 = vshll.u32 %v4316, 16
        %v4533 = vrot.slane %v4531, 5
        %v4534 = vsel %vm737, %v4529, %v4533
        %v4535 = vshrl.u32 %v4316, 16
        %v4537 = vrot.slane %v4535, 4
        %v4538 = vor.u32 %v4537, %v4533
        %v4539 = vrot.slane %v4538, 4
        %v4541 = vshll.u32 %v4317, 16
        %v4543 = vrot.slane %v4541, 5
        %v4544 = vsel %vm737, %v4539, %v4543
        %v4546 = vshrl.u32 %v4318, 16
        %v4548 = vrot.slane %v4546, 4
        %v4549 = vshll.u32 %v4318, 16
        %v4551 = vrot.slane %v4549, 5
        %v4552 = vor.u32 %v4548, %v4551
        %v4553 = vrot.slane %v4552, 4
        %v4555 = vshll.u32 %v4319, 16
        %v4557 = vrot.slane %v4555, 5
        %v4558 = vsel %vm737, %v4553, %v4557
        %v4559 = vshrl.u32 %v4319, 16
        %v4561 = vrot.slane %v4559, 4
        %v4562 = vor.u32 %v4561, %v4557
        %v4563 = vrot.slane %v4562, 4
        %v4565 = vshll.u32 %v4320, 16
        %v4567 = vrot.slane %v4565, 5
        %v4568 = vsel %vm737, %v4563, %v4567
        %v4570 = vshrl.u32 %v4321, 16
        %v4572 = vrot.slane %v4570, 4
        %v4573 = vshll.u32 %v4321, 16
        %v4575 = vrot.slane %v4573, 5
        %v4576 = vor.u32 %v4572, %v4575
        %v4577 = vrot.slane %v4576, 4
        %v4579 = vshll.u32 %v4322, 16
        %v4581 = vrot.slane %v4579, 5
        %v4582 = vsel %vm737, %v4577, %v4581
        %v4583 = vshrl.u32 %v4322, 16
        %v4585 = vrot.slane %v4583, 4
        %v4586 = vor.u32 %v4585, %v4581
        %v4587 = vrot.slane %v4586, 4
        %v4589 = vshll.u32 %v4323, 16
        %v4591 = vrot.slane %v4589, 5
        %v4592 = vsel %vm737, %v4587, %v4591
        %v4594 = vshrl.u32 %v4324, 16
        %v4596 = vrot.slane %v4594, 4
        %v4597 = vshll.u32 %v4324, 16
        %v4599 = vrot.slane %v4597, 5
        %v4600 = vor.u32 %v4596, %v4599
        %v4601 = vrot.slane %v4600, 4
        %v4603 = vshll.u32 %v4325, 16
        %v4605 = vrot.slane %v4603, 5
        %v4606 = vsel %vm737, %v4601, %v4605
        %v4607 = vshrl.u32 %v4325, 16
        %v4609 = vrot.slane %v4607, 4
        %v4610 = vor.u32 %v4609, %v4605
        %v4611 = vrot.slane %v4610, 4
        %v4613 = vshll.u32 %v4326, 16
        %v4615 = vrot.slane %v4613, 5
        %v4616 = vsel %vm737, %v4611, %v4615
        %v4618 = vshrl.u32 %v4327, 16
        %v4620 = vrot.slane %v4618, 4
        %v4621 = vshll.u32 %v4327, 16
        %v4623 = vrot.slane %v4621, 5
        %v4624 = vor.u32 %v4620, %v4623
        %v4625 = vrot.slane %v4624, 4
        %v4627 = vshll.u32 %v4328, 16
        %v4629 = vrot.slane %v4627, 5
        %v4630 = vsel %vm737, %v4625, %v4629
        %v4631 = vshrl.u32 %v4328, 16
        %v4633 = vrot.slane %v4631, 4
        %v4634 = vor.u32 %v4633, %v4629
        %v4635 = vrot.slane %v4634, 4
        %v4637 = vshll.u32 %v4329, 16
        %v4639 = vrot.slane %v4637, 5
        %v4640 = vsel %vm737, %v4635, %v4639
        %v4642 = vshrl.u32 %v4330, 16
        %v4644 = vrot.slane %v4642, 4
        %v4645 = vshll.u32 %v4330, 16
        %v4647 = vrot.slane %v4645, 5
        %v4648 = vor.u32 %v4644, %v4647
        %v4649 = vrot.slane %v4648, 4
        %v4651 = vshll.u32 %v4331, 16
        %v4653 = vrot.slane %v4651, 5
        %v4654 = vsel %vm737, %v4649, %v4653
        %v4655 = vshrl.u32 %v4331, 16
        %v4657 = vrot.slane %v4655, 4
        %v4658 = vor.u32 %v4657, %v4653
        %v4659 = vrot.slane %v4658, 4
        %v4661 = vshll.u32 %v4332, 16
        %v4663 = vrot.slane %v4661, 5
        %v4664 = vsel %vm737, %v4659, %v4663
        %v4666 = vshrl.u32 %v4333, 16
        %v4668 = vrot.slane %v4666, 4
        %v4669 = vshll.u32 %v4333, 16
        %v4671 = vrot.slane %v4669, 5
        %v4672 = vor.u32 %v4668, %v4671
        %v4673 = vrot.slane %v4672, 4
        %v4675 = vshll.u32 %v4334, 16
        %v4677 = vrot.slane %v4675, 5
        %v4678 = vsel %vm737, %v4673, %v4677
        %v4679 = vshrl.u32 %v4334, 16
        %v4681 = vrot.slane %v4679, 4
        %v4682 = vor.u32 %v4681, %v4677
        %v4683 = vrot.slane %v4682, 4
        %v4685 = vshll.u32 %v4335, 16
        %v4687 = vrot.slane %v4685, 5
        %v4688 = vsel %vm737, %v4683, %v4687
        %v4690 = vshrl.u32 %v4336, 16
        %v4692 = vrot.slane %v4690, 4
        %v4693 = vshll.u32 %v4336, 16
        %v4695 = vrot.slane %v4693, 5
        %v4696 = vor.u32 %v4692, %v4695
        %v4697 = vrot.slane %v4696, 4
        %v4699 = vshll.u32 %v4337, 16
        %v4701 = vrot.slane %v4699, 5
        %v4702 = vsel %vm737, %v4697, %v4701
        %v4703 = vshrl.u32 %v4337, 16
        %v4705 = vrot.slane %v4703, 4
        %v4706 = vor.u32 %v4705, %v4701
        %v4707 = vrot.slane %v4706, 4
        %v4709 = vshll.u32 %v4338, 16
        %v4711 = vrot.slane %v4709, 5
        %v4712 = vsel %vm737, %v4707, %v4711
        %v4714 = vshrl.u32 %v4339, 16
        %v4716 = vrot.slane %v4714, 4
        %v4717 = vshll.u32 %v4339, 16
        %v4719 = vrot.slane %v4717, 5
        %v4720 = vor.u32 %v4716, %v4719
        %v4721 = vrot.slane %v4720, 4
        %v4723 = vshll.u32 %v4340, 16
        %v4725 = vrot.slane %v4723, 5
        %v4726 = vsel %vm737, %v4721, %v4725
        %v4727 = vshrl.u32 %v4340, 16
        %v4729 = vrot.slane %v4727, 4
        %v4730 = vor.u32 %v4729, %v4725
        %v4731 = vrot.slane %v4730, 4
        %v4733 = vshll.u32 %v4341, 16
        %v4735 = vrot.slane %v4733, 5
        %v4736 = vsel %vm737, %v4731, %v4735
        %v4738 = vshrl.u32 %v4342, 16
        %v4740 = vrot.slane %v4738, 4
        %v4741 = vshll.u32 %v4342, 16
        %v4743 = vrot.slane %v4741, 5
        %v4744 = vor.u32 %v4740, %v4743
        %v4745 = vrot.slane %v4744, 4
        %v4747 = vshll.u32 %v4343, 16
        %v4749 = vrot.slane %v4747, 5
        %v4750 = vsel %vm737, %v4745, %v4749
        %v4751 = vshrl.u32 %v4343, 16
        %v4753 = vrot.slane %v4751, 4
        %v4754 = vor.u32 %v4753, %v4749
        %v4755 = vrot.slane %v4754, 4
        %v4757 = vshll.u32 %v4344, 16
        %v4759 = vrot.slane %v4757, 5
        %v4760 = vsel %vm737, %v4755, %v4759
        %s4761 = scalar_lea.vmem %s1, 112
        %v4762 = vld [vmem:[%s4761] sm:$0xf]
        %v4763 = vld [vmem:[%s4761 + $0x4] sm:$0xf]
        %v4764 = vld [vmem:[%s4761 + $0x8] sm:$0xf]
        %v4765 = vld [vmem:[%s4761 + $0xc] sm:$0xf]
        %v4766 = vunpack.c.l.b16 %v4390
        %v4767 = vunpack.c.l.b16 %v4400
        %v4768 = vunpack.c.l.b16 %v4414
        %v4769 = vunpack.c.l.b16 %v4424
        %v4770 = vunpack.c.l.b16 %v4438
        %v4771 = vunpack.c.l.b16 %v4448
        %v4772 = vunpack.c.l.b16 %v4462
        %v4773 = vunpack.c.l.b16 %v4472
        %v4774 = vunpack.c.l.b16 %v4486
        %v4775 = vunpack.c.l.b16 %v4496
        %v4776 = vunpack.c.l.b16 %v4510
        %v4777 = vunpack.c.l.b16 %v4520
        %v4778 = vunpack.c.l.b16 %v4534
        %v4779 = vunpack.c.l.b16 %v4544
        %v4780 = vunpack.c.l.b16 %v4558
        %v4781 = vunpack.c.l.b16 %v4568
        %v4782 = vunpack.c.l.b16 %v4582
        %v4783 = vunpack.c.l.b16 %v4592
        %v4784 = vunpack.c.l.b16 %v4606
        %v4785 = vunpack.c.l.b16 %v4616
        %v4786 = vunpack.c.l.b16 %v4630
        %v4787 = vunpack.c.l.b16 %v4640
        %v4788 = vunpack.c.l.b16 %v4654
        %v4789 = vunpack.c.l.b16 %v4664
        %v4790 = vunpack.c.l.b16 %v4678
        %v4791 = vunpack.c.l.b16 %v4688
        %v4792 = vunpack.c.l.b16 %v4702
        %v4793 = vunpack.c.l.b16 %v4712
        %v4794 = vunpack.c.l.b16 %v4726
        %v4795 = vunpack.c.l.b16 %v4736
        %v4796 = vunpack.c.l.b16 %v4750
        %v4797 = vunpack.c.l.b16 %v4760
        %v4798 = vpack.c.b16 %v4767, %v4766
        %v4799 = vpack.c.b16 %v4769, %v4768
        %v4800 = vpack.c.b16 %v4771, %v4770
        %v4801 = vpack.c.b16 %v4773, %v4772
        %v4802 = vpack.c.b16 %v4775, %v4774
        %v4803 = vpack.c.b16 %v4777, %v4776
        %v4804 = vpack.c.b16 %v4779, %v4778
        %v4805 = vpack.c.b16 %v4781, %v4780
        %v4806 = vpack.c.b16 %v4783, %v4782
        %v4807 = vpack.c.b16 %v4785, %v4784
        %v4808 = vpack.c.b16 %v4787, %v4786
        %v4809 = vpack.c.b16 %v4789, %v4788
        %v4810 = vpack.c.b16 %v4791, %v4790
        %v4811 = vpack.c.b16 %v4793, %v4792
        %v4812 = vpack.c.b16 %v4795, %v4794
        %v4813 = vpack.c.b16 %v4797, %v4796
        %v4818 = vunpack.c.l.b16 %v4762
        %v4819 = vunpack.c.l.b16 %v4763
        %v4820 = vunpack.c.l.b16 %v4764
        %v4821 = vunpack.c.l.b16 %v4765
        %v4822 = vpack.c.b16 %v4819, %v4818
        %v4823 = vpack.c.b16 %v4821, %v4820
        %v4827 = vsel %vm186, %v4798, 0
        %v4830 = vsel %vm186, %v4799, 0
        %v4833 = vsel %vm186, %v4800, 0
        %v4836 = vsel %vm186, %v4801, 0
        %v4839 = vsel %vm186, %v4802, 0
        %v4842 = vsel %vm186, %v4803, 0
        %v4845 = vsel %vm186, %v4804, 0
        %v4848 = vsel %vm186, %v4805, 0
        %v4851 = vsel %vm186, %v4806, 0
        %v4854 = vsel %vm186, %v4807, 0
        %v4857 = vsel %vm186, %v4808, 0
        %v4860 = vsel %vm186, %v4809, 0
        %v4863 = vsel %vm186, %v4810, 0
        %v4866 = vsel %vm186, %v4811, 0
        %v4869 = vsel %vm186, %v4812, 0
        %v4872 = vsel %vm186, %v4813, 0
        %4874 = vmatprep.subr.bf16.mxu0 0
        %4875 = vmatpush1.bf16.msra.mxu0 %v4822
        %4876 = vmatprep.subr.bf16.mxu0 0
        %4877 = vmatpush1.bf16.msra.mxu0 %v4823
        %4878 = vmatprep.subr.bf16.mxu0 0
        %4879 = vmatpush1.bf16.msra.mxu0 0
        %4880 = vmatprep.subr.bf16.mxu0 0
        %4881 = vmatpush1.bf16.msra.mxu0 0
        %4882 = vmatprep.subr.bf16.mxu0 0
        %4883 = vmatpush1.bf16.msra.mxu0 0
        %4884 = vmatprep.subr.bf16.mxu0 0
        %4885 = vmatpush1.bf16.msra.mxu0 0
        %4886 = vmatprep.subr.bf16.mxu0 0
        %4887 = vmatpush1.bf16.msra.mxu0 0
        %4888 = vmatprep.subr.bf16.mxu0 0
        %4889 = vmatpush1.bf16.msra.mxu0 0
        %4890 = vmatprep.subr.bf16.mxu0 0
        %4891 = vmatpush1.bf16.msra.mxu0 0
        %4892 = vmatprep.subr.bf16.mxu0 0
        %4893 = vmatpush1.bf16.msra.mxu0 0
        %4894 = vmatprep.subr.bf16.mxu0 0
        %4895 = vmatpush1.bf16.msra.mxu0 0
        %4896 = vmatprep.subr.bf16.mxu0 0
        %4897 = vmatpush1.bf16.msra.mxu0 0
        %4898 = vmatprep.subr.bf16.mxu0 0
        %4899 = vmatpush1.bf16.msra.mxu0 0
        %4900 = vmatprep.subr.bf16.mxu0 0
        %4901 = vmatpush1.bf16.msra.mxu0 0
        %4902 = vmatprep.subr.bf16.mxu0 0
        %4903 = vmatpush1.bf16.msra.mxu0 0
        %4904 = vmatprep.subr.bf16.mxu0 0
        %4905 = vmatpush1.bf16.msra.mxu0 0
        %4906 = vmatprep.mubr.bf16.mxu0 0
        %4907 = vmatmul.mubr.bf16.gmra.mrb[0].mxu0 %v4827
        %v4908 = vpop.f32.mrb[0].mxu0
        %v4909 = vadd.f32 0.0, %v4908
        %v4910 = vpop.f32.mrb[0].mxu0
        %v4911 = vpop.f32.mrb[0].mxu0
        %v4912 = vadd.f32 0.0, %v4911
        %v4913 = vpop.f32.mrb[0].mxu0
        %4914 = vmatprep.mubr.bf16.mxu0 0
        %4915 = vmatmul.mubr.bf16.gmra.mrb[0].mxu0 %v4830
        %v4916 = vpop.f32.mrb[0].mxu0
        %v4917 = vadd.f32 0.0, %v4916
        %v4918 = vpop.f32.mrb[0].mxu0
        %v4919 = vpop.f32.mrb[0].mxu0
        %v4920 = vadd.f32 0.0, %v4919
        %v4921 = vpop.f32.mrb[0].mxu0
        %4922 = vmatprep.mubr.bf16.mxu0 0
        %4923 = vmatmul.mubr.bf16.gmra.mrb[0].mxu0 %v4833
        %v4924 = vpop.f32.mrb[0].mxu0
        %v4925 = vadd.f32 0.0, %v4924
        %v4926 = vpop.f32.mrb[0].mxu0
        %v4927 = vpop.f32.mrb[0].mxu0
        %v4928 = vadd.f32 0.0, %v4927
        %v4929 = vpop.f32.mrb[0].mxu0
        %4930 = vmatprep.mubr.bf16.mxu0 0
        %4931 = vmatmul.mubr.bf16.gmra.mrb[0].mxu0 %v4836
        %v4932 = vpop.f32.mrb[0].mxu0
        %v4933 = vadd.f32 0.0, %v4932
        %v4934 = vpop.f32.mrb[0].mxu0
        %v4935 = vpop.f32.mrb[0].mxu0
        %v4936 = vadd.f32 0.0, %v4935
        %v4937 = vpop.f32.mrb[0].mxu0
        %4938 = vmatprep.mubr.bf16.mxu0 0
        %4939 = vmatmul.mubr.bf16.gmra.mrb[0].mxu0 %v4839
        %v4940 = vpop.f32.mrb[0].mxu0
        %v4941 = vadd.f32 0.0, %v4940
        %v4942 = vpop.f32.mrb[0].mxu0
        %v4943 = vpop.f32.mrb[0].mxu0
        %v4944 = vadd.f32 0.0, %v4943
        %v4945 = vpop.f32.mrb[0].mxu0
        %4946 = vmatprep.mubr.bf16.mxu0 0
        %4947 = vmatmul.mubr.bf16.gmra.mrb[0].mxu0 %v4842
        %v4948 = vpop.f32.mrb[0].mxu0
        %v4949 = vadd.f32 0.0, %v4948
        %v4950 = vpop.f32.mrb[0].mxu0
        %v4951 = vpop.f32.mrb[0].mxu0
        %v4952 = vadd.f32 0.0, %v4951
        %v4953 = vpop.f32.mrb[0].mxu0
        %4954 = vmatprep.mubr.bf16.mxu0 0
        %4955 = vmatmul.mubr.bf16.gmra.mrb[0].mxu0 %v4845
        %v4956 = vpop.f32.mrb[0].mxu0
        %v4957 = vadd.f32 0.0, %v4956
        %v4958 = vpop.f32.mrb[0].mxu0
        %v4959 = vpop.f32.mrb[0].mxu0
        %v4960 = vadd.f32 0.0, %v4959
        %v4961 = vpop.f32.mrb[0].mxu0
        %4962 = vmatprep.mubr.bf16.mxu0 0
        %4963 = vmatmul.mubr.bf16.gmra.mrb[0].mxu0 %v4848
        %v4964 = vpop.f32.mrb[0].mxu0
        %v4965 = vadd.f32 0.0, %v4964
        %v4966 = vpop.f32.mrb[0].mxu0
        %v4967 = vpop.f32.mrb[0].mxu0
        %v4968 = vadd.f32 0.0, %v4967
        %v4969 = vpop.f32.mrb[0].mxu0
        %4970 = vmatprep.mubr.bf16.mxu0 0
        %4971 = vmatmul.mubr.bf16.gmra.mrb[0].mxu0 %v4851
        %v4972 = vpop.f32.mrb[0].mxu0
        %v4973 = vadd.f32 0.0, %v4972
        %v4974 = vpop.f32.mrb[0].mxu0
        %v4975 = vpop.f32.mrb[0].mxu0
        %v4976 = vadd.f32 0.0, %v4975
        %v4977 = vpop.f32.mrb[0].mxu0
        %4978 = vmatprep.mubr.bf16.mxu0 0
        %4979 = vmatmul.mubr.bf16.gmra.mrb[0].mxu0 %v4854
        %v4980 = vpop.f32.mrb[0].mxu0
        %v4981 = vadd.f32 0.0, %v4980
        %v4982 = vpop.f32.mrb[0].mxu0
        %v4983 = vpop.f32.mrb[0].mxu0
        %v4984 = vadd.f32 0.0, %v4983
        %v4985 = vpop.f32.mrb[0].mxu0
        %4986 = vmatprep.mubr.bf16.mxu0 0
        %4987 = vmatmul.mubr.bf16.gmra.mrb[0].mxu0 %v4857
        %v4988 = vpop.f32.mrb[0].mxu0
        %v4989 = vadd.f32 0.0, %v4988
        %v4990 = vpop.f32.mrb[0].mxu0
        %v4991 = vpop.f32.mrb[0].mxu0
        %v4992 = vadd.f32 0.0, %v4991
        %v4993 = vpop.f32.mrb[0].mxu0
        %4994 = vmatprep.mubr.bf16.mxu0 0
        %4995 = vmatmul.mubr.bf16.gmra.mrb[0].mxu0 %v4860
        %v4996 = vpop.f32.mrb[0].mxu0
        %v4997 = vadd.f32 0.0, %v4996
        %v4998 = vpop.f32.mrb[0].mxu0
        %v4999 = vpop.f32.mrb[0].mxu0
        %v5000 = vadd.f32 0.0, %v4999
        %v5001 = vpop.f32.mrb[0].mxu0
        %5002 = vmatprep.mubr.bf16.mxu0 0
        %5003 = vmatmul.mubr.bf16.gmra.mrb[0].mxu0 %v4863
        %v5004 = vpop.f32.mrb[0].mxu0
        %v5005 = vadd.f32 0.0, %v5004
        %v5006 = vpop.f32.mrb[0].mxu0
        %v5007 = vpop.f32.mrb[0].mxu0
        %v5008 = vadd.f32 0.0, %v5007
        %v5009 = vpop.f32.mrb[0].mxu0
        %5010 = vmatprep.mubr.bf16.mxu0 0
        %5011 = vmatmul.mubr.bf16.gmra.mrb[0].mxu0 %v4866
        %v5012 = vpop.f32.mrb[0].mxu0
        %v5013 = vadd.f32 0.0, %v5012
        %v5014 = vpop.f32.mrb[0].mxu0
        %v5015 = vpop.f32.mrb[0].mxu0
        %v5016 = vadd.f32 0.0, %v5015
        %v5017 = vpop.f32.mrb[0].mxu0
        %5018 = vmatprep.mubr.bf16.mxu0 0
        %5019 = vmatmul.mubr.bf16.gmra.mrb[0].mxu0 %v4869
        %v5020 = vpop.f32.mrb[0].mxu0
        %v5021 = vadd.f32 0.0, %v5020
        %v5022 = vpop.f32.mrb[0].mxu0
        %v5023 = vpop.f32.mrb[0].mxu0
        %v5024 = vadd.f32 0.0, %v5023
        %v5025 = vpop.f32.mrb[0].mxu0
        %5026 = vmatprep.mubr.bf16.mxu0 0
        %5027 = vmatmul.mubr.bf16.gmra.mrb[0].mxu0 %v4872
        %v5028 = vpop.f32.mrb[0].mxu0
        %v5029 = vadd.f32 0.0, %v5028
        %v5030 = vpop.f32.mrb[0].mxu0
        %v5031 = vpop.f32.mrb[0].mxu0
        %v5032 = vadd.f32 0.0, %v5031
        %v5033 = vpop.f32.mrb[0].mxu0
        %5034 = vdwg.mxu0
        %v5035 = vadd.f32 %v4345, %v4909
        %v5036 = vadd.f32 %v4346, %v4912
        %v5037 = vadd.f32 %v4347, %v4917
        %v5038 = vadd.f32 %v4348, %v4920
        %v5039 = vadd.f32 %v4349, %v4925
        %v5040 = vadd.f32 %v4350, %v4928
        %v5041 = vadd.f32 %v4351, %v4933
        %v5042 = vadd.f32 %v4352, %v4936
        %v5043 = vadd.f32 %v4353, %v4941
        %v5044 = vadd.f32 %v4354, %v4944
        %v5045 = vadd.f32 %v4355, %v4949
        %v5046 = vadd.f32 %v4356, %v4952
        %v5047 = vadd.f32 %v4357, %v4957
        %v5048 = vadd.f32 %v4358, %v4960
        %v5049 = vadd.f32 %v4359, %v4965
        %v5050 = vadd.f32 %v4360, %v4968
        %v5051 = vadd.f32 %v4361, %v4973
        %v5052 = vadd.f32 %v4362, %v4976
        %v5053 = vadd.f32 %v4363, %v4981
        %v5054 = vadd.f32 %v4364, %v4984
        %v5055 = vadd.f32 %v4365, %v4989
        %v5056 = vadd.f32 %v4366, %v4992
        %v5057 = vadd.f32 %v4367, %v4997
        %v5058 = vadd.f32 %v4368, %v5000
        %v5059 = vadd.f32 %v4369, %v5005
        %v5060 = vadd.f32 %v4370, %v5008
        %v5061 = vadd.f32 %v4371, %v5013
        %v5062 = vadd.f32 %v4372, %v5016
        %v5063 = vadd.f32 %v4373, %v5021
        %v5064 = vadd.f32 %v4374, %v5024
        %v5065 = vadd.f32 %v4375, %v5029
        %v5066 = vadd.f32 %v4376, %v5032
        %5067 = vst.msk [vmem:[#allocation2] sm:$0xff] %vm186, %v5035
        %5068 = vst.msk [vmem:[#allocation2 + $0x8] sm:$0xff] %vm186, %v5036
        %5069 = vst.msk [vmem:[#allocation2 + $0x10] sm:$0xff] %vm186, %v5037
        %5070 = vst.msk [vmem:[#allocation2 + $0x18] sm:$0xff] %vm186, %v5038
        %5071 = vst.msk [vmem:[#allocation2 + $0x20] sm:$0xff] %vm186, %v5039
        %5072 = vst.msk [vmem:[#allocation2 + $0x28] sm:$0xff] %vm186, %v5040
        %5073 = vst.msk [vmem:[#allocation2 + $0x30] sm:$0xff] %vm186, %v5041
        %5074 = vst.msk [vmem:[#allocation2 + $0x38] sm:$0xff] %vm186, %v5042
        %5075 = vst.msk [vmem:[#allocation2 + $0x40] sm:$0xff] %vm186, %v5043
        %5076 = vst.msk [vmem:[#allocation2 + $0x48] sm:$0xff] %vm186, %v5044
        %5077 = vst.msk [vmem:[#allocation2 + $0x50] sm:$0xff] %vm186, %v5045
        %5078 = vst.msk [vmem:[#allocation2 + $0x58] sm:$0xff] %vm186, %v5046
        %5079 = vst.msk [vmem:[#allocation2 + $0x60] sm:$0xff] %vm186, %v5047
        %5080 = vst.msk [vmem:[#allocation2 + $0x68] sm:$0xff] %vm186, %v5048
        %5081 = vst.msk [vmem:[#allocation2 + $0x70] sm:$0xff] %vm186, %v5049
        %5082 = vst.msk [vmem:[#allocation2 + $0x78] sm:$0xff] %vm186, %v5050
        %5083 = vst.msk [vmem:[#allocation2 + $0x80] sm:$0xff] %vm186, %v5051
        %5084 = vst.msk [vmem:[#allocation2 + $0x88] sm:$0xff] %vm186, %v5052
        %5085 = vst.msk [vmem:[#allocation2 + $0x90] sm:$0xff] %vm186, %v5053
        %5086 = vst.msk [vmem:[#allocation2 + $0x98] sm:$0xff] %vm186, %v5054
        %5087 = vst.msk [vmem:[#allocation2 + $0xa0] sm:$0xff] %vm186, %v5055
        %5088 = vst.msk [vmem:[#allocation2 + $0xa8] sm:$0xff] %vm186, %v5056
        %5089 = vst.msk [vmem:[#allocation2 + $0xb0] sm:$0xff] %vm186, %v5057
        %5090 = vst.msk [vmem:[#allocation2 + $0xb8] sm:$0xff] %vm186, %v5058
        %5091 = vst.msk [vmem:[#allocation2 + $0xc0] sm:$0xff] %vm186, %v5059
        %5092 = vst.msk [vmem:[#allocation2 + $0xc8] sm:$0xff] %vm186, %v5060
        %5093 = vst.msk [vmem:[#allocation2 + $0xd0] sm:$0xff] %vm186, %v5061
        %5094 = vst.msk [vmem:[#allocation2 + $0xd8] sm:$0xff] %vm186, %v5062
        %5095 = vst.msk [vmem:[#allocation2 + $0xe0] sm:$0xff] %vm186, %v5063
        %5096 = vst.msk [vmem:[#allocation2 + $0xe8] sm:$0xff] %vm186, %v5064
        %5097 = vst.msk [vmem:[#allocation2 + $0xf0] sm:$0xff] %vm186, %v5065
        %5098 = vst.msk [vmem:[#allocation2 + $0xf8] sm:$0xff] %vm186, %v5066
        %v5099 = vld [vmem:[%s3862] sm:$0xe]
        %v5100 = vld [vmem:[%s3862 + $0x4] sm:$0xf]
        %v5101 = vld [vmem:[%s3862 + $0x8] sm:$0x1]
        %v5102 = vld [vmem:[%s3862 + $0xc] sm:$0xe]
        %v5103 = vld [vmem:[%s3862 + $0x10] sm:$0xf]
        %v5104 = vld [vmem:[%s3862 + $0x14] sm:$0x1]
        %v5105 = vld [vmem:[%s3862 + $0x18] sm:$0xe]
        %v5106 = vld [vmem:[%s3862 + $0x1c] sm:$0xf]
        %v5107 = vld [vmem:[%s3862 + $0x20] sm:$0x1]
        %v5108 = vld [vmem:[%s3862 + $0x24] sm:$0xe]
        %v5109 = vld [vmem:[%s3862 + $0x28] sm:$0xf]
        %v5110 = vld [vmem:[%s3862 + $0x2c] sm:$0x1]
        %v5111 = vld [vmem:[%s3862 + $0x30] sm:$0xe]
        %v5112 = vld [vmem:[%s3862 + $0x34] sm:$0xf]
        %v5113 = vld [vmem:[%s3862 + $0x38] sm:$0x1]
        %v5114 = vld [vmem:[%s3862 + $0x3c] sm:$0xe]
        %v5115 = vld [vmem:[%s3862 + $0x40] sm:$0xf]
        %v5116 = vld [vmem:[%s3862 + $0x44] sm:$0x1]
        %v5117 = vld [vmem:[%s3862 + $0x48] sm:$0xe]
        %v5118 = vld [vmem:[%s3862 + $0x4c] sm:$0xf]
        %v5119 = vld [vmem:[%s3862 + $0x50] sm:$0x1]
        %v5120 = vld [vmem:[%s3862 + $0x54] sm:$0xe]
        %v5121 = vld [vmem:[%s3862 + $0x58] sm:$0xf]
        %v5122 = vld [vmem:[%s3862 + $0x5c] sm:$0x1]
        %v5123 = vld [vmem:[%s3862 + $0x60] sm:$0xe]
        %v5124 = vld [vmem:[%s3862 + $0x64] sm:$0xf]
        %v5125 = vld [vmem:[%s3862 + $0x68] sm:$0x1]
        %v5126 = vld [vmem:[%s3862 + $0x6c] sm:$0xe]
        %v5127 = vld [vmem:[%s3862 + $0x70] sm:$0xf]
        %v5128 = vld [vmem:[%s3862 + $0x74] sm:$0x1]
        %v5129 = vld [vmem:[%s3862 + $0x78] sm:$0xe]
        %v5130 = vld [vmem:[%s3862 + $0x7c] sm:$0xf]
        %v5131 = vld [vmem:[%s3862 + $0x80] sm:$0x1]
        %v5132 = vld [vmem:[%s3862 + $0x84] sm:$0xe]
        %v5133 = vld [vmem:[%s3862 + $0x88] sm:$0xf]
        %v5134 = vld [vmem:[%s3862 + $0x8c] sm:$0x1]
        %v5135 = vld [vmem:[%s3862 + $0x90] sm:$0xe]
        %v5136 = vld [vmem:[%s3862 + $0x94] sm:$0xf]
        %v5137 = vld [vmem:[%s3862 + $0x98] sm:$0x1]
        %v5138 = vld [vmem:[%s3862 + $0x9c] sm:$0xe]
        %v5139 = vld [vmem:[%s3862 + $0xa0] sm:$0xf]
        %v5140 = vld [vmem:[%s3862 + $0xa4] sm:$0x1]
        %v5141 = vld [vmem:[%s3862 + $0xa8] sm:$0xe]
        %v5142 = vld [vmem:[%s3862 + $0xac] sm:$0xf]
        %v5143 = vld [vmem:[%s3862 + $0xb0] sm:$0x1]
        %v5144 = vld [vmem:[%s3862 + $0xb4] sm:$0xe]
        %v5145 = vld [vmem:[%s3862 + $0xb8] sm:$0xf]
        %v5146 = vld [vmem:[%s3862 + $0xbc] sm:$0x1]
        %v5147 = vld [vmem:[#allocation2] sm:$0xff]
        %v5148 = vld [vmem:[#allocation2 + $0x8] sm:$0xff]
        %v5149 = vld [vmem:[#allocation2 + $0x10] sm:$0xff]
        %v5150 = vld [vmem:[#allocation2 + $0x18] sm:$0xff]
        %v5151 = vld [vmem:[#allocation2 + $0x20] sm:$0xff]
        %v5152 = vld [vmem:[#allocation2 + $0x28] sm:$0xff]
        %v5153 = vld [vmem:[#allocation2 + $0x30] sm:$0xff]
        %v5154 = vld [vmem:[#allocation2 + $0x38] sm:$0xff]
        %v5155 = vld [vmem:[#allocation2 + $0x40] sm:$0xff]
        %v5156 = vld [vmem:[#allocation2 + $0x48] sm:$0xff]
        %v5157 = vld [vmem:[#allocation2 + $0x50] sm:$0xff]
        %v5158 = vld [vmem:[#allocation2 + $0x58] sm:$0xff]
        %v5159 = vld [vmem:[#allocation2 + $0x60] sm:$0xff]
        %v5160 = vld [vmem:[#allocation2 + $0x68] sm:$0xff]
        %v5161 = vld [vmem:[#allocation2 + $0x70] sm:$0xff]
        %v5162 = vld [vmem:[#allocation2 + $0x78] sm:$0xff]
        %v5163 = vld [vmem:[#allocation2 + $0x80] sm:$0xff]
        %v5164 = vld [vmem:[#allocation2 + $0x88] sm:$0xff]
        %v5165 = vld [vmem:[#allocation2 + $0x90] sm:$0xff]
        %v5166 = vld [vmem:[#allocation2 + $0x98] sm:$0xff]
        %v5167 = vld [vmem:[#allocation2 + $0xa0] sm:$0xff]
        %v5168 = vld [vmem:[#allocation2 + $0xa8] sm:$0xff]
        %v5169 = vld [vmem:[#allocation2 + $0xb0] sm:$0xff]
        %v5170 = vld [vmem:[#allocation2 + $0xb8] sm:$0xff]
        %v5171 = vld [vmem:[#allocation2 + $0xc0] sm:$0xff]
        %v5172 = vld [vmem:[#allocation2 + $0xc8] sm:$0xff]
        %v5173 = vld [vmem:[#allocation2 + $0xd0] sm:$0xff]
        %v5174 = vld [vmem:[#allocation2 + $0xd8] sm:$0xff]
        %v5175 = vld [vmem:[#allocation2 + $0xe0] sm:$0xff]
        %v5176 = vld [vmem:[#allocation2 + $0xe8] sm:$0xff]
        %v5177 = vld [vmem:[#allocation2 + $0xf0] sm:$0xff]
        %v5178 = vld [vmem:[#allocation2 + $0xf8] sm:$0xff]
        %v5227 = vrot.slane %v5099, 5
        %v5228 = vrot.slane %v5227, 4
        %v5229 = vrot.slane %v5100, 5
        %v5230 = vsel %vm1590, %v5228, %v5229
        %v5231 = vrot.slane %v5229, 4
        %v5232 = vrot.slane %v5101, 5
        %v5233 = vsel %vm1590, %v5231, %v5232
        %v5234 = vrot.slane %v5102, 5
        %v5235 = vrot.slane %v5234, 4
        %v5236 = vrot.slane %v5103, 5
        %v5237 = vsel %vm1590, %v5235, %v5236
        %v5238 = vrot.slane %v5236, 4
        %v5239 = vrot.slane %v5104, 5
        %v5240 = vsel %vm1590, %v5238, %v5239
        %v5241 = vrot.slane %v5105, 5
        %v5242 = vrot.slane %v5241, 4
        %v5243 = vrot.slane %v5106, 5
        %v5244 = vsel %vm1590, %v5242, %v5243
        %v5245 = vrot.slane %v5243, 4
        %v5246 = vrot.slane %v5107, 5
        %v5247 = vsel %vm1590, %v5245, %v5246
        %v5248 = vrot.slane %v5108, 5
        %v5249 = vrot.slane %v5248, 4
        %v5250 = vrot.slane %v5109, 5
        %v5251 = vsel %vm1590, %v5249, %v5250
        %v5252 = vrot.slane %v5250, 4
        %v5253 = vrot.slane %v5110, 5
        %v5254 = vsel %vm1590, %v5252, %v5253
        %v5255 = vrot.slane %v5111, 5
        %v5256 = vrot.slane %v5255, 4
        %v5257 = vrot.slane %v5112, 5
        %v5258 = vsel %vm1590, %v5256, %v5257
        %v5259 = vrot.slane %v5257, 4
        %v5260 = vrot.slane %v5113, 5
        %v5261 = vsel %vm1590, %v5259, %v5260
        %v5262 = vrot.slane %v5114, 5
        %v5263 = vrot.slane %v5262, 4
        %v5264 = vrot.slane %v5115, 5
        %v5265 = vsel %vm1590, %v5263, %v5264
        %v5266 = vrot.slane %v5264, 4
        %v5267 = vrot.slane %v5116, 5
        %v5268 = vsel %vm1590, %v5266, %v5267
        %v5269 = vrot.slane %v5117, 5
        %v5270 = vrot.slane %v5269, 4
        %v5271 = vrot.slane %v5118, 5
        %v5272 = vsel %vm1590, %v5270, %v5271
        %v5273 = vrot.slane %v5271, 4
        %v5274 = vrot.slane %v5119, 5
        %v5275 = vsel %vm1590, %v5273, %v5274
        %v5276 = vrot.slane %v5120, 5
        %v5277 = vrot.slane %v5276, 4
        %v5278 = vrot.slane %v5121, 5
        %v5279 = vsel %vm1590, %v5277, %v5278
        %v5280 = vrot.slane %v5278, 4
        %v5281 = vrot.slane %v5122, 5
        %v5282 = vsel %vm1590, %v5280, %v5281
        %v5283 = vrot.slane %v5123, 5
        %v5284 = vrot.slane %v5283, 4
        %v5285 = vrot.slane %v5124, 5
        %v5286 = vsel %vm1590, %v5284, %v5285
        %v5287 = vrot.slane %v5285, 4
        %v5288 = vrot.slane %v5125, 5
        %v5289 = vsel %vm1590, %v5287, %v5288
        %v5290 = vrot.slane %v5126, 5
        %v5291 = vrot.slane %v5290, 4
        %v5292 = vrot.slane %v5127, 5
        %v5293 = vsel %vm1590, %v5291, %v5292
        %v5294 = vrot.slane %v5292, 4
        %v5295 = vrot.slane %v5128, 5
        %v5296 = vsel %vm1590, %v5294, %v5295
        %v5297 = vrot.slane %v5129, 5
        %v5298 = vrot.slane %v5297, 4
        %v5299 = vrot.slane %v5130, 5
        %v5300 = vsel %vm1590, %v5298, %v5299
        %v5301 = vrot.slane %v5299, 4
        %v5302 = vrot.slane %v5131, 5
        %v5303 = vsel %vm1590, %v5301, %v5302
        %v5304 = vrot.slane %v5132, 5
        %v5305 = vrot.slane %v5304, 4
        %v5306 = vrot.slane %v5133, 5
        %v5307 = vsel %vm1590, %v5305, %v5306
        %v5308 = vrot.slane %v5306, 4
        %v5309 = vrot.slane %v5134, 5
        %v5310 = vsel %vm1590, %v5308, %v5309
        %v5311 = vrot.slane %v5135, 5
        %v5312 = vrot.slane %v5311, 4
        %v5313 = vrot.slane %v5136, 5
        %v5314 = vsel %vm1590, %v5312, %v5313
        %v5315 = vrot.slane %v5313, 4
        %v5316 = vrot.slane %v5137, 5
        %v5317 = vsel %vm1590, %v5315, %v5316
        %v5318 = vrot.slane %v5138, 5
        %v5319 = vrot.slane %v5318, 4
        %v5320 = vrot.slane %v5139, 5
        %v5321 = vsel %vm1590, %v5319, %v5320
        %v5322 = vrot.slane %v5320, 4
        %v5323 = vrot.slane %v5140, 5
        %v5324 = vsel %vm1590, %v5322, %v5323
        %v5325 = vrot.slane %v5141, 5
        %v5326 = vrot.slane %v5325, 4
        %v5327 = vrot.slane %v5142, 5
        %v5328 = vsel %vm1590, %v5326, %v5327
        %v5329 = vrot.slane %v5327, 4
        %v5330 = vrot.slane %v5143, 5
        %v5331 = vsel %vm1590, %v5329, %v5330
        %v5332 = vrot.slane %v5144, 5
        %v5333 = vrot.slane %v5332, 4
        %v5334 = vrot.slane %v5145, 5
        %v5335 = vsel %vm1590, %v5333, %v5334
        %v5336 = vrot.slane %v5334, 4
        %v5337 = vrot.slane %v5146, 5
        %v5338 = vsel %vm1590, %v5336, %v5337
        %s5339 = scalar_lea.vmem %s1, 128
        %v5340 = vld [vmem:[%s5339] sm:$0xf]
        %v5341 = vld [vmem:[%s5339 + $0x4] sm:$0xf]
        %v5342 = vld [vmem:[%s5339 + $0x8] sm:$0xf]
        %v5343 = vld [vmem:[%s5339 + $0xc] sm:$0xf]
        %v5344 = vunpack.c.l.b16 %v5230
        %v5345 = vunpack.c.l.b16 %v5233
        %v5346 = vunpack.c.l.b16 %v5237
        %v5347 = vunpack.c.l.b16 %v5240
        %v5348 = vunpack.c.l.b16 %v5244
        %v5349 = vunpack.c.l.b16 %v5247
        %v5350 = vunpack.c.l.b16 %v5251
        %v5351 = vunpack.c.l.b16 %v5254
        %v5352 = vunpack.c.l.b16 %v5258
        %v5353 = vunpack.c.l.b16 %v5261
        %v5354 = vunpack.c.l.b16 %v5265
        %v5355 = vunpack.c.l.b16 %v5268
        %v5356 = vunpack.c.l.b16 %v5272
        %v5357 = vunpack.c.l.b16 %v5275
        %v5358 = vunpack.c.l.b16 %v5279
        %v5359 = vunpack.c.l.b16 %v5282
        %v5360 = vunpack.c.l.b16 %v5286
        %v5361 = vunpack.c.l.b16 %v5289
        %v5362 = vunpack.c.l.b16 %v5293
        %v5363 = vunpack.c.l.b16 %v5296
        %v5364 = vunpack.c.l.b16 %v5300
        %v5365 = vunpack.c.l.b16 %v5303
        %v5366 = vunpack.c.l.b16 %v5307
        %v5367 = vunpack.c.l.b16 %v5310
        %v5368 = vunpack.c.l.b16 %v5314
        %v5369 = vunpack.c.l.b16 %v5317
        %v5370 = vunpack.c.l.b16 %v5321
        %v5371 = vunpack.c.l.b16 %v5324
        %v5372 = vunpack.c.l.b16 %v5328
        %v5373 = vunpack.c.l.b16 %v5331
        %v5374 = vunpack.c.l.b16 %v5335
        %v5375 = vunpack.c.l.b16 %v5338
        %v5376 = vpack.c.b16 %v5345, %v5344
        %v5377 = vpack.c.b16 %v5347, %v5346
        %v5378 = vpack.c.b16 %v5349, %v5348
        %v5379 = vpack.c.b16 %v5351, %v5350
        %v5380 = vpack.c.b16 %v5353, %v5352
        %v5381 = vpack.c.b16 %v5355, %v5354
        %v5382 = vpack.c.b16 %v5357, %v5356
        %v5383 = vpack.c.b16 %v5359, %v5358
        %v5384 = vpack.c.b16 %v5361, %v5360
        %v5385 = vpack.c.b16 %v5363, %v5362
        %v5386 = vpack.c.b16 %v5365, %v5364
        %v5387 = vpack.c.b16 %v5367, %v5366
        %v5388 = vpack.c.b16 %v5369, %v5368
        %v5389 = vpack.c.b16 %v5371, %v5370
        %v5390 = vpack.c.b16 %v5373, %v5372
        %v5391 = vpack.c.b16 %v5375, %v5374
        %v5396 = vunpack.c.l.b16 %v5340
        %v5397 = vunpack.c.l.b16 %v5341
        %v5398 = vunpack.c.l.b16 %v5342
        %v5399 = vunpack.c.l.b16 %v5343
        %v5400 = vpack.c.b16 %v5397, %v5396
        %v5401 = vpack.c.b16 %v5399, %v5398
        %v5405 = vsel %vm186, %v5376, 0
        %v5408 = vsel %vm186, %v5377, 0
        %v5411 = vsel %vm186, %v5378, 0
        %v5414 = vsel %vm186, %v5379, 0
        %v5417 = vsel %vm186, %v5380, 0
        %v5420 = vsel %vm186, %v5381, 0
        %v5423 = vsel %vm186, %v5382, 0
        %v5426 = vsel %vm186, %v5383, 0
        %v5429 = vsel %vm186, %v5384, 0
        %v5432 = vsel %vm186, %v5385, 0
        %v5435 = vsel %vm186, %v5386, 0
        %v5438 = vsel %vm186, %v5387, 0
        %v5441 = vsel %vm186, %v5388, 0
        %v5444 = vsel %vm186, %v5389, 0
        %v5447 = vsel %vm186, %v5390, 0
        %v5450 = vsel %vm186, %v5391, 0
        %5452 = vmatprep.subr.bf16.mxu0 0
        %5453 = vmatpush1.bf16.msra.mxu0 %v5400
        %5454 = vmatprep.subr.bf16.mxu0 0
        %5455 = vmatpush1.bf16.msra.mxu0 %v5401
        %5456 = vmatprep.subr.bf16.mxu0 0
        %5457 = vmatpush1.bf16.msra.mxu0 0
        %5458 = vmatprep.subr.bf16.mxu0 0
        %5459 = vmatpush1.bf16.msra.mxu0 0
        %5460 = vmatprep.subr.bf16.mxu0 0
        %5461 = vmatpush1.bf16.msra.mxu0 0
        %5462 = vmatprep.subr.bf16.mxu0 0
        %5463 = vmatpush1.bf16.msra.mxu0 0
        %5464 = vmatprep.subr.bf16.mxu0 0
        %5465 = vmatpush1.bf16.msra.mxu0 0
        %5466 = vmatprep.subr.bf16.mxu0 0
        %5467 = vmatpush1.bf16.msra.mxu0 0
        %5468 = vmatprep.subr.bf16.mxu0 0
        %5469 = vmatpush1.bf16.msra.mxu0 0
        %5470 = vmatprep.subr.bf16.mxu0 0
        %5471 = vmatpush1.bf16.msra.mxu0 0
        %5472 = vmatprep.subr.bf16.mxu0 0
        %5473 = vmatpush1.bf16.msra.mxu0 0
        %5474 = vmatprep.subr.bf16.mxu0 0
        %5475 = vmatpush1.bf16.msra.mxu0 0
        %5476 = vmatprep.subr.bf16.mxu0 0
        %5477 = vmatpush1.bf16.msra.mxu0 0
        %5478 = vmatprep.subr.bf16.mxu0 0
        %5479 = vmatpush1.bf16.msra.mxu0 0
        %5480 = vmatprep.subr.bf16.mxu0 0
        %5481 = vmatpush1.bf16.msra.mxu0 0
        %5482 = vmatprep.subr.bf16.mxu0 0
        %5483 = vmatpush1.bf16.msra.mxu0 0
        %5484 = vmatprep.mubr.bf16.mxu0 0
        %5485 = vmatmul.mubr.bf16.gmra.mrb[0].mxu0 %v5405
        %v5486 = vpop.f32.mrb[0].mxu0
        %v5487 = vadd.f32 0.0, %v5486
        %v5488 = vpop.f32.mrb[0].mxu0
        %v5489 = vpop.f32.mrb[0].mxu0
        %v5490 = vadd.f32 0.0, %v5489
        %v5491 = vpop.f32.mrb[0].mxu0
        %5492 = vmatprep.mubr.bf16.mxu0 0
        %5493 = vmatmul.mubr.bf16.gmra.mrb[0].mxu0 %v5408
        %v5494 = vpop.f32.mrb[0].mxu0
        %v5495 = vadd.f32 0.0, %v5494
        %v5496 = vpop.f32.mrb[0].mxu0
        %v5497 = vpop.f32.mrb[0].mxu0
        %v5498 = vadd.f32 0.0, %v5497
        %v5499 = vpop.f32.mrb[0].mxu0
        %5500 = vmatprep.mubr.bf16.mxu0 0
        %5501 = vmatmul.mubr.bf16.gmra.mrb[0].mxu0 %v5411
        %v5502 = vpop.f32.mrb[0].mxu0
        %v5503 = vadd.f32 0.0, %v5502
        %v5504 = vpop.f32.mrb[0].mxu0
        %v5505 = vpop.f32.mrb[0].mxu0
        %v5506 = vadd.f32 0.0, %v5505
        %v5507 = vpop.f32.mrb[0].mxu0
        %5508 = vmatprep.mubr.bf16.mxu0 0
        %5509 = vmatmul.mubr.bf16.gmra.mrb[0].mxu0 %v5414
        %v5510 = vpop.f32.mrb[0].mxu0
        %v5511 = vadd.f32 0.0, %v5510
        %v5512 = vpop.f32.mrb[0].mxu0
        %v5513 = vpop.f32.mrb[0].mxu0
        %v5514 = vadd.f32 0.0, %v5513
        %v5515 = vpop.f32.mrb[0].mxu0
        %5516 = vmatprep.mubr.bf16.mxu0 0
        %5517 = vmatmul.mubr.bf16.gmra.mrb[0].mxu0 %v5417
        %v5518 = vpop.f32.mrb[0].mxu0
        %v5519 = vadd.f32 0.0, %v5518
        %v5520 = vpop.f32.mrb[0].mxu0
        %v5521 = vpop.f32.mrb[0].mxu0
        %v5522 = vadd.f32 0.0, %v5521
        %v5523 = vpop.f32.mrb[0].mxu0
        %5524 = vmatprep.mubr.bf16.mxu0 0
        %5525 = vmatmul.mubr.bf16.gmra.mrb[0].mxu0 %v5420
        %v5526 = vpop.f32.mrb[0].mxu0
        %v5527 = vadd.f32 0.0, %v5526
        %v5528 = vpop.f32.mrb[0].mxu0
        %v5529 = vpop.f32.mrb[0].mxu0
        %v5530 = vadd.f32 0.0, %v5529
        %v5531 = vpop.f32.mrb[0].mxu0
        %5532 = vmatprep.mubr.bf16.mxu0 0
        %5533 = vmatmul.mubr.bf16.gmra.mrb[0].mxu0 %v5423
        %v5534 = vpop.f32.mrb[0].mxu0
        %v5535 = vadd.f32 0.0, %v5534
        %v5536 = vpop.f32.mrb[0].mxu0
        %v5537 = vpop.f32.mrb[0].mxu0
        %v5538 = vadd.f32 0.0, %v5537
        %v5539 = vpop.f32.mrb[0].mxu0
        %5540 = vmatprep.mubr.bf16.mxu0 0
        %5541 = vmatmul.mubr.bf16.gmra.mrb[0].mxu0 %v5426
        %v5542 = vpop.f32.mrb[0].mxu0
        %v5543 = vadd.f32 0.0, %v5542
        %v5544 = vpop.f32.mrb[0].mxu0
        %v5545 = vpop.f32.mrb[0].mxu0
        %v5546 = vadd.f32 0.0, %v5545
        %v5547 = vpop.f32.mrb[0].mxu0
        %5548 = vmatprep.mubr.bf16.mxu0 0
        %5549 = vmatmul.mubr.bf16.gmra.mrb[0].mxu0 %v5429
        %v5550 = vpop.f32.mrb[0].mxu0
        %v5551 = vadd.f32 0.0, %v5550
        %v5552 = vpop.f32.mrb[0].mxu0
        %v5553 = vpop.f32.mrb[0].mxu0
        %v5554 = vadd.f32 0.0, %v5553
        %v5555 = vpop.f32.mrb[0].mxu0
        %5556 = vmatprep.mubr.bf16.mxu0 0
        %5557 = vmatmul.mubr.bf16.gmra.mrb[0].mxu0 %v5432
        %v5558 = vpop.f32.mrb[0].mxu0
        %v5559 = vadd.f32 0.0, %v5558
        %v5560 = vpop.f32.mrb[0].mxu0
        %v5561 = vpop.f32.mrb[0].mxu0
        %v5562 = vadd.f32 0.0, %v5561
        %v5563 = vpop.f32.mrb[0].mxu0
        %5564 = vmatprep.mubr.bf16.mxu0 0
        %5565 = vmatmul.mubr.bf16.gmra.mrb[0].mxu0 %v5435
        %v5566 = vpop.f32.mrb[0].mxu0
        %v5567 = vadd.f32 0.0, %v5566
        %v5568 = vpop.f32.mrb[0].mxu0
        %v5569 = vpop.f32.mrb[0].mxu0
        %v5570 = vadd.f32 0.0, %v5569
        %v5571 = vpop.f32.mrb[0].mxu0
        %5572 = vmatprep.mubr.bf16.mxu0 0
        %5573 = vmatmul.mubr.bf16.gmra.mrb[0].mxu0 %v5438
        %v5574 = vpop.f32.mrb[0].mxu0
        %v5575 = vadd.f32 0.0, %v5574
        %v5576 = vpop.f32.mrb[0].mxu0
        %v5577 = vpop.f32.mrb[0].mxu0
        %v5578 = vadd.f32 0.0, %v5577
        %v5579 = vpop.f32.mrb[0].mxu0
        %5580 = vmatprep.mubr.bf16.mxu0 0
        %5581 = vmatmul.mubr.bf16.gmra.mrb[0].mxu0 %v5441
        %v5582 = vpop.f32.mrb[0].mxu0
        %v5583 = vadd.f32 0.0, %v5582
        %v5584 = vpop.f32.mrb[0].mxu0
        %v5585 = vpop.f32.mrb[0].mxu0
        %v5586 = vadd.f32 0.0, %v5585
        %v5587 = vpop.f32.mrb[0].mxu0
        %5588 = vmatprep.mubr.bf16.mxu0 0
        %5589 = vmatmul.mubr.bf16.gmra.mrb[0].mxu0 %v5444
        %v5590 = vpop.f32.mrb[0].mxu0
        %v5591 = vadd.f32 0.0, %v5590
        %v5592 = vpop.f32.mrb[0].mxu0
        %v5593 = vpop.f32.mrb[0].mxu0
        %v5594 = vadd.f32 0.0, %v5593
        %v5595 = vpop.f32.mrb[0].mxu0
        %5596 = vmatprep.mubr.bf16.mxu0 0
        %5597 = vmatmul.mubr.bf16.gmra.mrb[0].mxu0 %v5447
        %v5598 = vpop.f32.mrb[0].mxu0
        %v5599 = vadd.f32 0.0, %v5598
        %v5600 = vpop.f32.mrb[0].mxu0
        %v5601 = vpop.f32.mrb[0].mxu0
        %v5602 = vadd.f32 0.0, %v5601
        %v5603 = vpop.f32.mrb[0].mxu0
        %5604 = vmatprep.mubr.bf16.mxu0 0
        %5605 = vmatmul.mubr.bf16.gmra.mrb[0].mxu0 %v5450
        %v5606 = vpop.f32.mrb[0].mxu0
        %v5607 = vadd.f32 0.0, %v5606
        %v5608 = vpop.f32.mrb[0].mxu0
        %v5609 = vpop.f32.mrb[0].mxu0
        %v5610 = vadd.f32 0.0, %v5609
        %v5611 = vpop.f32.mrb[0].mxu0
        %5612 = vdwg.mxu0
        %v5613 = vadd.f32 %v5147, %v5487
        %v5614 = vadd.f32 %v5148, %v5490
        %v5615 = vadd.f32 %v5149, %v5495
        %v5616 = vadd.f32 %v5150, %v5498
        %v5617 = vadd.f32 %v5151, %v5503
        %v5618 = vadd.f32 %v5152, %v5506
        %v5619 = vadd.f32 %v5153, %v5511
        %v5620 = vadd.f32 %v5154, %v5514
        %v5621 = vadd.f32 %v5155, %v5519
        %v5622 = vadd.f32 %v5156, %v5522
        %v5623 = vadd.f32 %v5157, %v5527
        %v5624 = vadd.f32 %v5158, %v5530
        %v5625 = vadd.f32 %v5159, %v5535
        %v5626 = vadd.f32 %v5160, %v5538
        %v5627 = vadd.f32 %v5161, %v5543
        %v5628 = vadd.f32 %v5162, %v5546
        %v5629 = vadd.f32 %v5163, %v5551
        %v5630 = vadd.f32 %v5164, %v5554
        %v5631 = vadd.f32 %v5165, %v5559
        %v5632 = vadd.f32 %v5166, %v5562
        %v5633 = vadd.f32 %v5167, %v5567
        %v5634 = vadd.f32 %v5168, %v5570
        %v5635 = vadd.f32 %v5169, %v5575
        %v5636 = vadd.f32 %v5170, %v5578
        %v5637 = vadd.f32 %v5171, %v5583
        %v5638 = vadd.f32 %v5172, %v5586
        %v5639 = vadd.f32 %v5173, %v5591
        %v5640 = vadd.f32 %v5174, %v5594
        %v5641 = vadd.f32 %v5175, %v5599
        %v5642 = vadd.f32 %v5176, %v5602
        %v5643 = vadd.f32 %v5177, %v5607
        %v5644 = vadd.f32 %v5178, %v5610
        %5645 = vst.msk [vmem:[#allocation2] sm:$0xff] %vm186, %v5613
        %5646 = vst.msk [vmem:[#allocation2 + $0x8] sm:$0xff] %vm186, %v5614
        %5647 = vst.msk [vmem:[#allocation2 + $0x10] sm:$0xff] %vm186, %v5615
        %5648 = vst.msk [vmem:[#allocation2 + $0x18] sm:$0xff] %vm186, %v5616
        %5649 = vst.msk [vmem:[#allocation2 + $0x20] sm:$0xff] %vm186, %v5617
        %5650 = vst.msk [vmem:[#allocation2 + $0x28] sm:$0xff] %vm186, %v5618
        %5651 = vst.msk [vmem:[#allocation2 + $0x30] sm:$0xff] %vm186, %v5619
        %5652 = vst.msk [vmem:[#allocation2 + $0x38] sm:$0xff] %vm186, %v5620
        %5653 = vst.msk [vmem:[#allocation2 + $0x40] sm:$0xff] %vm186, %v5621
        %5654 = vst.msk [vmem:[#allocation2 + $0x48] sm:$0xff] %vm186, %v5622
        %5655 = vst.msk [vmem:[#allocation2 + $0x50] sm:$0xff] %vm186, %v5623
        %5656 = vst.msk [vmem:[#allocation2 + $0x58] sm:$0xff] %vm186, %v5624
        %5657 = vst.msk [vmem:[#allocation2 + $0x60] sm:$0xff] %vm186, %v5625
        %5658 = vst.msk [vmem:[#allocation2 + $0x68] sm:$0xff] %vm186, %v5626
        %5659 = vst.msk [vmem:[#allocation2 + $0x70] sm:$0xff] %vm186, %v5627
        %5660 = vst.msk [vmem:[#allocation2 + $0x78] sm:$0xff] %vm186, %v5628
        %5661 = vst.msk [vmem:[#allocation2 + $0x80] sm:$0xff] %vm186, %v5629
        %5662 = vst.msk [vmem:[#allocation2 + $0x88] sm:$0xff] %vm186, %v5630
        %5663 = vst.msk [vmem:[#allocation2 + $0x90] sm:$0xff] %vm186, %v5631
        %5664 = vst.msk [vmem:[#allocation2 + $0x98] sm:$0xff] %vm186, %v5632
        %5665 = vst.msk [vmem:[#allocation2 + $0xa0] sm:$0xff] %vm186, %v5633
        %5666 = vst.msk [vmem:[#allocation2 + $0xa8] sm:$0xff] %vm186, %v5634
        %5667 = vst.msk [vmem:[#allocation2 + $0xb0] sm:$0xff] %vm186, %v5635
        %5668 = vst.msk [vmem:[#allocation2 + $0xb8] sm:$0xff] %vm186, %v5636
        %5669 = vst.msk [vmem:[#allocation2 + $0xc0] sm:$0xff] %vm186, %v5637
        %5670 = vst.msk [vmem:[#allocation2 + $0xc8] sm:$0xff] %vm186, %v5638
        %5671 = vst.msk [vmem:[#allocation2 + $0xd0] sm:$0xff] %vm186, %v5639
        %5672 = vst.msk [vmem:[#allocation2 + $0xd8] sm:$0xff] %vm186, %v5640
        %5673 = vst.msk [vmem:[#allocation2 + $0xe0] sm:$0xff] %vm186, %v5641
        %5674 = vst.msk [vmem:[#allocation2 + $0xe8] sm:$0xff] %vm186, %v5642
        %5675 = vst.msk [vmem:[#allocation2 + $0xf0] sm:$0xff] %vm186, %v5643
        %5676 = vst.msk [vmem:[#allocation2 + $0xf8] sm:$0xff] %vm186, %v5644
        %v5677 = vld [vmem:[#allocation2] sm:$0xff]
        %v5678 = vld [vmem:[#allocation2 + $0x8] sm:$0xff]
        %v5679 = vld [vmem:[#allocation2 + $0x10] sm:$0xff]
        %v5680 = vld [vmem:[#allocation2 + $0x18] sm:$0xff]
        %v5681 = vld [vmem:[#allocation2 + $0x20] sm:$0xff]
        %v5682 = vld [vmem:[#allocation2 + $0x28] sm:$0xff]
        %v5683 = vld [vmem:[#allocation2 + $0x30] sm:$0xff]
        %v5684 = vld [vmem:[#allocation2 + $0x38] sm:$0xff]
        %v5685 = vld [vmem:[#allocation2 + $0x40] sm:$0xff]
        %v5686 = vld [vmem:[#allocation2 + $0x48] sm:$0xff]
        %v5687 = vld [vmem:[#allocation2 + $0x50] sm:$0xff]
        %v5688 = vld [vmem:[#allocation2 + $0x58] sm:$0xff]
        %v5689 = vld [vmem:[#allocation2 + $0x60] sm:$0xff]
        %v5690 = vld [vmem:[#allocation2 + $0x68] sm:$0xff]
        %v5691 = vld [vmem:[#allocation2 + $0x70] sm:$0xff]
        %v5692 = vld [vmem:[#allocation2 + $0x78] sm:$0xff]
        %v5693 = vld [vmem:[#allocation2 + $0x80] sm:$0xff]
        %v5694 = vld [vmem:[#allocation2 + $0x88] sm:$0xff]
        %v5695 = vld [vmem:[#allocation2 + $0x90] sm:$0xff]
        %v5696 = vld [vmem:[#allocation2 + $0x98] sm:$0xff]
        %v5697 = vld [vmem:[#allocation2 + $0xa0] sm:$0xff]
        %v5698 = vld [vmem:[#allocation2 + $0xa8] sm:$0xff]
        %v5699 = vld [vmem:[#allocation2 + $0xb0] sm:$0xff]
        %v5700 = vld [vmem:[#allocation2 + $0xb8] sm:$0xff]
        %v5701 = vld [vmem:[#allocation2 + $0xc0] sm:$0xff]
        %v5702 = vld [vmem:[#allocation2 + $0xc8] sm:$0xff]
        %v5703 = vld [vmem:[#allocation2 + $0xd0] sm:$0xff]
        %v5704 = vld [vmem:[#allocation2 + $0xd8] sm:$0xff]
        %v5705 = vld [vmem:[#allocation2 + $0xe0] sm:$0xff]
        %v5706 = vld [vmem:[#allocation2 + $0xe8] sm:$0xff]
        %v5707 = vld [vmem:[#allocation2 + $0xf0] sm:$0xff]
        %v5708 = vld [vmem:[#allocation2 + $0xf8] sm:$0xff]
        %v5709 = vld [vmem:[%s2] sm:$0x1]
        %v5711 = vlaneseq
        %v5712 = vshrl.u32 %v5711, 7
        %v5713 = vsub.s32 0, %v5712
        %v5714 = vrot.slane %v5709, %v5713
        %v5716 = vadd.f32 %v5677, %v5714
        %v5717 = vadd.f32 %v5678, %v5714
        %v5718 = vadd.f32 %v5679, %v5714
        %v5719 = vadd.f32 %v5680, %v5714
        %v5720 = vadd.f32 %v5681, %v5714
        %v5721 = vadd.f32 %v5682, %v5714
        %v5722 = vadd.f32 %v5683, %v5714
        %v5723 = vadd.f32 %v5684, %v5714
        %v5724 = vadd.f32 %v5685, %v5714
        %v5725 = vadd.f32 %v5686, %v5714
        %v5726 = vadd.f32 %v5687, %v5714
        %v5727 = vadd.f32 %v5688, %v5714
        %v5728 = vadd.f32 %v5689, %v5714
        %v5729 = vadd.f32 %v5690, %v5714
        %v5730 = vadd.f32 %v5691, %v5714
        %v5731 = vadd.f32 %v5692, %v5714
        %v5732 = vadd.f32 %v5693, %v5714
        %v5733 = vadd.f32 %v5694, %v5714
        %v5734 = vadd.f32 %v5695, %v5714
        %v5735 = vadd.f32 %v5696, %v5714
        %v5736 = vadd.f32 %v5697, %v5714
        %v5737 = vadd.f32 %v5698, %v5714
        %v5738 = vadd.f32 %v5699, %v5714
        %v5739 = vadd.f32 %v5700, %v5714
        %v5740 = vadd.f32 %v5701, %v5714
        %v5741 = vadd.f32 %v5702, %v5714
        %v5742 = vadd.f32 %v5703, %v5714
        %v5743 = vadd.f32 %v5704, %v5714
        %v5744 = vadd.f32 %v5705, %v5714
        %v5745 = vadd.f32 %v5706, %v5714
        %v5746 = vadd.f32 %v5707, %v5714
        %v5747 = vadd.f32 %v5708, %v5714
        %v5748 = vmax.f32 %v5716, 0.0
        %v5749 = vmax.f32 %v5717, 0.0
        %v5750 = vmax.f32 %v5718, 0.0
        %v5751 = vmax.f32 %v5719, 0.0
        %v5752 = vmax.f32 %v5720, 0.0
        %v5753 = vmax.f32 %v5721, 0.0
        %v5754 = vmax.f32 %v5722, 0.0
        %v5755 = vmax.f32 %v5723, 0.0
        %v5756 = vmax.f32 %v5724, 0.0
        %v5757 = vmax.f32 %v5725, 0.0
        %v5758 = vmax.f32 %v5726, 0.0
        %v5759 = vmax.f32 %v5727, 0.0
        %v5760 = vmax.f32 %v5728, 0.0
        %v5761 = vmax.f32 %v5729, 0.0
        %v5762 = vmax.f32 %v5730, 0.0
        %v5763 = vmax.f32 %v5731, 0.0
        %v5764 = vmax.f32 %v5732, 0.0
        %v5765 = vmax.f32 %v5733, 0.0
        %v5766 = vmax.f32 %v5734, 0.0
        %v5767 = vmax.f32 %v5735, 0.0
        %v5768 = vmax.f32 %v5736, 0.0
        %v5769 = vmax.f32 %v5737, 0.0
        %v5770 = vmax.f32 %v5738, 0.0
        %v5771 = vmax.f32 %v5739, 0.0
        %v5772 = vmax.f32 %v5740, 0.0
        %v5773 = vmax.f32 %v5741, 0.0
        %v5774 = vmax.f32 %v5742, 0.0
        %v5775 = vmax.f32 %v5743, 0.0
        %v5776 = vmax.f32 %v5744, 0.0
        %v5777 = vmax.f32 %v5745, 0.0
        %v5778 = vmax.f32 %v5746, 0.0
        %v5779 = vmax.f32 %v5747, 0.0
        %5780 = vst.msk [vmem:[%s177] sm:$0xff] %vm186, %v5748
        %5781 = vst.msk [vmem:[%s177 + $0x8] sm:$0xff] %vm186, %v5749
        %5782 = vst.msk [vmem:[%s177 + $0x10] sm:$0xff] %vm186, %v5750
        %5783 = vst.msk [vmem:[%s177 + $0x18] sm:$0xff] %vm186, %v5751
        %5784 = vst.msk [vmem:[%s177 + $0x20] sm:$0xff] %vm186, %v5752
        %5785 = vst.msk [vmem:[%s177 + $0x28] sm:$0xff] %vm186, %v5753
        %5786 = vst.msk [vmem:[%s177 + $0x30] sm:$0xff] %vm186, %v5754
        %5787 = vst.msk [vmem:[%s177 + $0x38] sm:$0xff] %vm186, %v5755
        %5788 = vst.msk [vmem:[%s177 + $0x40] sm:$0xff] %vm186, %v5756
        %5789 = vst.msk [vmem:[%s177 + $0x48] sm:$0xff] %vm186, %v5757
        %5790 = vst.msk [vmem:[%s177 + $0x50] sm:$0xff] %vm186, %v5758
        %5791 = vst.msk [vmem:[%s177 + $0x58] sm:$0xff] %vm186, %v5759
        %5792 = vst.msk [vmem:[%s177 + $0x60] sm:$0xff] %vm186, %v5760
        %5793 = vst.msk [vmem:[%s177 + $0x68] sm:$0xff] %vm186, %v5761
        %5794 = vst.msk [vmem:[%s177 + $0x70] sm:$0xff] %vm186, %v5762
        %5795 = vst.msk [vmem:[%s177 + $0x78] sm:$0xff] %vm186, %v5763
        %5796 = vst.msk [vmem:[%s177 + $0x80] sm:$0xff] %vm186, %v5764
        %5797 = vst.msk [vmem:[%s177 + $0x88] sm:$0xff] %vm186, %v5765
        %5798 = vst.msk [vmem:[%s177 + $0x90] sm:$0xff] %vm186, %v5766
        %5799 = vst.msk [vmem:[%s177 + $0x98] sm:$0xff] %vm186, %v5767
        %5800 = vst.msk [vmem:[%s177 + $0xa0] sm:$0xff] %vm186, %v5768
        %5801 = vst.msk [vmem:[%s177 + $0xa8] sm:$0xff] %vm186, %v5769
        %5802 = vst.msk [vmem:[%s177 + $0xb0] sm:$0xff] %vm186, %v5770
        %5803 = vst.msk [vmem:[%s177 + $0xb8] sm:$0xff] %vm186, %v5771
        %5804 = vst.msk [vmem:[%s177 + $0xc0] sm:$0xff] %vm186, %v5772
        %5805 = vst.msk [vmem:[%s177 + $0xc8] sm:$0xff] %vm186, %v5773
        %5806 = vst.msk [vmem:[%s177 + $0xd0] sm:$0xff] %vm186, %v5774
        %5807 = vst.msk [vmem:[%s177 + $0xd8] sm:$0xff] %vm186, %v5775
        %5808 = vst.msk [vmem:[%s177 + $0xe0] sm:$0xff] %vm186, %v5776
        %5809 = vst.msk [vmem:[%s177 + $0xe8] sm:$0xff] %vm186, %v5777
        %5810 = vst.msk [vmem:[%s177 + $0xf0] sm:$0xff] %vm186, %v5778
        %5811 = vst.msk [vmem:[%s177 + $0xf8] sm:$0xff] %vm186, %v5779
        %s5812 = sand.u32 %s107, 1
        %s5813 = scalar_lea.sflag [#allocation4], %s5812
        %s5814 = sand.u32 %s107, 1
        %s5815 = smul.addr %s5814, 256
        %s5816 = scalar_lea.vmem [#allocation3], %s5815
        // Predicated region
        $region33: #{conv_block_apply.1} parent=31 // pred_check
          %p5817 = pneg %p117
        $region34: #{conv_block_apply.1} parent=31 // pred_check_branch
          %5819 = sbr.rel (%p5817) target = $region36
        $region35: #{conv_block_apply.1} parent=31 // pred_region
          %s5820 = smul.u32 16, %s22
          %s5822 = ssub.s32 4096, 4096
          %5823 = vsyncadd %s5813, %s5822
          %s5824 = smul.addr %s5820, 2
          %s5825 = smul.addr %s21, 32
          %s5826 = sadd.s32 %s5824, %s5825
          %s5827 = smul.addr %s5826, 128
          %s5828 = scalar_lea.hbm %s3, %s5827
          %s5829 = sshll.u32 %s5816, 4
          %s5830 = int_to_ptr.vmem [resolvable:$true] %s5829
          %5835 = dma.vmem_to_hbm [thread:$0]  %s5830, 4096, %s5828, %s5813, 128, 128, 8
        $region36: #{conv_block_apply.1} parent=31 // pred_fallthru
          _
      $region32: #{conv_block_apply.1} parent=5 // pred_fallthru
        _
      %p5836 = scmp.le.s32.totalorder 2, %s12
      // Predicated region
      $region37: #{conv_block_apply.1} parent=5 // pred_check
        %p5837 = pneg %p5836
      $region38: #{conv_block_apply.1} parent=5 // pred_check_branch
        %5839 = sbr.rel (%p5837) target = $region40
      $region39: #{conv_block_apply.1} parent=5 // pred_region
        %s5840 = ssub.s32 %s12, 2
        // Predicated region
        $region41: #{conv_block_apply.1} parent=39 // pred_check
          %p5841 = pneg %p123
        $region42: #{conv_block_apply.1} parent=39 // pred_check_branch
          %5843 = sbr.rel (%p5841) target = $region44
        $region43: #{conv_block_apply.1} parent=39 // pred_region
          %s5844 = sand.u32 %s108, 1
          %s5845 = scalar_lea.sflag [#allocation4], %s5844
          %s5846 = sand.u32 %s108, 1
          %s5847 = smul.addr %s5846, 256
          %s5848 = scalar_lea.vmem [#allocation3], %s5847
          %5849 = dma.done %s5845, 4096
        $region44: #{conv_block_apply.1} parent=39 // pred_fallthru
          _
      $region40: #{conv_block_apply.1} parent=5 // pred_fallthru
        _
    $region6: #{conv_block_apply.1} parent=1 // loop_footer
      %s16 = sadd.s32 1, %s12
    $region7: #{conv_block_apply.1} parent=1 // loop_footer_branch
      %11 = sbr.rel target = $region3
    $region8: #{conv_block_apply.1} parent=1 // loop_exit
      _
    %5850 = vsyncpa [#allocation4], 1
    %s5851 = scalar_lea.sflag [#allocation4], 1
    %5852 = vsyncpa %s5851, 1

</llo_original>
